<compile_context>
chip_gen: v6e
topology: v6e:2x2x1
jax: 0.10.0
libtpu: 0.0.40
codegen_flags: <defaults>
</compile_context>

<pallas_src>
import math
import functools

import numpy as np
import jax
import jax.numpy as jnp
from jax.experimental import pallas as pl
from jax.experimental.pallas import tpu as pltpu


# ----------------------------------------------------------------------------
# Constant permutation matrices for the PyTorch layout quirks
# ----------------------------------------------------------------------------
def _build_permutations(num_heads, tgt_len, embed_dim):
    """Row-permutation matrices reproducing the module's layout quirks.

    perm_q: the second `_shape()` applied to the query is, per batch element,
      a permutation of the (H*T) rows of the (H*T, head_dim) query matrix:
        dst row h*T + t  <-  src row t*H + h.
    perm_o: `attn.transpose(1, 2).reshape(bsz, T, E)` is, per batch element
      (and with T | E), a row permutation of merged^T followed by laying the
      T-row blocks side by side:
        dst row j*T + r  <-  src row r*(E//T) + j.
    """
    H, T, E = num_heads, tgt_len, embed_dim
    n = H * T
    perm_q = np.zeros((n, n), np.float32)
    for h in range(H):
        for t in range(T):
            perm_q[h * T + t, t * H + h] = 1.0
    g = E // T
    perm_o = np.zeros((E, E), np.float32)
    for j in range(g):
        for r in range(T):
            perm_o[j * T + r, r * g + j] = 1.0
    return perm_q, perm_o


# ----------------------------------------------------------------------------
# Fused kernel: one distinct feat batch (and all its llm copies) per grid step
# ----------------------------------------------------------------------------
def _fused_kernel(gate_ref, llm_ref, feat_ref, pq_ref, po_ref,
                  wq_ref, bq_ref, wk_ref, bk_ref, wv_ref, bv_ref,
                  lnw_ref, lnb_ref, wo_ref, bo_ref, o_ref,
                  *, num_heads, eps):
    H = num_heads
    R, T, L = llm_ref.shape          # R = repeat ratio (llm copies of this feat block)
    _, S, E = feat_ref.shape         # feat block: (1, S, E)
    hd = E // H
    grp = E // T
    f32 = jnp.float32

    # ---- k/v projections: ONCE per distinct feat block (ratio-x saving) ------
    feat = feat_ref[0].astype(f32)                                              # (S, E)
    k0 = jnp.dot(feat, wk_ref[...], preferred_element_type=f32) + bk_ref[...]   # (S, E)
    v0 = jnp.dot(feat, wv_ref[...], preferred_element_type=f32) + bv_ref[...]   # (S, E)

    # ---- q projection for all R llm copies in one matmul ----------------------
    llm_flat = jnp.concatenate([llm_ref[r].astype(f32) for r in range(R)],
                               axis=0)                                           # (R*T, L)
    q0_all = (jnp.dot(llm_flat, wq_ref[...], preferred_element_type=f32)
              + bq_ref[...])                                                     # (R*T, E)

    # ---- attention core (per llm copy, all heads unrolled statically) ---------
    # TODO(synk): the static unroll over R (and H) is fine for the small repeat
    # ratios this module uses; very large ratios would want an in-kernel loop.
    attn_rows = []
    for r in range(R):
        q0 = q0_all[r * T:(r + 1) * T, :]                                        # (T, E)

        # torch `_shape` on q, applied twice (module quirk).
        # First _shape == stack per-head column blocks; rows ordered (head, time).
        q1 = jnp.concatenate([q0[:, h * hd:(h + 1) * hd] for h in range(H)],
                             axis=0)                                             # (H*T, hd)
        # Second _shape == fixed row permutation, done as a tiny MXU matmul.
        # The 1/sqrt(hd) attention scale is pre-folded into pq_ref by the wrapper.
        q2 = jnp.dot(pq_ref[...], q1, preferred_element_type=f32)                # (H*T, hd)

        head_outs = []
        for h in range(H):
            qh = q2[h * T:(h + 1) * T, :]        # (T, hd), already scaled
            kh = k0[:, h * hd:(h + 1) * hd]      # (S, hd)
            vh = v0[:, h * hd:(h + 1) * hd]      # (S, hd)
            # contract trailing dims of both operands (no explicit k transpose)
            s = jax.lax.dot_general(qh, kh, (((1,), (1,)), ((), ())),
                                    preferred_element_type=f32)                  # (T, S)
            m = jnp.max(s, axis=-1, keepdims=True)
            p = jnp.exp(s - m)
            p = p * pl.reciprocal(jnp.sum(p, axis=-1, keepdims=True), approx=True)
            head_outs.append(jnp.dot(p, vh, preferred_element_type=f32))         # (T, hd)
        merged = jnp.concatenate(head_outs, axis=1)                              # (T, E)

        # torch `.transpose(1, 2).reshape(bsz, T, E)` output quirk:
        # perm_o @ merged^T done in one dot_general contracting trailing dims
        # (no in-kernel transpose/reshape), then T-row blocks become column blocks.
        scr = jax.lax.dot_general(po_ref[...], merged, (((1,), (1,)), ((), ())),
                                  preferred_element_type=f32)                    # (E, T)
        attn_rows.append(jnp.concatenate(
            [scr[j * T:(j + 1) * T, :] for j in range(grp)], axis=1))            # (T, E)

    attn_all = jnp.concatenate(attn_rows, axis=0)                                # (R*T, E)

    # ---- LayerNorm over the (scrambled) channel dim, all R*T tokens at once ---
    mean = jnp.mean(attn_all, axis=-1, keepdims=True)
    xc = attn_all - mean
    var = jnp.mean(xc * xc, axis=-1, keepdims=True)       # biased, as torch LN
    tokens = xc * jax.lax.rsqrt(var + eps) * lnw_ref[...] + lnb_ref[...]         # (R*T, E)

    # ---- out_proj + tanh-gated residual, batched over all copies ---------------
    y = jnp.dot(tokens, wo_ref[...], preferred_element_type=f32) + bo_ref[...]   # (R*T, L)
    gate = jnp.tanh(jnp.full((1, 1), gate_ref[0, 0], dtype=f32))                  # (1, 1)
    out_all = llm_flat + gate * y                                                 # (R*T, L)
    for r in range(R):
        o_ref[r] = out_all[r * T:(r + 1) * T, :].astype(o_ref.dtype)


# ----------------------------------------------------------------------------
# Module forward
# ----------------------------------------------------------------------------
def cross_attention_feat_extractor(feat_tokens, llm_tokens, params, num_heads):
    B, S, E = feat_tokens.shape
    Bl, T, L = llm_tokens.shape
    H = num_heads
    hd = E // H
    assert E % H == 0
    assert Bl % B == 0, "llm batch must be a multiple of the feat batch"
    # TODO(synk): the in-kernel reproduction of the attention-output reshape
    # quirk assumes tgt_len divides embed_dim; other shapes would need an
    # element-granular re-chunking path.
    assert E % T == 0, "fused output re-layout requires tgt_len | embed_dim"

    ratio = Bl // B
    n = H * T
    perm_q_np, perm_o_np = _build_permutations(H, T, E)
    # Fold the 1/sqrt(head_dim) attention scale into the constant q permutation.
    perm_q = jnp.asarray(perm_q_np / math.sqrt(hd), dtype=jnp.float32)
    perm_o = jnp.asarray(perm_o_np, dtype=jnp.float32)

    kernel = functools.partial(_fused_kernel, num_heads=H, eps=1e-5)
    return pl.pallas_call(
        kernel,
        out_shape=jax.ShapeDtypeStruct((Bl, T, L), llm_tokens.dtype),
        grid=(B,),
        in_specs=[
            pl.BlockSpec(memory_space=pltpu.MemorySpace.SMEM),        # gate (1,1)
            # all `ratio` llm copies that share feat block i, in one step:
            pl.BlockSpec((ratio, T, L), lambda i: (i, 0, 0)),         # llm tokens
            pl.BlockSpec((1, S, E), lambda i: (i, 0, 0)),             # feat tokens
            pl.BlockSpec((n, n), lambda i: (0, 0)),                   # perm_q (scaled)
            pl.BlockSpec((E, E), lambda i: (0, 0)),                   # perm_o
            pl.BlockSpec((L, E), lambda i: (0, 0)),                   # wq
            pl.BlockSpec((1, E), lambda i: (0, 0)),                   # bq
            pl.BlockSpec((E, E), lambda i: (0, 0)),                   # wk
            pl.BlockSpec((1, E), lambda i: (0, 0)),                   # bk
            pl.BlockSpec((E, E), lambda i: (0, 0)),                   # wv
            pl.BlockSpec((1, E), lambda i: (0, 0)),                   # bv
            pl.BlockSpec((1, E), lambda i: (0, 0)),                   # ln_w
            pl.BlockSpec((1, E), lambda i: (0, 0)),                   # ln_b
            pl.BlockSpec((E, L), lambda i: (0, 0)),                   # wo
            pl.BlockSpec((1, L), lambda i: (0, 0)),                   # bo
        ],
        out_specs=pl.BlockSpec((ratio, T, L), lambda i: (i, 0, 0)),
        compiler_params=pltpu.CompilerParams(
            dimension_semantics=("parallel",)),  # 2nd TC on v7x; neutral elsewhere
    )(params["gate"], llm_tokens, feat_tokens, perm_q, perm_o,
      params["wq"], params["bq"], params["wk"], params["bk"],
      params["wv"], params["bv"], params["ln_w"], params["ln_b"],
      params["wo"], params["bo"])


# ----------------------------------------------------------------------------
# Pure-JAX reference (mirrors the PyTorch forward) for verification
# ----------------------------------------------------------------------------
def reference_forward(feat_tokens, llm_tokens, params, num_heads):
    B, S, E = feat_tokens.shape
    Bl, T, L = llm_tokens.shape
    H = num_heads
    hd = E // H
    feat_tokens = jnp.repeat(feat_tokens, Bl // B, axis=0)

    q0 = llm_tokens @ params["wq"] + params["bq"][0]
    k0 = feat_tokens @ params["wk"] + params["bk"][0]
    v0 = feat_tokens @ params["wv"] + params["bv"][0]

    def _shape(t, seq):
        return t.reshape(Bl, seq, H, hd).transpose(0, 2, 1, 3).reshape(Bl * H, seq, hd)

    q = _shape(_shape(q0, T), T)      # applied twice, exactly as in PyTorch
    k = _shape(k0, S)
    v = _shape(v0, S)

    s = jnp.einsum("bqd,bkd->bqk", q, k) / math.sqrt(hd)
    p = jax.nn.softmax(s, axis=-1)
    attn = jnp.einsum("bqk,bkd->bqd", p, v)
    attn_out = jnp.transpose(attn, (0, 2, 1)).reshape(Bl, T, E)

    mean = jnp.mean(attn_out, axis=-1, keepdims=True)
    var = jnp.mean((attn_out - mean) ** 2, axis=-1, keepdims=True)
    tokens = (attn_out - mean) * jax.lax.rsqrt(var + 1e-5)
    tokens = tokens * params["ln_w"][0] + params["ln_b"][0]

    out = tokens @ params["wo"] + params["bo"][0]
    gate = jnp.tanh(params["gate"][0, 0])
    return llm_tokens + gate * out


# ----------------------------------------------------------------------------
# Main
# ----------------------------------------------------------------------------
if __name__ == "__main__":
    # Small shapes consistent with the module; llm batch = 2x feat batch so the
    # repeat_interleave path (and the per-feat-block k/v sharing) is exercised.
    B, Bl, S, T = 2, 4, 16, 8
    llm_dim, embed_dim, num_heads = 48, 32, 4

    key = jax.random.PRNGKey(0)
    ks = jax.random.split(key, 12)
    init = lambda k, shape: (0.05 * jax.random.normal(k, shape)).astype(jnp.float32)

    params = {
        # nn.Linear stored as (in, out) so forward is x @ W + b
        "wq": init(ks[0], (llm_dim, embed_dim)),
        "bq": init(ks[1], (1, embed_dim)),
        "wk": init(ks[2], (embed_dim, embed_dim)),
        "bk": init(ks[3], (1, embed_dim)),
        "wv": init(ks[4], (embed_dim, embed_dim)),
        "bv": init(ks[5], (1, embed_dim)),
        "wo": init(ks[6], (embed_dim, llm_dim)),
        "bo": init(ks[7], (1, llm_dim)),
        "ln_w": jnp.ones((1, embed_dim), jnp.float32),
        "ln_b": jnp.zeros((1, embed_dim), jnp.float32),
        # gating_value inits to 0.0 in the module (tanh(0)=0 => output==input);
        # use a nonzero value so the whole compute path is exercised.
        "gate": jnp.full((1, 1), 0.5, jnp.float32),
    }

    feat_tokens = jax.random.normal(ks[8], (B, S, embed_dim), jnp.float32)
    llm_tokens = jax.random.normal(ks[9], (Bl, T, llm_dim), jnp.float32)

    out = cross_attention_feat_extractor(feat_tokens, llm_tokens, params, num_heads)
    out = jax.block_until_ready(out)

    ref = reference_forward(feat_tokens, llm_tokens, params, num_heads)
    assert out.shape == (Bl, T, llm_dim), out.shape
    # Tolerance allows for pl.reciprocal(approx=True) in the softmax denominator;
    # any structural/permutation bug would produce errors orders of magnitude larger.
    assert jnp.allclose(out, ref, atol=2e-3, rtol=2e-3), float(jnp.max(jnp.abs(out - ref)))

    print("KERNEL_OK")
</pallas_src>

<mosaic_0001>
module attributes {stable_mosaic.version = 11 : i64} {
  func.func @_fused_kernel(%arg0: i32, %arg1: memref<1x1xf32, #tpu.memory_space<smem>>, %arg2: memref<2x8x48xf32, #tpu.memory_space<vmem>>, %arg3: memref<1x16x32xf32, #tpu.memory_space<vmem>>, %arg4: memref<32x32xf32, #tpu.memory_space<vmem>>, %arg5: memref<32x32xf32, #tpu.memory_space<vmem>>, %arg6: memref<48x32xf32, #tpu.memory_space<vmem>>, %arg7: memref<1x32xf32, #tpu.memory_space<vmem>>, %arg8: memref<32x32xf32, #tpu.memory_space<vmem>>, %arg9: memref<1x32xf32, #tpu.memory_space<vmem>>, %arg10: memref<32x32xf32, #tpu.memory_space<vmem>>, %arg11: memref<1x32xf32, #tpu.memory_space<vmem>>, %arg12: memref<1x32xf32, #tpu.memory_space<vmem>>, %arg13: memref<1x32xf32, #tpu.memory_space<vmem>>, %arg14: memref<32x48xf32, #tpu.memory_space<vmem>>, %arg15: memref<1x48xf32, #tpu.memory_space<vmem>>, %arg16: memref<2x8x48xf32, #tpu.memory_space<vmem>>) attributes {dimension_semantics = [#tpu.dimension_semantics<parallel>], iteration_bounds = array<i64: 2>, scalar_prefetch = 0 : i64, scratch_operands = 0 : i64, tpu.core_type = #tpu.core_type<tc>, window_params = [{transform_indices = @transform_0, window_bounds = array<i64: 1, 1>}, {transform_indices = @transform_1, window_bounds = array<i64: 2, 8, 48>}, {transform_indices = @transform_2, window_bounds = array<i64: 1, 16, 32>}, {pipeline_mode = #tpu.pipeline_mode<synchronous>, transform_indices = @transform_3, window_bounds = array<i64: 32, 32>}, {pipeline_mode = #tpu.pipeline_mode<synchronous>, transform_indices = @transform_4, window_bounds = array<i64: 32, 32>}, {pipeline_mode = #tpu.pipeline_mode<synchronous>, transform_indices = @transform_5, window_bounds = array<i64: 48, 32>}, {pipeline_mode = #tpu.pipeline_mode<synchronous>, transform_indices = @transform_6, window_bounds = array<i64: 1, 32>}, {pipeline_mode = #tpu.pipeline_mode<synchronous>, transform_indices = @transform_7, window_bounds = array<i64: 32, 32>}, {pipeline_mode = #tpu.pipeline_mode<synchronous>, transform_indices = @transform_8, window_bounds = array<i64: 1, 32>}, {pipeline_mode = #tpu.pipeline_mode<synchronous>, transform_indices = @transform_9, window_bounds = array<i64: 32, 32>}, {pipeline_mode = #tpu.pipeline_mode<synchronous>, transform_indices = @transform_10, window_bounds = array<i64: 1, 32>}, {pipeline_mode = #tpu.pipeline_mode<synchronous>, transform_indices = @transform_11, window_bounds = array<i64: 1, 32>}, {pipeline_mode = #tpu.pipeline_mode<synchronous>, transform_indices = @transform_12, window_bounds = array<i64: 1, 32>}, {pipeline_mode = #tpu.pipeline_mode<synchronous>, transform_indices = @transform_13, window_bounds = array<i64: 32, 48>}, {pipeline_mode = #tpu.pipeline_mode<synchronous>, transform_indices = @transform_14, window_bounds = array<i64: 1, 48>}, {transform_indices = @transform_15, window_bounds = array<i64: 2, 8, 48>}]} {
    %c0 = arith.constant 0 : index
    %c0_0 = arith.constant 0 : index
    %c0_1 = arith.constant 0 : index
    %0 = vector.load %arg3[%c0, %c0_0, %c0_1] : memref<1x16x32xf32, #tpu.memory_space<vmem>>, vector<1x16x32xf32>
    %1 = vector.shape_cast %0 : vector<1x16x32xf32> to vector<16x32xf32>
    %c0_2 = arith.constant 0 : index
    %c0_3 = arith.constant 0 : index
    %2 = vector.load %arg8[%c0_2, %c0_3] : memref<32x32xf32, #tpu.memory_space<vmem>>, vector<32x32xf32>
    %cst = arith.constant dense<0.000000e+00> : vector<16x32xf32>
    %3 = tpu.matmul %1, %2, %cst {dimension_numbers = #tpu.dot_dimension_numbers<[1], [0], [0], [1], [0, 0, 1, 1], [], []>} : vector<16x32xf32>, vector<32x32xf32>, vector<16x32xf32> -> vector<16x32xf32>
    %c0_4 = arith.constant 0 : index
    %c0_5 = arith.constant 0 : index
    %4 = vector.load %arg9[%c0_4, %c0_5] : memref<1x32xf32, #tpu.memory_space<vmem>>, vector<1x32xf32>
    %5 = vector.broadcast %4 : vector<1x32xf32> to vector<16x32xf32>
    %6 = arith.addf %3, %5 : vector<16x32xf32>
    %c0_6 = arith.constant 0 : index
    %c0_7 = arith.constant 0 : index
    %7 = vector.load %arg10[%c0_6, %c0_7] : memref<32x32xf32, #tpu.memory_space<vmem>>, vector<32x32xf32>
    %cst_8 = arith.constant dense<0.000000e+00> : vector<16x32xf32>
    %8 = tpu.matmul %1, %7, %cst_8 {dimension_numbers = #tpu.dot_dimension_numbers<[1], [0], [0], [1], [0, 0, 1, 1], [], []>} : vector<16x32xf32>, vector<32x32xf32>, vector<16x32xf32> -> vector<16x32xf32>
    %c0_9 = arith.constant 0 : index
    %c0_10 = arith.constant 0 : index
    %9 = vector.load %arg11[%c0_9, %c0_10] : memref<1x32xf32, #tpu.memory_space<vmem>>, vector<1x32xf32>
    %10 = vector.broadcast %9 : vector<1x32xf32> to vector<16x32xf32>
    %11 = arith.addf %8, %10 : vector<16x32xf32>
    %c0_11 = arith.constant 0 : index
    %c0_12 = arith.constant 0 : index
    %c0_13 = arith.constant 0 : index
    %12 = vector.load %arg2[%c0_11, %c0_12, %c0_13] : memref<2x8x48xf32, #tpu.memory_space<vmem>>, vector<1x8x48xf32>
    %13 = vector.shape_cast %12 : vector<1x8x48xf32> to vector<8x48xf32>
    %c1 = arith.constant 1 : index
    %c0_14 = arith.constant 0 : index
    %c0_15 = arith.constant 0 : index
    %14 = vector.load %arg2[%c1, %c0_14, %c0_15] : memref<2x8x48xf32, #tpu.memory_space<vmem>>, vector<1x8x48xf32>
    %15 = vector.shape_cast %14 : vector<1x8x48xf32> to vector<8x48xf32>
    %16 = tpu.concatenate %13, %15 in 0 : vector<8x48xf32>, vector<8x48xf32> -> vector<16x48xf32>
    %c0_16 = arith.constant 0 : index
    %c0_17 = arith.constant 0 : index
    %17 = vector.load %arg6[%c0_16, %c0_17] : memref<48x32xf32, #tpu.memory_space<vmem>>, vector<48x32xf32>
    %cst_18 = arith.constant dense<0.000000e+00> : vector<16x32xf32>
    %18 = tpu.matmul %16, %17, %cst_18 {dimension_numbers = #tpu.dot_dimension_numbers<[1], [0], [0], [1], [0, 0, 1, 1], [], []>} : vector<16x48xf32>, vector<48x32xf32>, vector<16x32xf32> -> vector<16x32xf32>
    %c0_19 = arith.constant 0 : index
    %c0_20 = arith.constant 0 : index
    %19 = vector.load %arg7[%c0_19, %c0_20] : memref<1x32xf32, #tpu.memory_space<vmem>>, vector<1x32xf32>
    %20 = vector.broadcast %19 : vector<1x32xf32> to vector<16x32xf32>
    %21 = arith.addf %18, %20 : vector<16x32xf32>
    %22 = vector.extract_strided_slice %21 {offsets = [0, 0], sizes = [8, 32], strides = [1, 1]} : vector<16x32xf32> to vector<8x32xf32>
    %23 = vector.extract_strided_slice %22 {offsets = [0, 0], sizes = [8, 8], strides = [1, 1]} : vector<8x32xf32> to vector<8x8xf32>
    %24 = vector.extract_strided_slice %22 {offsets = [0, 8], sizes = [8, 8], strides = [1, 1]} : vector<8x32xf32> to vector<8x8xf32>
    %25 = vector.extract_strided_slice %22 {offsets = [0, 16], sizes = [8, 8], strides = [1, 1]} : vector<8x32xf32> to vector<8x8xf32>
    %26 = vector.extract_strided_slice %22 {offsets = [0, 24], sizes = [8, 8], strides = [1, 1]} : vector<8x32xf32> to vector<8x8xf32>
    %27 = tpu.concatenate %23, %24, %25, %26 in 0 : vector<8x8xf32>, vector<8x8xf32>, vector<8x8xf32>, vector<8x8xf32> -> vector<32x8xf32>
    %c0_21 = arith.constant 0 : index
    %c0_22 = arith.constant 0 : index
    %28 = vector.load %arg4[%c0_21, %c0_22] : memref<32x32xf32, #tpu.memory_space<vmem>>, vector<32x32xf32>
    %cst_23 = arith.constant dense<0.000000e+00> : vector<32x8xf32>
    %29 = tpu.matmul %28, %27, %cst_23 {dimension_numbers = #tpu.dot_dimension_numbers<[1], [0], [0], [1], [0, 0, 1, 1], [], []>} : vector<32x32xf32>, vector<32x8xf32>, vector<32x8xf32> -> vector<32x8xf32>
    %30 = vector.extract_strided_slice %29 {offsets = [0, 0], sizes = [8, 8], strides = [1, 1]} : vector<32x8xf32> to vector<8x8xf32>
    %31 = vector.extract_strided_slice %6 {offsets = [0, 0], sizes = [16, 8], strides = [1, 1]} : vector<16x32xf32> to vector<16x8xf32>
    %32 = vector.extract_strided_slice %11 {offsets = [0, 0], sizes = [16, 8], strides = [1, 1]} : vector<16x32xf32> to vector<16x8xf32>
    %cst_24 = arith.constant dense<0.000000e+00> : vector<8x16xf32>
    %33 = tpu.matmul %30, %31, %cst_24 {dimension_numbers = #tpu.dot_dimension_numbers<[1], [1], [0], [0], [0, 0, 1, 0], [], []>} : vector<8x8xf32>, vector<16x8xf32>, vector<8x16xf32> -> vector<8x16xf32>
    %cst_25 = arith.constant dense<0xFF800000> : vector<8xf32>
    %34 = vector.multi_reduction <maximumf>, %33, %cst_25 [1] : vector<8x16xf32> to vector<8xf32>
    %35 = vector.shape_cast %34 : vector<8xf32> to vector<8x1xf32>
    %36 = vector.broadcast %35 : vector<8x1xf32> to vector<8x16xf32>
    %37 = arith.subf %33, %36 : vector<8x16xf32>
    %38 = math.exp %37 : vector<8x16xf32>
    %cst_26 = arith.constant dense<0.000000e+00> : vector<8xf32>
    %39 = vector.multi_reduction <add>, %38, %cst_26 [1] : vector<8x16xf32> to vector<8xf32>
    %40 = vector.shape_cast %39 : vector<8xf32> to vector<8x1xf32>
    %41 = tpu.reciprocal %40 {approx = true} : vector<8x1xf32> -> vector<8x1xf32>
    %42 = vector.broadcast %41 : vector<8x1xf32> to vector<8x16xf32>
    %43 = arith.mulf %38, %42 : vector<8x16xf32>
    %cst_27 = arith.constant dense<0.000000e+00> : vector<8x8xf32>
    %44 = tpu.matmul %43, %32, %cst_27 {dimension_numbers = #tpu.dot_dimension_numbers<[1], [0], [0], [1], [0, 0, 1, 1], [], []>} : vector<8x16xf32>, vector<16x8xf32>, vector<8x8xf32> -> vector<8x8xf32>
    %45 = vector.extract_strided_slice %29 {offsets = [8, 0], sizes = [8, 8], strides = [1, 1]} : vector<32x8xf32> to vector<8x8xf32>
    %46 = vector.extract_strided_slice %6 {offsets = [0, 8], sizes = [16, 8], strides = [1, 1]} : vector<16x32xf32> to vector<16x8xf32>
    %47 = vector.extract_strided_slice %11 {offsets = [0, 8], sizes = [16, 8], strides = [1, 1]} : vector<16x32xf32> to vector<16x8xf32>
    %cst_28 = arith.constant dense<0.000000e+00> : vector<8x16xf32>
    %48 = tpu.matmul %45, %46, %cst_28 {dimension_numbers = #tpu.dot_dimension_numbers<[1], [1], [0], [0], [0, 0, 1, 0], [], []>} : vector<8x8xf32>, vector<16x8xf32>, vector<8x16xf32> -> vector<8x16xf32>
    %cst_29 = arith.constant dense<0xFF800000> : vector<8xf32>
    %49 = vector.multi_reduction <maximumf>, %48, %cst_29 [1] : vector<8x16xf32> to vector<8xf32>
    %50 = vector.shape_cast %49 : vector<8xf32> to vector<8x1xf32>
    %51 = vector.broadcast %50 : vector<8x1xf32> to vector<8x16xf32>
    %52 = arith.subf %48, %51 : vector<8x16xf32>
    %53 = math.exp %52 : vector<8x16xf32>
    %cst_30 = arith.constant dense<0.000000e+00> : vector<8xf32>
    %54 = vector.multi_reduction <add>, %53, %cst_30 [1] : vector<8x16xf32> to vector<8xf32>
    %55 = vector.shape_cast %54 : vector<8xf32> to vector<8x1xf32>
    %56 = tpu.reciprocal %55 {approx = true} : vector<8x1xf32> -> vector<8x1xf32>
    %57 = vector.broadcast %56 : vector<8x1xf32> to vector<8x16xf32>
    %58 = arith.mulf %53, %57 : vector<8x16xf32>
    %cst_31 = arith.constant dense<0.000000e+00> : vector<8x8xf32>
    %59 = tpu.matmul %58, %47, %cst_31 {dimension_numbers = #tpu.dot_dimension_numbers<[1], [0], [0], [1], [0, 0, 1, 1], [], []>} : vector<8x16xf32>, vector<16x8xf32>, vector<8x8xf32> -> vector<8x8xf32>
    %60 = vector.extract_strided_slice %29 {offsets = [16, 0], sizes = [8, 8], strides = [1, 1]} : vector<32x8xf32> to vector<8x8xf32>
    %61 = vector.extract_strided_slice %6 {offsets = [0, 16], sizes = [16, 8], strides = [1, 1]} : vector<16x32xf32> to vector<16x8xf32>
    %62 = vector.extract_strided_slice %11 {offsets = [0, 16], sizes = [16, 8], strides = [1, 1]} : vector<16x32xf32> to vector<16x8xf32>
    %cst_32 = arith.constant dense<0.000000e+00> : vector<8x16xf32>
    %63 = tpu.matmul %60, %61, %cst_32 {dimension_numbers = #tpu.dot_dimension_numbers<[1], [1], [0], [0], [0, 0, 1, 0], [], []>} : vector<8x8xf32>, vector<16x8xf32>, vector<8x16xf32> -> vector<8x16xf32>
    %cst_33 = arith.constant dense<0xFF800000> : vector<8xf32>
    %64 = vector.multi_reduction <maximumf>, %63, %cst_33 [1] : vector<8x16xf32> to vector<8xf32>
    %65 = vector.shape_cast %64 : vector<8xf32> to vector<8x1xf32>
    %66 = vector.broadcast %65 : vector<8x1xf32> to vector<8x16xf32>
    %67 = arith.subf %63, %66 : vector<8x16xf32>
    %68 = math.exp %67 : vector<8x16xf32>
    %cst_34 = arith.constant dense<0.000000e+00> : vector<8xf32>
    %69 = vector.multi_reduction <add>, %68, %cst_34 [1] : vector<8x16xf32> to vector<8xf32>
    %70 = vector.shape_cast %69 : vector<8xf32> to vector<8x1xf32>
    %71 = tpu.reciprocal %70 {approx = true} : vector<8x1xf32> -> vector<8x1xf32>
    %72 = vector.broadcast %71 : vector<8x1xf32> to vector<8x16xf32>
    %73 = arith.mulf %68, %72 : vector<8x16xf32>
    %cst_35 = arith.constant dense<0.000000e+00> : vector<8x8xf32>
    %74 = tpu.matmul %73, %62, %cst_35 {dimension_numbers = #tpu.dot_dimension_numbers<[1], [0], [0], [1], [0, 0, 1, 1], [], []>} : vector<8x16xf32>, vector<16x8xf32>, vector<8x8xf32> -> vector<8x8xf32>
    %75 = vector.extract_strided_slice %29 {offsets = [24, 0], sizes = [8, 8], strides = [1, 1]} : vector<32x8xf32> to vector<8x8xf32>
    %76 = vector.extract_strided_slice %6 {offsets = [0, 24], sizes = [16, 8], strides = [1, 1]} : vector<16x32xf32> to vector<16x8xf32>
    %77 = vector.extract_strided_slice %11 {offsets = [0, 24], sizes = [16, 8], strides = [1, 1]} : vector<16x32xf32> to vector<16x8xf32>
    %cst_36 = arith.constant dense<0.000000e+00> : vector<8x16xf32>
    %78 = tpu.matmul %75, %76, %cst_36 {dimension_numbers = #tpu.dot_dimension_numbers<[1], [1], [0], [0], [0, 0, 1, 0], [], []>} : vector<8x8xf32>, vector<16x8xf32>, vector<8x16xf32> -> vector<8x16xf32>
    %cst_37 = arith.constant dense<0xFF800000> : vector<8xf32>
    %79 = vector.multi_reduction <maximumf>, %78, %cst_37 [1] : vector<8x16xf32> to vector<8xf32>
    %80 = vector.shape_cast %79 : vector<8xf32> to vector<8x1xf32>
    %81 = vector.broadcast %80 : vector<8x1xf32> to vector<8x16xf32>
    %82 = arith.subf %78, %81 : vector<8x16xf32>
    %83 = math.exp %82 : vector<8x16xf32>
    %cst_38 = arith.constant dense<0.000000e+00> : vector<8xf32>
    %84 = vector.multi_reduction <add>, %83, %cst_38 [1] : vector<8x16xf32> to vector<8xf32>
    %85 = vector.shape_cast %84 : vector<8xf32> to vector<8x1xf32>
    %86 = tpu.reciprocal %85 {approx = true} : vector<8x1xf32> -> vector<8x1xf32>
    %87 = vector.broadcast %86 : vector<8x1xf32> to vector<8x16xf32>
    %88 = arith.mulf %83, %87 : vector<8x16xf32>
    %cst_39 = arith.constant dense<0.000000e+00> : vector<8x8xf32>
    %89 = tpu.matmul %88, %77, %cst_39 {dimension_numbers = #tpu.dot_dimension_numbers<[1], [0], [0], [1], [0, 0, 1, 1], [], []>} : vector<8x16xf32>, vector<16x8xf32>, vector<8x8xf32> -> vector<8x8xf32>
    %90 = tpu.concatenate %44, %59, %74, %89 in 1 : vector<8x8xf32>, vector<8x8xf32>, vector<8x8xf32>, vector<8x8xf32> -> vector<8x32xf32>
    %c0_40 = arith.constant 0 : index
    %c0_41 = arith.constant 0 : index
    %91 = vector.load %arg5[%c0_40, %c0_41] : memref<32x32xf32, #tpu.memory_space<vmem>>, vector<32x32xf32>
    %cst_42 = arith.constant dense<0.000000e+00> : vector<32x8xf32>
    %92 = tpu.matmul %91, %90, %cst_42 {dimension_numbers = #tpu.dot_dimension_numbers<[1], [1], [0], [0], [0, 0, 1, 0], [], []>} : vector<32x32xf32>, vector<8x32xf32>, vector<32x8xf32> -> vector<32x8xf32>
    %93 = vector.extract_strided_slice %92 {offsets = [0, 0], sizes = [8, 8], strides = [1, 1]} : vector<32x8xf32> to vector<8x8xf32>
    %94 = vector.extract_strided_slice %92 {offsets = [8, 0], sizes = [8, 8], strides = [1, 1]} : vector<32x8xf32> to vector<8x8xf32>
    %95 = vector.extract_strided_slice %92 {offsets = [16, 0], sizes = [8, 8], strides = [1, 1]} : vector<32x8xf32> to vector<8x8xf32>
    %96 = vector.extract_strided_slice %92 {offsets = [24, 0], sizes = [8, 8], strides = [1, 1]} : vector<32x8xf32> to vector<8x8xf32>
    %97 = tpu.concatenate %93, %94, %95, %96 in 1 : vector<8x8xf32>, vector<8x8xf32>, vector<8x8xf32>, vector<8x8xf32> -> vector<8x32xf32>
    %98 = vector.extract_strided_slice %21 {offsets = [8, 0], sizes = [8, 32], strides = [1, 1]} : vector<16x32xf32> to vector<8x32xf32>
    %99 = vector.extract_strided_slice %98 {offsets = [0, 0], sizes = [8, 8], strides = [1, 1]} : vector<8x32xf32> to vector<8x8xf32>
    %100 = vector.extract_strided_slice %98 {offsets = [0, 8], sizes = [8, 8], strides = [1, 1]} : vector<8x32xf32> to vector<8x8xf32>
    %101 = vector.extract_strided_slice %98 {offsets = [0, 16], sizes = [8, 8], strides = [1, 1]} : vector<8x32xf32> to vector<8x8xf32>
    %102 = vector.extract_strided_slice %98 {offsets = [0, 24], sizes = [8, 8], strides = [1, 1]} : vector<8x32xf32> to vector<8x8xf32>
    %103 = tpu.concatenate %99, %100, %101, %102 in 0 : vector<8x8xf32>, vector<8x8xf32>, vector<8x8xf32>, vector<8x8xf32> -> vector<32x8xf32>
    %c0_43 = arith.constant 0 : index
    %c0_44 = arith.constant 0 : index
    %104 = vector.load %arg4[%c0_43, %c0_44] : memref<32x32xf32, #tpu.memory_space<vmem>>, vector<32x32xf32>
    %cst_45 = arith.constant dense<0.000000e+00> : vector<32x8xf32>
    %105 = tpu.matmul %104, %103, %cst_45 {dimension_numbers = #tpu.dot_dimension_numbers<[1], [0], [0], [1], [0, 0, 1, 1], [], []>} : vector<32x32xf32>, vector<32x8xf32>, vector<32x8xf32> -> vector<32x8xf32>
    %106 = vector.extract_strided_slice %105 {offsets = [0, 0], sizes = [8, 8], strides = [1, 1]} : vector<32x8xf32> to vector<8x8xf32>
    %107 = vector.extract_strided_slice %6 {offsets = [0, 0], sizes = [16, 8], strides = [1, 1]} : vector<16x32xf32> to vector<16x8xf32>
    %108 = vector.extract_strided_slice %11 {offsets = [0, 0], sizes = [16, 8], strides = [1, 1]} : vector<16x32xf32> to vector<16x8xf32>
    %cst_46 = arith.constant dense<0.000000e+00> : vector<8x16xf32>
    %109 = tpu.matmul %106, %107, %cst_46 {dimension_numbers = #tpu.dot_dimension_numbers<[1], [1], [0], [0], [0, 0, 1, 0], [], []>} : vector<8x8xf32>, vector<16x8xf32>, vector<8x16xf32> -> vector<8x16xf32>
    %cst_47 = arith.constant dense<0xFF800000> : vector<8xf32>
    %110 = vector.multi_reduction <maximumf>, %109, %cst_47 [1] : vector<8x16xf32> to vector<8xf32>
    %111 = vector.shape_cast %110 : vector<8xf32> to vector<8x1xf32>
    %112 = vector.broadcast %111 : vector<8x1xf32> to vector<8x16xf32>
    %113 = arith.subf %109, %112 : vector<8x16xf32>
    %114 = math.exp %113 : vector<8x16xf32>
    %cst_48 = arith.constant dense<0.000000e+00> : vector<8xf32>
    %115 = vector.multi_reduction <add>, %114, %cst_48 [1] : vector<8x16xf32> to vector<8xf32>
    %116 = vector.shape_cast %115 : vector<8xf32> to vector<8x1xf32>
    %117 = tpu.reciprocal %116 {approx = true} : vector<8x1xf32> -> vector<8x1xf32>
    %118 = vector.broadcast %117 : vector<8x1xf32> to vector<8x16xf32>
    %119 = arith.mulf %114, %118 : vector<8x16xf32>
    %cst_49 = arith.constant dense<0.000000e+00> : vector<8x8xf32>
    %120 = tpu.matmul %119, %108, %cst_49 {dimension_numbers = #tpu.dot_dimension_numbers<[1], [0], [0], [1], [0, 0, 1, 1], [], []>} : vector<8x16xf32>, vector<16x8xf32>, vector<8x8xf32> -> vector<8x8xf32>
    %121 = vector.extract_strided_slice %105 {offsets = [8, 0], sizes = [8, 8], strides = [1, 1]} : vector<32x8xf32> to vector<8x8xf32>
    %122 = vector.extract_strided_slice %6 {offsets = [0, 8], sizes = [16, 8], strides = [1, 1]} : vector<16x32xf32> to vector<16x8xf32>
    %123 = vector.extract_strided_slice %11 {offsets = [0, 8], sizes = [16, 8], strides = [1, 1]} : vector<16x32xf32> to vector<16x8xf32>
    %cst_50 = arith.constant dense<0.000000e+00> : vector<8x16xf32>
    %124 = tpu.matmul %121, %122, %cst_50 {dimension_numbers = #tpu.dot_dimension_numbers<[1], [1], [0], [0], [0, 0, 1, 0], [], []>} : vector<8x8xf32>, vector<16x8xf32>, vector<8x16xf32> -> vector<8x16xf32>
    %cst_51 = arith.constant dense<0xFF800000> : vector<8xf32>
    %125 = vector.multi_reduction <maximumf>, %124, %cst_51 [1] : vector<8x16xf32> to vector<8xf32>
    %126 = vector.shape_cast %125 : vector<8xf32> to vector<8x1xf32>
    %127 = vector.broadcast %126 : vector<8x1xf32> to vector<8x16xf32>
    %128 = arith.subf %124, %127 : vector<8x16xf32>
    %129 = math.exp %128 : vector<8x16xf32>
    %cst_52 = arith.constant dense<0.000000e+00> : vector<8xf32>
    %130 = vector.multi_reduction <add>, %129, %cst_52 [1] : vector<8x16xf32> to vector<8xf32>
    %131 = vector.shape_cast %130 : vector<8xf32> to vector<8x1xf32>
    %132 = tpu.reciprocal %131 {approx = true} : vector<8x1xf32> -> vector<8x1xf32>
    %133 = vector.broadcast %132 : vector<8x1xf32> to vector<8x16xf32>
    %134 = arith.mulf %129, %133 : vector<8x16xf32>
    %cst_53 = arith.constant dense<0.000000e+00> : vector<8x8xf32>
    %135 = tpu.matmul %134, %123, %cst_53 {dimension_numbers = #tpu.dot_dimension_numbers<[1], [0], [0], [1], [0, 0, 1, 1], [], []>} : vector<8x16xf32>, vector<16x8xf32>, vector<8x8xf32> -> vector<8x8xf32>
    %136 = vector.extract_strided_slice %105 {offsets = [16, 0], sizes = [8, 8], strides = [1, 1]} : vector<32x8xf32> to vector<8x8xf32>
    %137 = vector.extract_strided_slice %6 {offsets = [0, 16], sizes = [16, 8], strides = [1, 1]} : vector<16x32xf32> to vector<16x8xf32>
    %138 = vector.extract_strided_slice %11 {offsets = [0, 16], sizes = [16, 8], strides = [1, 1]} : vector<16x32xf32> to vector<16x8xf32>
    %cst_54 = arith.constant dense<0.000000e+00> : vector<8x16xf32>
    %139 = tpu.matmul %136, %137, %cst_54 {dimension_numbers = #tpu.dot_dimension_numbers<[1], [1], [0], [0], [0, 0, 1, 0], [], []>} : vector<8x8xf32>, vector<16x8xf32>, vector<8x16xf32> -> vector<8x16xf32>
    %cst_55 = arith.constant dense<0xFF800000> : vector<8xf32>
    %140 = vector.multi_reduction <maximumf>, %139, %cst_55 [1] : vector<8x16xf32> to vector<8xf32>
    %141 = vector.shape_cast %140 : vector<8xf32> to vector<8x1xf32>
    %142 = vector.broadcast %141 : vector<8x1xf32> to vector<8x16xf32>
    %143 = arith.subf %139, %142 : vector<8x16xf32>
    %144 = math.exp %143 : vector<8x16xf32>
    %cst_56 = arith.constant dense<0.000000e+00> : vector<8xf32>
    %145 = vector.multi_reduction <add>, %144, %cst_56 [1] : vector<8x16xf32> to vector<8xf32>
    %146 = vector.shape_cast %145 : vector<8xf32> to vector<8x1xf32>
    %147 = tpu.reciprocal %146 {approx = true} : vector<8x1xf32> -> vector<8x1xf32>
    %148 = vector.broadcast %147 : vector<8x1xf32> to vector<8x16xf32>
    %149 = arith.mulf %144, %148 : vector<8x16xf32>
    %cst_57 = arith.constant dense<0.000000e+00> : vector<8x8xf32>
    %150 = tpu.matmul %149, %138, %cst_57 {dimension_numbers = #tpu.dot_dimension_numbers<[1], [0], [0], [1], [0, 0, 1, 1], [], []>} : vector<8x16xf32>, vector<16x8xf32>, vector<8x8xf32> -> vector<8x8xf32>
    %151 = vector.extract_strided_slice %105 {offsets = [24, 0], sizes = [8, 8], strides = [1, 1]} : vector<32x8xf32> to vector<8x8xf32>
    %152 = vector.extract_strided_slice %6 {offsets = [0, 24], sizes = [16, 8], strides = [1, 1]} : vector<16x32xf32> to vector<16x8xf32>
    %153 = vector.extract_strided_slice %11 {offsets = [0, 24], sizes = [16, 8], strides = [1, 1]} : vector<16x32xf32> to vector<16x8xf32>
    %cst_58 = arith.constant dense<0.000000e+00> : vector<8x16xf32>
    %154 = tpu.matmul %151, %152, %cst_58 {dimension_numbers = #tpu.dot_dimension_numbers<[1], [1], [0], [0], [0, 0, 1, 0], [], []>} : vector<8x8xf32>, vector<16x8xf32>, vector<8x16xf32> -> vector<8x16xf32>
    %cst_59 = arith.constant dense<0xFF800000> : vector<8xf32>
    %155 = vector.multi_reduction <maximumf>, %154, %cst_59 [1] : vector<8x16xf32> to vector<8xf32>
    %156 = vector.shape_cast %155 : vector<8xf32> to vector<8x1xf32>
    %157 = vector.broadcast %156 : vector<8x1xf32> to vector<8x16xf32>
    %158 = arith.subf %154, %157 : vector<8x16xf32>
    %159 = math.exp %158 : vector<8x16xf32>
    %cst_60 = arith.constant dense<0.000000e+00> : vector<8xf32>
    %160 = vector.multi_reduction <add>, %159, %cst_60 [1] : vector<8x16xf32> to vector<8xf32>
    %161 = vector.shape_cast %160 : vector<8xf32> to vector<8x1xf32>
    %162 = tpu.reciprocal %161 {approx = true} : vector<8x1xf32> -> vector<8x1xf32>
    %163 = vector.broadcast %162 : vector<8x1xf32> to vector<8x16xf32>
    %164 = arith.mulf %159, %163 : vector<8x16xf32>
    %cst_61 = arith.constant dense<0.000000e+00> : vector<8x8xf32>
    %165 = tpu.matmul %164, %153, %cst_61 {dimension_numbers = #tpu.dot_dimension_numbers<[1], [0], [0], [1], [0, 0, 1, 1], [], []>} : vector<8x16xf32>, vector<16x8xf32>, vector<8x8xf32> -> vector<8x8xf32>
    %166 = tpu.concatenate %120, %135, %150, %165 in 1 : vector<8x8xf32>, vector<8x8xf32>, vector<8x8xf32>, vector<8x8xf32> -> vector<8x32xf32>
    %c0_62 = arith.constant 0 : index
    %c0_63 = arith.constant 0 : index
    %167 = vector.load %arg5[%c0_62, %c0_63] : memref<32x32xf32, #tpu.memory_space<vmem>>, vector<32x32xf32>
    %cst_64 = arith.constant dense<0.000000e+00> : vector<32x8xf32>
    %168 = tpu.matmul %167, %166, %cst_64 {dimension_numbers = #tpu.dot_dimension_numbers<[1], [1], [0], [0], [0, 0, 1, 0], [], []>} : vector<32x32xf32>, vector<8x32xf32>, vector<32x8xf32> -> vector<32x8xf32>
    %169 = vector.extract_strided_slice %168 {offsets = [0, 0], sizes = [8, 8], strides = [1, 1]} : vector<32x8xf32> to vector<8x8xf32>
    %170 = vector.extract_strided_slice %168 {offsets = [8, 0], sizes = [8, 8], strides = [1, 1]} : vector<32x8xf32> to vector<8x8xf32>
    %171 = vector.extract_strided_slice %168 {offsets = [16, 0], sizes = [8, 8], strides = [1, 1]} : vector<32x8xf32> to vector<8x8xf32>
    %172 = vector.extract_strided_slice %168 {offsets = [24, 0], sizes = [8, 8], strides = [1, 1]} : vector<32x8xf32> to vector<8x8xf32>
    %173 = tpu.concatenate %169, %170, %171, %172 in 1 : vector<8x8xf32>, vector<8x8xf32>, vector<8x8xf32>, vector<8x8xf32> -> vector<8x32xf32>
    %174 = tpu.concatenate %97, %173 in 0 : vector<8x32xf32>, vector<8x32xf32> -> vector<16x32xf32>
    %cst_65 = arith.constant dense<0.000000e+00> : vector<16xf32>
    %175 = vector.multi_reduction <add>, %174, %cst_65 [1] : vector<16x32xf32> to vector<16xf32>
    %176 = vector.shape_cast %175 : vector<16xf32> to vector<16x1xf32>
    %cst_66 = arith.constant 3.200000e+01 : f32
    %177 = vector.broadcast %cst_66 : f32 to vector<16x1xf32>
    %178 = arith.divf %176, %177 : vector<16x1xf32>
    %179 = vector.broadcast %178 : vector<16x1xf32> to vector<16x32xf32>
    %180 = arith.subf %174, %179 : vector<16x32xf32>
    %181 = arith.mulf %180, %180 : vector<16x32xf32>
    %cst_67 = arith.constant dense<0.000000e+00> : vector<16xf32>
    %182 = vector.multi_reduction <add>, %181, %cst_67 [1] : vector<16x32xf32> to vector<16xf32>
    %183 = vector.shape_cast %182 : vector<16xf32> to vector<16x1xf32>
    %cst_68 = arith.constant 3.200000e+01 : f32
    %184 = vector.broadcast %cst_68 : f32 to vector<16x1xf32>
    %185 = arith.divf %183, %184 : vector<16x1xf32>
    %cst_69 = arith.constant 9.99999974E-6 : f32
    %186 = vector.broadcast %cst_69 : f32 to vector<16x1xf32>
    %187 = arith.addf %185, %186 : vector<16x1xf32>
    %188 = math.rsqrt %187 : vector<16x1xf32>
    %189 = vector.broadcast %188 : vector<16x1xf32> to vector<16x32xf32>
    %190 = arith.mulf %180, %189 : vector<16x32xf32>
    %c0_70 = arith.constant 0 : index
    %c0_71 = arith.constant 0 : index
    %191 = vector.load %arg12[%c0_70, %c0_71] : memref<1x32xf32, #tpu.memory_space<vmem>>, vector<1x32xf32>
    %192 = vector.broadcast %191 : vector<1x32xf32> to vector<16x32xf32>
    %193 = arith.mulf %190, %192 : vector<16x32xf32>
    %c0_72 = arith.constant 0 : index
    %c0_73 = arith.constant 0 : index
    %194 = vector.load %arg13[%c0_72, %c0_73] : memref<1x32xf32, #tpu.memory_space<vmem>>, vector<1x32xf32>
    %195 = vector.broadcast %194 : vector<1x32xf32> to vector<16x32xf32>
    %196 = arith.addf %193, %195 : vector<16x32xf32>
    %c0_74 = arith.constant 0 : index
    %c0_75 = arith.constant 0 : index
    %197 = vector.load %arg14[%c0_74, %c0_75] : memref<32x48xf32, #tpu.memory_space<vmem>>, vector<32x48xf32>
    %cst_76 = arith.constant dense<0.000000e+00> : vector<16x48xf32>
    %198 = tpu.matmul %196, %197, %cst_76 {dimension_numbers = #tpu.dot_dimension_numbers<[1], [0], [0], [1], [0, 0, 1, 1], [], []>} : vector<16x32xf32>, vector<32x48xf32>, vector<16x48xf32> -> vector<16x48xf32>
    %c0_77 = arith.constant 0 : index
    %c0_78 = arith.constant 0 : index
    %199 = vector.load %arg15[%c0_77, %c0_78] : memref<1x48xf32, #tpu.memory_space<vmem>>, vector<1x48xf32>
    %200 = vector.broadcast %199 : vector<1x48xf32> to vector<16x48xf32>
    %201 = arith.addf %198, %200 : vector<16x48xf32>
    %c0_79 = arith.constant 0 : index
    %c0_80 = arith.constant 0 : index
    %202 = memref.load %arg1[%c0_79, %c0_80] : memref<1x1xf32, #tpu.memory_space<smem>>
    %203 = vector.broadcast %202 : f32 to vector<1x1xf32>
    %204 = math.tanh %203 : vector<1x1xf32>
    %205 = vector.broadcast %204 : vector<1x1xf32> to vector<16x48xf32>
    %206 = arith.mulf %205, %201 : vector<16x48xf32>
    %207 = arith.addf %16, %206 : vector<16x48xf32>
    %208 = vector.extract_strided_slice %207 {offsets = [0, 0], sizes = [8, 48], strides = [1, 1]} : vector<16x48xf32> to vector<8x48xf32>
    %c0_81 = arith.constant 0 : index
    %c0_82 = arith.constant 0 : index
    %c0_83 = arith.constant 0 : index
    %209 = vector.load %arg16[%c0_81, %c0_82, %c0_83] : memref<2x8x48xf32, #tpu.memory_space<vmem>>, vector<1x8x48xf32>
    %210 = vector.shape_cast %209 : vector<1x8x48xf32> to vector<8x48xf32>
    %211 = vector.shape_cast %208 : vector<8x48xf32> to vector<1x8x48xf32>
    tpu.vector_store %arg16[%c0_81, %c0_82, %c0_83], %211 {strides = array<i32>} : memref<2x8x48xf32, #tpu.memory_space<vmem>>, vector<1x8x48xf32>,
    %212 = vector.extract_strided_slice %207 {offsets = [8, 0], sizes = [8, 48], strides = [1, 1]} : vector<16x48xf32> to vector<8x48xf32>
    %c1_84 = arith.constant 1 : index
    %c0_85 = arith.constant 0 : index
    %c0_86 = arith.constant 0 : index
    %213 = vector.load %arg16[%c1_84, %c0_85, %c0_86] : memref<2x8x48xf32, #tpu.memory_space<vmem>>, vector<1x8x48xf32>
    %214 = vector.shape_cast %213 : vector<1x8x48xf32> to vector<8x48xf32>
    %215 = vector.shape_cast %212 : vector<8x48xf32> to vector<1x8x48xf32>
    tpu.vector_store %arg16[%c1_84, %c0_85, %c0_86], %215 {strides = array<i32>} : memref<2x8x48xf32, #tpu.memory_space<vmem>>, vector<1x8x48xf32>,
    return
  }
  func.func @transform_0(%arg0: i32) -> (i32, i32) {
    %c0_i32 = arith.constant 0 : i32
    %c0_i32_0 = arith.constant 0 : i32
    %c0_i32_1 = arith.constant 0 : i32
    return %c0_i32, %c0_i32_0 : i32, i32
  }
  func.func @transform_1(%arg0: i32) -> (i32, i32, i32) {
    %c0_i32 = arith.constant 0 : i32
    %c0_i32_0 = arith.constant 0 : i32
    %c0_i32_1 = arith.constant 0 : i32
    return %arg0, %c0_i32, %c0_i32_0 : i32, i32, i32
  }
  func.func @transform_2(%arg0: i32) -> (i32, i32, i32) {
    %c0_i32 = arith.constant 0 : i32
    %c0_i32_0 = arith.constant 0 : i32
    %c0_i32_1 = arith.constant 0 : i32
    return %arg0, %c0_i32, %c0_i32_0 : i32, i32, i32
  }
  func.func @transform_3(%arg0: i32) -> (i32, i32) {
    %c0_i32 = arith.constant 0 : i32
    %c0_i32_0 = arith.constant 0 : i32
    %c0_i32_1 = arith.constant 0 : i32
    return %c0_i32, %c0_i32_0 : i32, i32
  }
  func.func @transform_4(%arg0: i32) -> (i32, i32) {
    %c0_i32 = arith.constant 0 : i32
    %c0_i32_0 = arith.constant 0 : i32
    %c0_i32_1 = arith.constant 0 : i32
    return %c0_i32, %c0_i32_0 : i32, i32
  }
  func.func @transform_5(%arg0: i32) -> (i32, i32) {
    %c0_i32 = arith.constant 0 : i32
    %c0_i32_0 = arith.constant 0 : i32
    %c0_i32_1 = arith.constant 0 : i32
    return %c0_i32, %c0_i32_0 : i32, i32
  }
  func.func @transform_6(%arg0: i32) -> (i32, i32) {
    %c0_i32 = arith.constant 0 : i32
    %c0_i32_0 = arith.constant 0 : i32
    %c0_i32_1 = arith.constant 0 : i32
    return %c0_i32, %c0_i32_0 : i32, i32
  }
  func.func @transform_7(%arg0: i32) -> (i32, i32) {
    %c0_i32 = arith.constant 0 : i32
    %c0_i32_0 = arith.constant 0 : i32
    %c0_i32_1 = arith.constant 0 : i32
    return %c0_i32, %c0_i32_0 : i32, i32
  }
  func.func @transform_8(%arg0: i32) -> (i32, i32) {
    %c0_i32 = arith.constant 0 : i32
    %c0_i32_0 = arith.constant 0 : i32
    %c0_i32_1 = arith.constant 0 : i32
    return %c0_i32, %c0_i32_0 : i32, i32
  }
  func.func @transform_9(%arg0: i32) -> (i32, i32) {
    %c0_i32 = arith.constant 0 : i32
    %c0_i32_0 = arith.constant 0 : i32
    %c0_i32_1 = arith.constant 0 : i32
    return %c0_i32, %c0_i32_0 : i32, i32
  }
  func.func @transform_10(%arg0: i32) -> (i32, i32) {
    %c0_i32 = arith.constant 0 : i32
    %c0_i32_0 = arith.constant 0 : i32
    %c0_i32_1 = arith.constant 0 : i32
    return %c0_i32, %c0_i32_0 : i32, i32
  }
  func.func @transform_11(%arg0: i32) -> (i32, i32) {
    %c0_i32 = arith.constant 0 : i32
    %c0_i32_0 = arith.constant 0 : i32
    %c0_i32_1 = arith.constant 0 : i32
    return %c0_i32, %c0_i32_0 : i32, i32
  }
  func.func @transform_12(%arg0: i32) -> (i32, i32) {
    %c0_i32 = arith.constant 0 : i32
    %c0_i32_0 = arith.constant 0 : i32
    %c0_i32_1 = arith.constant 0 : i32
    return %c0_i32, %c0_i32_0 : i32, i32
  }
  func.func @transform_13(%arg0: i32) -> (i32, i32) {
    %c0_i32 = arith.constant 0 : i32
    %c0_i32_0 = arith.constant 0 : i32
    %c0_i32_1 = arith.constant 0 : i32
    return %c0_i32, %c0_i32_0 : i32, i32
  }
  func.func @transform_14(%arg0: i32) -> (i32, i32) {
    %c0_i32 = arith.constant 0 : i32
    %c0_i32_0 = arith.constant 0 : i32
    %c0_i32_1 = arith.constant 0 : i32
    return %c0_i32, %c0_i32_0 : i32, i32
  }
  func.func @transform_15(%arg0: i32) -> (i32, i32, i32) {
    %c0_i32 = arith.constant 0 : i32
    %c0_i32_0 = arith.constant 0 : i32
    %c0_i32_1 = arith.constant 0 : i32
    return %arg0, %c0_i32, %c0_i32_0 : i32, i32, i32
  }
}

</mosaic_0001>

<llo_original>
// kernel: tpu_custom_call.1
$region0: #{tpu_custom_call.1}
  #allocation0 [shape = 'u32[]', space=smem, size = 0x4, offset = 0x4, fixed_abs, tag = 'smem constant byte address 0x4 - core index']
  #allocation1 [shape = 'u32[144,128]{1,0:T(1,128)}', space=vmem, size = 0x12000, scoped, tag = 'internal scratch']
  #allocation2 [shape = 'f32[1,1]{1,0:T(1,128)S(6)}', space=smem, size = 0x200, scoped, tag = 'scoped memory for tpu_custom_call.1']
  %s0 = inlined_call_operand.<no memory space> [shape: f32[1,1], index: 0, kind: input, shape index: {}]
  %s1 = inlined_call_operand.vmem [shape: f32[4,8,48], index: 1, kind: input, shape index: {}]
  %s2 = inlined_call_operand.vmem [shape: f32[2,16,32], index: 2, kind: input, shape index: {}]
  %s3 = inlined_call_operand.hbm [shape: f32[32,32], index: 3, kind: input, shape index: {}]
  %s4 = inlined_call_operand.hbm [shape: f32[32,32], index: 4, kind: input, shape index: {}]
  %s5 = inlined_call_operand.vmem [shape: f32[48,32], index: 5, kind: input, shape index: {}]
  %s6 = inlined_call_operand.hbm [shape: f32[1,32], index: 6, kind: input, shape index: {}]
  %s7 = inlined_call_operand.hbm [shape: f32[32,32], index: 7, kind: input, shape index: {}]
  %s8 = inlined_call_operand.hbm [shape: f32[1,32], index: 8, kind: input, shape index: {}]
  %s9 = inlined_call_operand.vmem [shape: f32[32,32], index: 9, kind: input, shape index: {}]
  %s10 = inlined_call_operand.vmem [shape: f32[1,32], index: 10, kind: input, shape index: {}]
  %s11 = inlined_call_operand.vmem [shape: f32[1,32], index: 11, kind: input, shape index: {}]
  %s12 = inlined_call_operand.vmem [shape: f32[1,32], index: 12, kind: input, shape index: {}]
  %s13 = inlined_call_operand.hbm [shape: f32[32,48], index: 13, kind: input, shape index: {}]
  %s14 = inlined_call_operand.vmem [shape: f32[1,48], index: 14, kind: input, shape index: {}]
  %s15 = inlined_call_operand.hbm [shape: f32[4,8,48], index: 15, kind: output, shape index: {}]
  %s16 = sld [smem:[#allocation0]]
  $region117: #{tpu_custom_call.1} parent=0
    _
  %s18 = ssub.s32 1, %s16
  %s19 = scalar_select 0, %s18, %s16
  %20 = sst [smem:[#allocation2]] %s0
  $region1: #{tpu_custom_call.1} parent=0
    #allocation3 [shape = 'u8[16384]{0}', space=vmem, size = 0x4000, scoped, tag = 'input window, operand 3, single buffered']
    #allocation4 [shape = 's32[2]{0}', space=sflag, size = 0x8, scoped, tag = 'scoped memory for tpu_custom_call.1']
    #allocation5 [shape = 's32[2]{0}', space=sflag, size = 0x8, scoped, tag = 'scoped memory for tpu_custom_call.1']
    #allocation6 [shape = 'u8[16384]{0}', space=vmem, size = 0x4000, scoped, tag = 'input window, operand 4, single buffered']
    #allocation7 [shape = 's32[1]{0}', space=sflag, size = 0x4, scoped, tag = 'scoped memory for tpu_custom_call.1']
    #allocation8 [shape = 'u8[512]{0}', space=vmem, size = 0x400, scoped, tag = 'input window, operand 6, single buffered']
    #allocation9 [shape = 'u8[16384]{0}', space=vmem, size = 0x4000, scoped, tag = 'input window, operand 7, single buffered']
    #allocation10 [shape = 's32[1]{0}', space=sflag, size = 0x4, scoped, tag = 'scoped memory for tpu_custom_call.1']
    #allocation11 [shape = 'u8[512]{0}', space=vmem, size = 0x400, scoped, tag = 'input window, operand 8, single buffered']
    #allocation12 [shape = 'u8[16384]{0}', space=vmem, size = 0x4000, scoped, tag = 'input window, operand 13, single buffered']
    #allocation13 [shape = 's32[1]{0}', space=sflag, size = 0x4, scoped, tag = 'scoped memory for tpu_custom_call.1']
    #allocation14 [shape = 'u8[16384]{0}', space=vmem, size = 0x4000, scoped, tag = 'output window, operand 0']
    %21 = vsyncpa [#allocation4], 0
    %22 = vsyncpa [#allocation7], 0
    %23 = vsyncpa [#allocation10], 0
    %24 = vsyncpa [#allocation13], 0
    %25 = vsyncpa [#allocation5], 0
    %s26 = scalar_lea.sflag [#allocation5], 1
    %27 = vsyncpa %s26, 0
    loop: start=0, step=1, limit=4
    $region2: #{tpu_custom_call.1} parent=1 // loop_pre_header
      _
    $region3: #{tpu_custom_call.1} parent=1 // loop_header
      %s29 = sphi 0, %s33
      %p30 = scmp.ge.s32.totalorder %s29, 4
      %s37 = sphi 0, %s37
      %s39 = sphi 0, %s37
      %s40 = sphi 0, %s39
      %s54 = sphi 0, %s40
      %s60 = sphi 0, %s62
      %s63 = sphi 0, %s60
      %s64 = sphi 0, %s63
      %s80 = sphi 0, %s64
      %s86 = sphi 0, %s88
      %s89 = sphi 0, %s86
      %s90 = sphi 0, %s89
      %s106 = sphi 0, %s90
      %s110 = sphi 0, %s110
      %s112 = sphi 0, %s110
      %s113 = sphi 0, %s112
      %s127 = sphi 0, %s113
      %s131 = sphi 0, %s131
      %s133 = sphi 0, %s131
      %s134 = sphi 0, %s133
      %s148 = sphi 0, %s134
      %s152 = sphi 0, %s152
      %s154 = sphi 0, %s152
      %s155 = sphi 0, %s154
      %s169 = sphi 0, %s155
      %s173 = sphi 0, %s173
      %s175 = sphi 0, %s173
      %s176 = sphi 0, %s175
      %s190 = sphi 0, %s176
      %s194 = sphi 0, %s194
      %s196 = sphi 0, %s194
      %s197 = sphi 0, %s196
      %s211 = sphi 0, %s197
      %s215 = sphi 0, %s215
      %s217 = sphi 0, %s215
      %s218 = sphi 0, %s217
      %s232 = sphi 0, %s218
      %s236 = sphi 0, %s236
      %s238 = sphi 0, %s236
      %s239 = sphi 0, %s238
      %s253 = sphi 0, %s239
      %s257 = sphi 0, %s257
      %s259 = sphi 0, %s257
      %s260 = sphi 0, %s259
      %s274 = sphi 0, %s260
      %s278 = sphi 0, %s278
      %s280 = sphi 0, %s278
      %s281 = sphi 0, %s280
      %s295 = sphi 0, %s281
      %s299 = sphi 0, %s299
      %s301 = sphi 0, %s299
      %s302 = sphi 0, %s301
      %s316 = sphi 0, %s302
      %s320 = sphi 0, %s320
      %s322 = sphi 0, %s320
      %s323 = sphi 0, %s322
      %s337 = sphi 0, %s323
      %s341 = sphi 0, %s341
      %s343 = sphi 0, %s341
      %s344 = sphi 0, %s343
      %s358 = sphi 0, %s344
      %s364 = sphi 0, %s366
      %s367 = sphi 0, %s364
      %s368 = sphi 0, %s367
      %s384 = sphi 0, %s368
    $region4: #{tpu_custom_call.1} parent=1 // loop_header_branch
      %32 = sbr.rel (%p30) target = $region8
    $region5: #{tpu_custom_call.1} parent=1 // loop_body
      %s34 = ssub.s32 %s29, 1
      %s35 = ssub.s32 %s29, 2
      %s36 = sadd.s32 %s29, 1
      %s38 = sadd.s32 %s37, 1
      %p41 = scmp.eq.s32.totalorder %s29, 1
      %p42 = scmp.ne.s32.totalorder %s37, %s39
      %p43 = scmp.eq.s32.totalorder %s29, 0
      %p44 = por %p42, %p43
      %p45 = scmp.ne.s32.totalorder %s37, %s39
      %p46 = scmp.eq.s32.totalorder %s34, 1
      %p47 = por %p45, %p46
      %p48 = scmp.ne.s32.totalorder %s39, %s40
      %p49 = scmp.eq.s32.totalorder %s34, 0
      %p50 = por %p48, %p49
      %p51 = scmp.ne.s32.totalorder %s39, %s40
      %p52 = scmp.eq.s32.totalorder %s35, 1
      %p53 = por %p51, %p52
      %p55 = scmp.ne.s32.totalorder %s40, %s54
      %p56 = scmp.eq.s32.totalorder %s35, 0
      %p57 = por %p55, %p56
      %s58 = ssub.s32 %s29, %s36
      %p59 = scmp.eq.s32.totalorder %s58, 0
      %s61 = sadd.s32 %s60, 1
      %s62 = scalar_select %p59, %s60, %s61
      %p65 = pneg %p59
      %p66 = scmp.eq.s32.totalorder %s29, 1
      %p67 = por %p65, %p66
      %p68 = scmp.ne.s32.totalorder %s60, %s63
      %p69 = scmp.eq.s32.totalorder %s29, 0
      %p70 = por %p68, %p69
      %p71 = scmp.ne.s32.totalorder %s60, %s63
      %p72 = scmp.eq.s32.totalorder %s34, 1
      %p73 = por %p71, %p72
      %p74 = scmp.ne.s32.totalorder %s63, %s64
      %p75 = scmp.eq.s32.totalorder %s34, 0
      %p76 = por %p74, %p75
      %p77 = scmp.ne.s32.totalorder %s63, %s64
      %p78 = scmp.eq.s32.totalorder %s35, 1
      %p79 = por %p77, %p78
      %p81 = scmp.ne.s32.totalorder %s64, %s80
      %p82 = scmp.eq.s32.totalorder %s35, 0
      %p83 = por %p81, %p82
      %s84 = ssub.s32 %s29, %s36
      %p85 = scmp.eq.s32.totalorder %s84, 0
      %s87 = sadd.s32 %s86, 1
      %s88 = scalar_select %p85, %s86, %s87
      %p91 = pneg %p85
      %p92 = scmp.eq.s32.totalorder %s29, 1
      %p93 = por %p91, %p92
      %p94 = scmp.ne.s32.totalorder %s86, %s89
      %p95 = scmp.eq.s32.totalorder %s29, 0
      %p96 = por %p94, %p95
      %p97 = scmp.ne.s32.totalorder %s86, %s89
      %p98 = scmp.eq.s32.totalorder %s34, 1
      %p99 = por %p97, %p98
      %p100 = scmp.ne.s32.totalorder %s89, %s90
      %p101 = scmp.eq.s32.totalorder %s34, 0
      %p102 = por %p100, %p101
      %p103 = scmp.ne.s32.totalorder %s89, %s90
      %p104 = scmp.eq.s32.totalorder %s35, 1
      %p105 = por %p103, %p104
      %p107 = scmp.ne.s32.totalorder %s90, %s106
      %p108 = scmp.eq.s32.totalorder %s35, 0
      %p109 = por %p107, %p108
      %s111 = sadd.s32 %s110, 1
      %p114 = scmp.eq.s32.totalorder %s29, 1
      %p115 = scmp.ne.s32.totalorder %s110, %s112
      %p116 = scmp.eq.s32.totalorder %s29, 0
      %p117 = por %p115, %p116
      %p118 = scmp.ne.s32.totalorder %s110, %s112
      %p119 = scmp.eq.s32.totalorder %s34, 1
      %p120 = por %p118, %p119
      %p121 = scmp.ne.s32.totalorder %s112, %s113
      %p122 = scmp.eq.s32.totalorder %s34, 0
      %p123 = por %p121, %p122
      %p124 = scmp.ne.s32.totalorder %s112, %s113
      %p125 = scmp.eq.s32.totalorder %s35, 1
      %p126 = por %p124, %p125
      %p128 = scmp.ne.s32.totalorder %s113, %s127
      %p129 = scmp.eq.s32.totalorder %s35, 0
      %p130 = por %p128, %p129
      %s132 = sadd.s32 %s131, 1
      %p135 = scmp.eq.s32.totalorder %s29, 1
      %p136 = scmp.ne.s32.totalorder %s131, %s133
      %p137 = scmp.eq.s32.totalorder %s29, 0
      %p138 = por %p136, %p137
      %p139 = scmp.ne.s32.totalorder %s131, %s133
      %p140 = scmp.eq.s32.totalorder %s34, 1
      %p141 = por %p139, %p140
      %p142 = scmp.ne.s32.totalorder %s133, %s134
      %p143 = scmp.eq.s32.totalorder %s34, 0
      %p144 = por %p142, %p143
      %p145 = scmp.ne.s32.totalorder %s133, %s134
      %p146 = scmp.eq.s32.totalorder %s35, 1
      %p147 = por %p145, %p146
      %p149 = scmp.ne.s32.totalorder %s134, %s148
      %p150 = scmp.eq.s32.totalorder %s35, 0
      %p151 = por %p149, %p150
      %s153 = sadd.s32 %s152, 1
      %p156 = scmp.eq.s32.totalorder %s29, 1
      %p157 = scmp.ne.s32.totalorder %s152, %s154
      %p158 = scmp.eq.s32.totalorder %s29, 0
      %p159 = por %p157, %p158
      %p160 = scmp.ne.s32.totalorder %s152, %s154
      %p161 = scmp.eq.s32.totalorder %s34, 1
      %p162 = por %p160, %p161
      %p163 = scmp.ne.s32.totalorder %s154, %s155
      %p164 = scmp.eq.s32.totalorder %s34, 0
      %p165 = por %p163, %p164
      %p166 = scmp.ne.s32.totalorder %s154, %s155
      %p167 = scmp.eq.s32.totalorder %s35, 1
      %p168 = por %p166, %p167
      %p170 = scmp.ne.s32.totalorder %s155, %s169
      %p171 = scmp.eq.s32.totalorder %s35, 0
      %p172 = por %p170, %p171
      %s174 = sadd.s32 %s173, 1
      %p177 = scmp.eq.s32.totalorder %s29, 1
      %p178 = scmp.ne.s32.totalorder %s173, %s175
      %p179 = scmp.eq.s32.totalorder %s29, 0
      %p180 = por %p178, %p179
      %p181 = scmp.ne.s32.totalorder %s173, %s175
      %p182 = scmp.eq.s32.totalorder %s34, 1
      %p183 = por %p181, %p182
      %p184 = scmp.ne.s32.totalorder %s175, %s176
      %p185 = scmp.eq.s32.totalorder %s34, 0
      %p186 = por %p184, %p185
      %p187 = scmp.ne.s32.totalorder %s175, %s176
      %p188 = scmp.eq.s32.totalorder %s35, 1
      %p189 = por %p187, %p188
      %p191 = scmp.ne.s32.totalorder %s176, %s190
      %p192 = scmp.eq.s32.totalorder %s35, 0
      %p193 = por %p191, %p192
      %s195 = sadd.s32 %s194, 1
      %p198 = scmp.eq.s32.totalorder %s29, 1
      %p199 = scmp.ne.s32.totalorder %s194, %s196
      %p200 = scmp.eq.s32.totalorder %s29, 0
      %p201 = por %p199, %p200
      %p202 = scmp.ne.s32.totalorder %s194, %s196
      %p203 = scmp.eq.s32.totalorder %s34, 1
      %p204 = por %p202, %p203
      %p205 = scmp.ne.s32.totalorder %s196, %s197
      %p206 = scmp.eq.s32.totalorder %s34, 0
      %p207 = por %p205, %p206
      %p208 = scmp.ne.s32.totalorder %s196, %s197
      %p209 = scmp.eq.s32.totalorder %s35, 1
      %p210 = por %p208, %p209
      %p212 = scmp.ne.s32.totalorder %s197, %s211
      %p213 = scmp.eq.s32.totalorder %s35, 0
      %p214 = por %p212, %p213
      %s216 = sadd.s32 %s215, 1
      %p219 = scmp.eq.s32.totalorder %s29, 1
      %p220 = scmp.ne.s32.totalorder %s215, %s217
      %p221 = scmp.eq.s32.totalorder %s29, 0
      %p222 = por %p220, %p221
      %p223 = scmp.ne.s32.totalorder %s215, %s217
      %p224 = scmp.eq.s32.totalorder %s34, 1
      %p225 = por %p223, %p224
      %p226 = scmp.ne.s32.totalorder %s217, %s218
      %p227 = scmp.eq.s32.totalorder %s34, 0
      %p228 = por %p226, %p227
      %p229 = scmp.ne.s32.totalorder %s217, %s218
      %p230 = scmp.eq.s32.totalorder %s35, 1
      %p231 = por %p229, %p230
      %p233 = scmp.ne.s32.totalorder %s218, %s232
      %p234 = scmp.eq.s32.totalorder %s35, 0
      %p235 = por %p233, %p234
      %s237 = sadd.s32 %s236, 1
      %p240 = scmp.eq.s32.totalorder %s29, 1
      %p241 = scmp.ne.s32.totalorder %s236, %s238
      %p242 = scmp.eq.s32.totalorder %s29, 0
      %p243 = por %p241, %p242
      %p244 = scmp.ne.s32.totalorder %s236, %s238
      %p245 = scmp.eq.s32.totalorder %s34, 1
      %p246 = por %p244, %p245
      %p247 = scmp.ne.s32.totalorder %s238, %s239
      %p248 = scmp.eq.s32.totalorder %s34, 0
      %p249 = por %p247, %p248
      %p250 = scmp.ne.s32.totalorder %s238, %s239
      %p251 = scmp.eq.s32.totalorder %s35, 1
      %p252 = por %p250, %p251
      %p254 = scmp.ne.s32.totalorder %s239, %s253
      %p255 = scmp.eq.s32.totalorder %s35, 0
      %p256 = por %p254, %p255
      %s258 = sadd.s32 %s257, 1
      %p261 = scmp.eq.s32.totalorder %s29, 1
      %p262 = scmp.ne.s32.totalorder %s257, %s259
      %p263 = scmp.eq.s32.totalorder %s29, 0
      %p264 = por %p262, %p263
      %p265 = scmp.ne.s32.totalorder %s257, %s259
      %p266 = scmp.eq.s32.totalorder %s34, 1
      %p267 = por %p265, %p266
      %p268 = scmp.ne.s32.totalorder %s259, %s260
      %p269 = scmp.eq.s32.totalorder %s34, 0
      %p270 = por %p268, %p269
      %p271 = scmp.ne.s32.totalorder %s259, %s260
      %p272 = scmp.eq.s32.totalorder %s35, 1
      %p273 = por %p271, %p272
      %p275 = scmp.ne.s32.totalorder %s260, %s274
      %p276 = scmp.eq.s32.totalorder %s35, 0
      %p277 = por %p275, %p276
      %s279 = sadd.s32 %s278, 1
      %p282 = scmp.eq.s32.totalorder %s29, 1
      %p283 = scmp.ne.s32.totalorder %s278, %s280
      %p284 = scmp.eq.s32.totalorder %s29, 0
      %p285 = por %p283, %p284
      %p286 = scmp.ne.s32.totalorder %s278, %s280
      %p287 = scmp.eq.s32.totalorder %s34, 1
      %p288 = por %p286, %p287
      %p289 = scmp.ne.s32.totalorder %s280, %s281
      %p290 = scmp.eq.s32.totalorder %s34, 0
      %p291 = por %p289, %p290
      %p292 = scmp.ne.s32.totalorder %s280, %s281
      %p293 = scmp.eq.s32.totalorder %s35, 1
      %p294 = por %p292, %p293
      %p296 = scmp.ne.s32.totalorder %s281, %s295
      %p297 = scmp.eq.s32.totalorder %s35, 0
      %p298 = por %p296, %p297
      %s300 = sadd.s32 %s299, 1
      %p303 = scmp.eq.s32.totalorder %s29, 1
      %p304 = scmp.ne.s32.totalorder %s299, %s301
      %p305 = scmp.eq.s32.totalorder %s29, 0
      %p306 = por %p304, %p305
      %p307 = scmp.ne.s32.totalorder %s299, %s301
      %p308 = scmp.eq.s32.totalorder %s34, 1
      %p309 = por %p307, %p308
      %p310 = scmp.ne.s32.totalorder %s301, %s302
      %p311 = scmp.eq.s32.totalorder %s34, 0
      %p312 = por %p310, %p311
      %p313 = scmp.ne.s32.totalorder %s301, %s302
      %p314 = scmp.eq.s32.totalorder %s35, 1
      %p315 = por %p313, %p314
      %p317 = scmp.ne.s32.totalorder %s302, %s316
      %p318 = scmp.eq.s32.totalorder %s35, 0
      %p319 = por %p317, %p318
      %s321 = sadd.s32 %s320, 1
      %p324 = scmp.eq.s32.totalorder %s29, 1
      %p325 = scmp.ne.s32.totalorder %s320, %s322
      %p326 = scmp.eq.s32.totalorder %s29, 0
      %p327 = por %p325, %p326
      %p328 = scmp.ne.s32.totalorder %s320, %s322
      %p329 = scmp.eq.s32.totalorder %s34, 1
      %p330 = por %p328, %p329
      %p331 = scmp.ne.s32.totalorder %s322, %s323
      %p332 = scmp.eq.s32.totalorder %s34, 0
      %p333 = por %p331, %p332
      %p334 = scmp.ne.s32.totalorder %s322, %s323
      %p335 = scmp.eq.s32.totalorder %s35, 1
      %p336 = por %p334, %p335
      %p338 = scmp.ne.s32.totalorder %s323, %s337
      %p339 = scmp.eq.s32.totalorder %s35, 0
      %p340 = por %p338, %p339
      %s342 = sadd.s32 %s341, 1
      %p345 = scmp.eq.s32.totalorder %s29, 1
      %p346 = scmp.ne.s32.totalorder %s341, %s343
      %p347 = scmp.eq.s32.totalorder %s29, 0
      %p348 = por %p346, %p347
      %p349 = scmp.ne.s32.totalorder %s341, %s343
      %p350 = scmp.eq.s32.totalorder %s34, 1
      %p351 = por %p349, %p350
      %p352 = scmp.ne.s32.totalorder %s343, %s344
      %p353 = scmp.eq.s32.totalorder %s34, 0
      %p354 = por %p352, %p353
      %p355 = scmp.ne.s32.totalorder %s343, %s344
      %p356 = scmp.eq.s32.totalorder %s35, 1
      %p357 = por %p355, %p356
      %p359 = scmp.ne.s32.totalorder %s344, %s358
      %p360 = scmp.eq.s32.totalorder %s35, 0
      %p361 = por %p359, %p360
      %s362 = ssub.s32 %s29, %s36
      %p363 = scmp.eq.s32.totalorder %s362, 0
      %s365 = sadd.s32 %s364, 1
      %s366 = scalar_select %p363, %s364, %s365
      %p369 = pneg %p363
      %p370 = scmp.eq.s32.totalorder %s29, 1
      %p371 = por %p369, %p370
      %p372 = scmp.ne.s32.totalorder %s364, %s367
      %p373 = scmp.eq.s32.totalorder %s29, 0
      %p374 = por %p372, %p373
      %p375 = scmp.ne.s32.totalorder %s364, %s367
      %p376 = scmp.eq.s32.totalorder %s34, 1
      %p377 = por %p375, %p376
      %p378 = scmp.ne.s32.totalorder %s367, %s368
      %p379 = scmp.eq.s32.totalorder %s34, 0
      %p380 = por %p378, %p379
      %p381 = scmp.ne.s32.totalorder %s367, %s368
      %p382 = scmp.eq.s32.totalorder %s35, 1
      %p383 = por %p381, %p382
      %p385 = scmp.ne.s32.totalorder %s368, %s384
      %p386 = scmp.eq.s32.totalorder %s35, 0
      %p387 = por %p385, %p386
      %p388 = scmp.le.s32.totalorder 1, %s29
      %p389 = scmp.lt.s32.totalorder %s29, 3
      %p390 = pnand %p388, %p389
      %p391 = pneg %p390
      // Predicated region
      $region9: #{tpu_custom_call.1} parent=5 // pred_check
        _
      $region10: #{tpu_custom_call.1} parent=5 // pred_check_branch
        %393 = sbr.rel (%p390) target = $region12
      $region11: #{tpu_custom_call.1} parent=5 // pred_region
        %s394 = ssub.s32 %s29, 1
        // Predicated region
        $region13: #{tpu_custom_call.1} parent=11 // pred_check
          %p395 = pneg %p50
        $region14: #{tpu_custom_call.1} parent=11 // pred_check_branch
          %397 = sbr.rel (%p395) target = $region16
        $region15: #{tpu_custom_call.1} parent=11 // pred_region
          _
        $region16: #{tpu_custom_call.1} parent=11 // pred_fallthru
          _
        // Predicated region
        $region17: #{tpu_custom_call.1} parent=11 // pred_check
          %p398 = pneg %p123
        $region18: #{tpu_custom_call.1} parent=11 // pred_check_branch
          %400 = sbr.rel (%p398) target = $region20
        $region19: #{tpu_custom_call.1} parent=11 // pred_region
          %s402 = ssub.s32 512, 512
          %403 = vsyncadd [#allocation4], %s402
          %s404 = sshll.u32 [#allocation3], 4
          %s405 = int_to_ptr.vmem [resolvable:$true] %s404
          %410 = dma.hbm_to_vmem [thread:$0]  %s3, 512, %s405, [#allocation4], 128, 128, 8
        $region20: #{tpu_custom_call.1} parent=11 // pred_fallthru
          _
        // Predicated region
        $region21: #{tpu_custom_call.1} parent=11 // pred_check
          %p411 = pneg %p144
        $region22: #{tpu_custom_call.1} parent=11 // pred_check_branch
          %413 = sbr.rel (%p411) target = $region24
        $region23: #{tpu_custom_call.1} parent=11 // pred_region
          %s415 = ssub.s32 512, 512
          %416 = vsyncadd [#allocation7], %s415
          %s417 = sshll.u32 [#allocation6], 4
          %s418 = int_to_ptr.vmem [resolvable:$true] %s417
          %423 = dma.hbm_to_vmem [thread:$0]  %s4, 512, %s418, [#allocation7], 128, 128, 8
        $region24: #{tpu_custom_call.1} parent=11 // pred_fallthru
          _
        // Predicated region
        $region25: #{tpu_custom_call.1} parent=11 // pred_check
          %p424 = pneg %p165
        $region26: #{tpu_custom_call.1} parent=11 // pred_check_branch
          %426 = sbr.rel (%p424) target = $region28
        $region27: #{tpu_custom_call.1} parent=11 // pred_region
          _
        $region28: #{tpu_custom_call.1} parent=11 // pred_fallthru
          _
        // Predicated region
        $region29: #{tpu_custom_call.1} parent=11 // pred_check
          %p427 = pneg %p186
        $region30: #{tpu_custom_call.1} parent=11 // pred_check_branch
          %429 = sbr.rel (%p427) target = $region32
        $region31: #{tpu_custom_call.1} parent=11 // pred_region
          %s431 = ssub.s32 16, 16
          %432 = vsyncadd [#allocation7], %s431
          %s434 = sshll.u32 [#allocation8], 4
          %s435 = int_to_ptr.vmem [resolvable:$true] %s434
          %437 = dma.hbm_to_vmem [thread:$0]  %s6, 16, %s435, [#allocation7]
        $region32: #{tpu_custom_call.1} parent=11 // pred_fallthru
          _
        // Predicated region
        $region33: #{tpu_custom_call.1} parent=11 // pred_check
          %p438 = pneg %p207
        $region34: #{tpu_custom_call.1} parent=11 // pred_check_branch
          %440 = sbr.rel (%p438) target = $region36
        $region35: #{tpu_custom_call.1} parent=11 // pred_region
          %s442 = ssub.s32 512, 512
          %443 = vsyncadd [#allocation10], %s442
          %s444 = sshll.u32 [#allocation9], 4
          %s445 = int_to_ptr.vmem [resolvable:$true] %s444
          %450 = dma.hbm_to_vmem [thread:$0]  %s7, 512, %s445, [#allocation10], 128, 128, 8
        $region36: #{tpu_custom_call.1} parent=11 // pred_fallthru
          _
        // Predicated region
        $region37: #{tpu_custom_call.1} parent=11 // pred_check
          %p451 = pneg %p228
        $region38: #{tpu_custom_call.1} parent=11 // pred_check_branch
          %453 = sbr.rel (%p451) target = $region40
        $region39: #{tpu_custom_call.1} parent=11 // pred_region
          %s455 = ssub.s32 16, 16
          %456 = vsyncadd [#allocation10], %s455
          %s458 = sshll.u32 [#allocation11], 4
          %s459 = int_to_ptr.vmem [resolvable:$true] %s458
          %461 = dma.hbm_to_vmem [thread:$0]  %s8, 16, %s459, [#allocation10]
        $region40: #{tpu_custom_call.1} parent=11 // pred_fallthru
          _
        // Predicated region
        $region41: #{tpu_custom_call.1} parent=11 // pred_check
          %p462 = pneg %p249
        $region42: #{tpu_custom_call.1} parent=11 // pred_check_branch
          %464 = sbr.rel (%p462) target = $region44
        $region43: #{tpu_custom_call.1} parent=11 // pred_region
          _
        $region44: #{tpu_custom_call.1} parent=11 // pred_fallthru
          _
        // Predicated region
        $region45: #{tpu_custom_call.1} parent=11 // pred_check
          %p465 = pneg %p270
        $region46: #{tpu_custom_call.1} parent=11 // pred_check_branch
          %467 = sbr.rel (%p465) target = $region48
        $region47: #{tpu_custom_call.1} parent=11 // pred_region
          _
        $region48: #{tpu_custom_call.1} parent=11 // pred_fallthru
          _
        // Predicated region
        $region49: #{tpu_custom_call.1} parent=11 // pred_check
          %p468 = pneg %p291
        $region50: #{tpu_custom_call.1} parent=11 // pred_check_branch
          %470 = sbr.rel (%p468) target = $region52
        $region51: #{tpu_custom_call.1} parent=11 // pred_region
          _
        $region52: #{tpu_custom_call.1} parent=11 // pred_fallthru
          _
        // Predicated region
        $region53: #{tpu_custom_call.1} parent=11 // pred_check
          %p471 = pneg %p312
        $region54: #{tpu_custom_call.1} parent=11 // pred_check_branch
          %473 = sbr.rel (%p471) target = $region56
        $region55: #{tpu_custom_call.1} parent=11 // pred_region
          _
        $region56: #{tpu_custom_call.1} parent=11 // pred_fallthru
          _
        // Predicated region
        $region57: #{tpu_custom_call.1} parent=11 // pred_check
          %p474 = pneg %p333
        $region58: #{tpu_custom_call.1} parent=11 // pred_check_branch
          %476 = sbr.rel (%p474) target = $region60
        $region59: #{tpu_custom_call.1} parent=11 // pred_region
          %s478 = ssub.s32 512, 512
          %479 = vsyncadd [#allocation13], %s478
          %s480 = sshll.u32 [#allocation12], 4
          %s481 = int_to_ptr.vmem [resolvable:$true] %s480
          %486 = dma.hbm_to_vmem [thread:$0]  %s13, 512, %s481, [#allocation13], 128, 128, 8
        $region60: #{tpu_custom_call.1} parent=11 // pred_fallthru
          _
        // Predicated region
        $region61: #{tpu_custom_call.1} parent=11 // pred_check
          %p487 = pneg %p354
        $region62: #{tpu_custom_call.1} parent=11 // pred_check_branch
          %489 = sbr.rel (%p487) target = $region64
        $region63: #{tpu_custom_call.1} parent=11 // pred_region
          _
        $region64: #{tpu_custom_call.1} parent=11 // pred_fallthru
          _
      $region12: #{tpu_custom_call.1} parent=5 // pred_fallthru
        _
      %p490 = scmp.lt.s32.totalorder %s29, 2
      // Predicated region
      $region65: #{tpu_custom_call.1} parent=5 // pred_check
        %p491 = pneg %p490
      $region66: #{tpu_custom_call.1} parent=5 // pred_check_branch
        %493 = sbr.rel (%p491) target = $region68
      $region67: #{tpu_custom_call.1} parent=5 // pred_region
        // Predicated region
        $region69: #{tpu_custom_call.1} parent=67 // pred_check
          %p494 = pneg %p70
        $region70: #{tpu_custom_call.1} parent=67 // pred_check_branch
          %496 = sbr.rel (%p494) target = $region72
        $region71: #{tpu_custom_call.1} parent=67 // pred_region
          %s497 = smul.u32 2, %s29
          %p498 = scmp.lt.s32.totalorder %s497, 3
          %s499 = scalar_select %p498, %s497, 3
          %s500 = smul.addr %s499, 8
          %s501 = scalar_lea.vmem %s1, %s500
          %s502 = smul.u32 2, %s29
        $region72: #{tpu_custom_call.1} parent=67 // pred_fallthru
          _
        // Predicated region
        $region73: #{tpu_custom_call.1} parent=67 // pred_check
          %p503 = pneg %p96
        $region74: #{tpu_custom_call.1} parent=67 // pred_check_branch
          %505 = sbr.rel (%p503) target = $region76
        $region75: #{tpu_custom_call.1} parent=67 // pred_region
          %p506 = scmp.lt.s32.totalorder %s29, 1
          %s507 = scalar_select %p506, %s29, 1
          %s508 = smul.addr %s507, 2
          %s509 = smul.addr %s508, 8
          %s510 = scalar_lea.vmem %s2, %s509
        $region76: #{tpu_custom_call.1} parent=67 // pred_fallthru
          _
      $region68: #{tpu_custom_call.1} parent=5 // pred_fallthru
        _
      %p511 = scmp.le.s32.totalorder 1, %s29
      %p512 = scmp.lt.s32.totalorder %s29, 3
      %p513 = pnand %p511, %p512
      %p514 = pneg %p513
      // Predicated region
      $region77: #{tpu_custom_call.1} parent=5 // pred_check
        _
      $region78: #{tpu_custom_call.1} parent=5 // pred_check_branch
        %516 = sbr.rel (%p513) target = $region80
      $region79: #{tpu_custom_call.1} parent=5 // pred_region
        %s517 = ssub.s32 %s29, 1
        // Predicated region
        $region81: #{tpu_custom_call.1} parent=79 // pred_check
          %p518 = pneg %p123
        $region82: #{tpu_custom_call.1} parent=79 // pred_check_branch
          %520 = sbr.rel (%p518) target = $region84
        $region83: #{tpu_custom_call.1} parent=79 // pred_region
          %521 = dma.done [#allocation4], 512
        $region84: #{tpu_custom_call.1} parent=79 // pred_fallthru
          _
        // Predicated region
        $region85: #{tpu_custom_call.1} parent=79 // pred_check
          %p522 = pneg %p144
        $region86: #{tpu_custom_call.1} parent=79 // pred_check_branch
          %524 = sbr.rel (%p522) target = $region88
        $region87: #{tpu_custom_call.1} parent=79 // pred_region
          %525 = dma.done [#allocation7], 512
        $region88: #{tpu_custom_call.1} parent=79 // pred_fallthru
          _
        // Predicated region
        $region89: #{tpu_custom_call.1} parent=79 // pred_check
          %p526 = pneg %p186
        $region90: #{tpu_custom_call.1} parent=79 // pred_check_branch
          %528 = sbr.rel (%p526) target = $region92
        $region91: #{tpu_custom_call.1} parent=79 // pred_region
          %529 = dma.done [#allocation7], 16
        $region92: #{tpu_custom_call.1} parent=79 // pred_fallthru
          _
        // Predicated region
        $region93: #{tpu_custom_call.1} parent=79 // pred_check
          %p530 = pneg %p207
        $region94: #{tpu_custom_call.1} parent=79 // pred_check_branch
          %532 = sbr.rel (%p530) target = $region96
        $region95: #{tpu_custom_call.1} parent=79 // pred_region
          %533 = dma.done [#allocation10], 512
        $region96: #{tpu_custom_call.1} parent=79 // pred_fallthru
          _
        // Predicated region
        $region97: #{tpu_custom_call.1} parent=79 // pred_check
          %p534 = pneg %p228
        $region98: #{tpu_custom_call.1} parent=79 // pred_check_branch
          %536 = sbr.rel (%p534) target = $region100
        $region99: #{tpu_custom_call.1} parent=79 // pred_region
          %537 = dma.done [#allocation10], 16
        $region100: #{tpu_custom_call.1} parent=79 // pred_fallthru
          _
        // Predicated region
        $region101: #{tpu_custom_call.1} parent=79 // pred_check
          %p538 = pneg %p333
        $region102: #{tpu_custom_call.1} parent=79 // pred_check_branch
          %540 = sbr.rel (%p538) target = $region104
        $region103: #{tpu_custom_call.1} parent=79 // pred_region
          %541 = dma.done [#allocation13], 512
        $region104: #{tpu_custom_call.1} parent=79 // pred_fallthru
          _
        %p542 = pneg %p50
        %p543 = pneg %p47
        %s544 = smul.u32 2, %s34
        %p545 = scmp.lt.s32.totalorder %s544, 3
        %s546 = scalar_select %p545, %s544, 3
        %s547 = smul.addr %s546, 8
        %s548 = scalar_lea.vmem %s1, %s547
        %p549 = pneg %p76
        %p550 = pneg %p73
        %p551 = scmp.lt.s32.totalorder %s34, 1
        %s552 = scalar_select %p551, %s34, 1
        %s553 = smul.addr %s552, 2
        %s554 = smul.addr %s553, 8
        %s555 = scalar_lea.vmem %s2, %s554
        %p556 = pneg %p102
        %p557 = pneg %p99
        %p558 = pneg %p123
        %p559 = pneg %p120
        %p560 = pneg %p144
        %p561 = pneg %p141
        %p562 = pneg %p165
        %p563 = pneg %p162
        %p564 = pneg %p186
        %p565 = pneg %p183
        %p566 = pneg %p207
        %p567 = pneg %p204
        %p568 = pneg %p228
        %p569 = pneg %p225
        %p570 = pneg %p249
        %p571 = pneg %p246
        %p572 = pneg %p270
        %p573 = pneg %p267
        %p574 = pneg %p291
        %p575 = pneg %p288
        %p576 = pneg %p312
        %p577 = pneg %p309
        %p578 = pneg %p333
        %p579 = pneg %p330
        %p580 = pneg %p354
        %p581 = pneg %p351
        %p582 = pneg %p380
        %p583 = pneg %p377
        %s584 = sand.u32 %s367, 1
        %s585 = scalar_lea.sflag [#allocation5], %s584
        %s586 = sand.u32 %s367, 1
        %s587 = smul.addr %s586, 16
        %s588 = scalar_lea.vmem [#allocation14], %s587
        %s589 = smul.u32 2, %s34
        %p590 = scmp.lt.s32.totalorder %s589, 3
        %s591 = scalar_select %p590, %s589, 3
        %s592 = smul.addr %s591, 8
        %s593 = scalar_lea.vmem %s1, %s592
        %s594 = smul.u32 2, %s34
        %p595 = scmp.lt.s32.totalorder %s34, 1
        %s596 = scalar_select %p595, %s34, 1
        %s597 = smul.addr %s596, 2
        %s598 = smul.addr %s597, 8
        %s599 = scalar_lea.vmem %s2, %s598
        %s600 = smul.u32 2, %s34
        %v601 = vld [vmem:[%s599] sm:$0xff]
        %v602 = vld [vmem:[%s599 + $0x8] sm:$0xff]
        %v603 = vld [vmem:[#allocation9] sm:$0xff]
        %v604 = vld [vmem:[#allocation9 + $0x8] sm:$0xff]
        %v605 = vld [vmem:[#allocation9 + $0x10] sm:$0xff]
        %v606 = vld [vmem:[#allocation9 + $0x18] sm:$0xff]
        %v607 = vld [vmem:[#allocation11] sm:$0x1]
        %v609 = vlaneseq
        %v610 = vshrl.u32 %v609, 7
        %v611 = vsub.s32 0, %v610
        %v612 = vrot.slane %v607, %v611
        %vm614 = vcmask 261120
        %v616 = vsel %vm614, %v601, 0
        %v619 = vsel %vm614, %v602, 0
        %621 = vmatprep.subr.mxu0 0.0
        %622 = vmatpush1.msra.mxu0 0.0
        %623 = vmatprep.subr.mxu0 0.0
        %624 = vmatpush1.msra.mxu0 0.0
        %625 = vmatprep.subr.mxu0 0.0
        %626 = vmatpush1.msra.mxu0 0.0
        %627 = vmatprep.subr.mxu0 0.0
        %628 = vmatpush1.msra.mxu0 0.0
        %629 = vmatprep.subr.mxu0 0.0
        %630 = vmatpush1.msra.mxu0 0.0
        %631 = vmatprep.subr.mxu0 0.0
        %632 = vmatpush1.msra.mxu0 0.0
        %633 = vmatprep.subr.mxu0 0.0
        %634 = vmatpush1.msra.mxu0 0.0
        %635 = vmatprep.subr.mxu0 0.0
        %636 = vmatpush1.msra.mxu0 0.0
        %637 = vmatprep.subr.mxu0 0.0
        %638 = vmatpush1.msra.mxu0 0.0
        %639 = vmatprep.subr.mxu0 0.0
        %640 = vmatpush1.msra.mxu0 0.0
        %641 = vmatprep.subr.mxu0 0.0
        %642 = vmatpush1.msra.mxu0 0.0
        %643 = vmatprep.subr.mxu0 0.0
        %644 = vmatpush1.msra.mxu0 0.0
        %645 = vmatprep.subr.mxu0 0.0
        %646 = vmatpush1.msra.mxu0 %v606
        %647 = vmatprep.subr.mxu0 0.0
        %648 = vmatpush1.msra.mxu0 %v605
        %649 = vmatprep.subr.mxu0 0.0
        %650 = vmatpush1.msra.mxu0 %v604
        %651 = vmatprep.subr.mxu0 0.0
        %652 = vmatpush1.msra.mxu0 %v603
        %653 = vmatprep.subr.mxu0 0.0
        %654 = vmatpush2.msra.mxu0 0.0
        %655 = vmatprep.subr.mxu0 0.0
        %656 = vmatpush2.msra.mxu0 0.0
        %657 = vmatprep.subr.mxu0 0.0
        %658 = vmatpush2.msra.mxu0 0.0
        %659 = vmatprep.subr.mxu0 0.0
        %660 = vmatpush2.msra.mxu0 0.0
        %661 = vmatprep.subr.mxu0 0.0
        %662 = vmatpush2.msra.mxu0 0.0
        %663 = vmatprep.subr.mxu0 0.0
        %664 = vmatpush2.msra.mxu0 0.0
        %665 = vmatprep.subr.mxu0 0.0
        %666 = vmatpush2.msra.mxu0 0.0
        %667 = vmatprep.subr.mxu0 0.0
        %668 = vmatpush2.msra.mxu0 0.0
        %669 = vmatprep.subr.mxu0 0.0
        %670 = vmatpush2.msra.mxu0 0.0
        %671 = vmatprep.subr.mxu0 0.0
        %672 = vmatpush2.msra.mxu0 0.0
        %673 = vmatprep.subr.mxu0 0.0
        %674 = vmatpush2.msra.mxu0 0.0
        %675 = vmatprep.subr.mxu0 0.0
        %676 = vmatpush2.msra.mxu0 0.0
        %677 = vmatprep.subr.mxu0 0.0
        %678 = vmatpush2.msra.mxu0 0.0
        %679 = vmatprep.subr.mxu0 0.0
        %680 = vmatpush2.msra.mxu0 0.0
        %681 = vmatprep.subr.mxu0 0.0
        %682 = vmatpush2.msra.mxu0 0.0
        %683 = vmatprep.subr.mxu0 0.0
        %684 = vmatpush2.msra.mxu0 0.0
        %685 = vmatprep.mubr.f32.mxu0 0.0
        %686 = vmatmul.mubr.f32.gmra.mxu0 %v616
        %v687 = vpop.f32.mrf.mxu0
        %v688 = vadd.f32 %v612, %v687
        %v689 = vpop.f32.mrf.mxu0
        %690 = vmatprep.mubr.f32.mxu0 0.0
        %691 = vmatmul.mubr.f32.gmra.mxu0 %v619
        %v692 = vpop.f32.mrf.mxu0
        %v693 = vadd.f32 %v612, %v692
        %v694 = vpop.f32.mrf.mxu0
        %695 = vdwg.mxu0
        %v696 = vld [vmem:[%s9] sm:$0xff]
        %v697 = vld [vmem:[%s9 + $0x8] sm:$0xff]
        %v698 = vld [vmem:[%s9 + $0x10] sm:$0xff]
        %v699 = vld [vmem:[%s9 + $0x18] sm:$0xff]
        %v700 = vld [vmem:[%s10] sm:$0x1]
        %v702 = vlaneseq
        %v703 = vshrl.u32 %v702, 7
        %v704 = vsub.s32 0, %v703
        %v705 = vrot.slane %v700, %v704
        %707 = vmatprep.subr.mxu0 0.0
        %708 = vmatpush1.msra.mxu0 0.0
        %709 = vmatprep.subr.mxu0 0.0
        %710 = vmatpush1.msra.mxu0 0.0
        %711 = vmatprep.subr.mxu0 0.0
        %712 = vmatpush1.msra.mxu0 0.0
        %713 = vmatprep.subr.mxu0 0.0
        %714 = vmatpush1.msra.mxu0 0.0
        %715 = vmatprep.subr.mxu0 0.0
        %716 = vmatpush1.msra.mxu0 0.0
        %717 = vmatprep.subr.mxu0 0.0
        %718 = vmatpush1.msra.mxu0 0.0
        %719 = vmatprep.subr.mxu0 0.0
        %720 = vmatpush1.msra.mxu0 0.0
        %721 = vmatprep.subr.mxu0 0.0
        %722 = vmatpush1.msra.mxu0 0.0
        %723 = vmatprep.subr.mxu0 0.0
        %724 = vmatpush1.msra.mxu0 0.0
        %725 = vmatprep.subr.mxu0 0.0
        %726 = vmatpush1.msra.mxu0 0.0
        %727 = vmatprep.subr.mxu0 0.0
        %728 = vmatpush1.msra.mxu0 0.0
        %729 = vmatprep.subr.mxu0 0.0
        %730 = vmatpush1.msra.mxu0 0.0
        %731 = vmatprep.subr.mxu0 0.0
        %732 = vmatpush1.msra.mxu0 %v699
        %733 = vmatprep.subr.mxu0 0.0
        %734 = vmatpush1.msra.mxu0 %v698
        %735 = vmatprep.subr.mxu0 0.0
        %736 = vmatpush1.msra.mxu0 %v697
        %737 = vmatprep.subr.mxu0 0.0
        %738 = vmatpush1.msra.mxu0 %v696
        %739 = vmatprep.subr.mxu0 0.0
        %740 = vmatpush2.msra.mxu0 0.0
        %741 = vmatprep.subr.mxu0 0.0
        %742 = vmatpush2.msra.mxu0 0.0
        %743 = vmatprep.subr.mxu0 0.0
        %744 = vmatpush2.msra.mxu0 0.0
        %745 = vmatprep.subr.mxu0 0.0
        %746 = vmatpush2.msra.mxu0 0.0
        %747 = vmatprep.subr.mxu0 0.0
        %748 = vmatpush2.msra.mxu0 0.0
        %749 = vmatprep.subr.mxu0 0.0
        %750 = vmatpush2.msra.mxu0 0.0
        %751 = vmatprep.subr.mxu0 0.0
        %752 = vmatpush2.msra.mxu0 0.0
        %753 = vmatprep.subr.mxu0 0.0
        %754 = vmatpush2.msra.mxu0 0.0
        %755 = vmatprep.subr.mxu0 0.0
        %756 = vmatpush2.msra.mxu0 0.0
        %757 = vmatprep.subr.mxu0 0.0
        %758 = vmatpush2.msra.mxu0 0.0
        %759 = vmatprep.subr.mxu0 0.0
        %760 = vmatpush2.msra.mxu0 0.0
        %761 = vmatprep.subr.mxu0 0.0
        %762 = vmatpush2.msra.mxu0 0.0
        %763 = vmatprep.subr.mxu0 0.0
        %764 = vmatpush2.msra.mxu0 0.0
        %765 = vmatprep.subr.mxu0 0.0
        %766 = vmatpush2.msra.mxu0 0.0
        %767 = vmatprep.subr.mxu0 0.0
        %768 = vmatpush2.msra.mxu0 0.0
        %769 = vmatprep.subr.mxu0 0.0
        %770 = vmatpush2.msra.mxu0 0.0
        %771 = vmatprep.mubr.f32.mxu0 0.0
        %772 = vmatmul.mubr.f32.gmra.mxu0 %v616
        %v773 = vpop.f32.mrf.mxu0
        %v774 = vadd.f32 %v705, %v773
        %v775 = vpop.f32.mrf.mxu0
        %776 = vmatprep.mubr.f32.mxu0 0.0
        %777 = vmatmul.mubr.f32.gmra.mxu0 %v619
        %v778 = vpop.f32.mrf.mxu0
        %v779 = vadd.f32 %v705, %v778
        %v780 = vpop.f32.mrf.mxu0
        %781 = vdwg.mxu0
        %v782 = vld [vmem:[%s593] sm:$0xff]
        %s783 = scalar_lea.vmem %s593, 8
        %v784 = vld [vmem:[%s783] sm:$0xff]
        %v785 = vld [vmem:[%s5] sm:$0xff]
        %v786 = vld [vmem:[%s5 + $0x8] sm:$0xff]
        %v787 = vld [vmem:[%s5 + $0x10] sm:$0xff]
        %v788 = vld [vmem:[%s5 + $0x18] sm:$0xff]
        %v789 = vld [vmem:[%s5 + $0x20] sm:$0xff]
        %v790 = vld [vmem:[%s5 + $0x28] sm:$0xff]
        %v791 = vld [vmem:[#allocation8] sm:$0x1]
        %v793 = vlaneseq
        %v794 = vshrl.u32 %v793, 7
        %v795 = vsub.s32 0, %v794
        %v796 = vrot.slane %v791, %v795
        %vm798 = vcmask 392192
        %v800 = vsel %vm798, %v782, 0
        %v803 = vsel %vm798, %v784, 0
        %805 = vmatprep.subr.mxu0 0.0
        %806 = vmatpush1.msra.mxu0 0.0
        %807 = vmatprep.subr.mxu0 0.0
        %808 = vmatpush1.msra.mxu0 0.0
        %809 = vmatprep.subr.mxu0 0.0
        %810 = vmatpush1.msra.mxu0 0.0
        %811 = vmatprep.subr.mxu0 0.0
        %812 = vmatpush1.msra.mxu0 0.0
        %813 = vmatprep.subr.mxu0 0.0
        %814 = vmatpush1.msra.mxu0 0.0
        %815 = vmatprep.subr.mxu0 0.0
        %816 = vmatpush1.msra.mxu0 0.0
        %817 = vmatprep.subr.mxu0 0.0
        %818 = vmatpush1.msra.mxu0 0.0
        %819 = vmatprep.subr.mxu0 0.0
        %820 = vmatpush1.msra.mxu0 0.0
        %821 = vmatprep.subr.mxu0 0.0
        %822 = vmatpush1.msra.mxu0 0.0
        %823 = vmatprep.subr.mxu0 0.0
        %824 = vmatpush1.msra.mxu0 0.0
        %825 = vmatprep.subr.mxu0 0.0
        %826 = vmatpush1.msra.mxu0 %v790
        %827 = vmatprep.subr.mxu0 0.0
        %828 = vmatpush1.msra.mxu0 %v789
        %829 = vmatprep.subr.mxu0 0.0
        %830 = vmatpush1.msra.mxu0 %v788
        %831 = vmatprep.subr.mxu0 0.0
        %832 = vmatpush1.msra.mxu0 %v787
        %833 = vmatprep.subr.mxu0 0.0
        %834 = vmatpush1.msra.mxu0 %v786
        %835 = vmatprep.subr.mxu0 0.0
        %836 = vmatpush1.msra.mxu0 %v785
        %837 = vmatprep.subr.mxu0 0.0
        %838 = vmatpush2.msra.mxu0 0.0
        %839 = vmatprep.subr.mxu0 0.0
        %840 = vmatpush2.msra.mxu0 0.0
        %841 = vmatprep.subr.mxu0 0.0
        %842 = vmatpush2.msra.mxu0 0.0
        %843 = vmatprep.subr.mxu0 0.0
        %844 = vmatpush2.msra.mxu0 0.0
        %845 = vmatprep.subr.mxu0 0.0
        %846 = vmatpush2.msra.mxu0 0.0
        %847 = vmatprep.subr.mxu0 0.0
        %848 = vmatpush2.msra.mxu0 0.0
        %849 = vmatprep.subr.mxu0 0.0
        %850 = vmatpush2.msra.mxu0 0.0
        %851 = vmatprep.subr.mxu0 0.0
        %852 = vmatpush2.msra.mxu0 0.0
        %853 = vmatprep.subr.mxu0 0.0
        %854 = vmatpush2.msra.mxu0 0.0
        %855 = vmatprep.subr.mxu0 0.0
        %856 = vmatpush2.msra.mxu0 0.0
        %857 = vmatprep.subr.mxu0 0.0
        %858 = vmatpush2.msra.mxu0 0.0
        %859 = vmatprep.subr.mxu0 0.0
        %860 = vmatpush2.msra.mxu0 0.0
        %861 = vmatprep.subr.mxu0 0.0
        %862 = vmatpush2.msra.mxu0 0.0
        %863 = vmatprep.subr.mxu0 0.0
        %864 = vmatpush2.msra.mxu0 0.0
        %865 = vmatprep.subr.mxu0 0.0
        %866 = vmatpush2.msra.mxu0 0.0
        %867 = vmatprep.subr.mxu0 0.0
        %868 = vmatpush2.msra.mxu0 0.0
        %869 = vmatprep.mubr.f32.mxu0 0.0
        %870 = vmatmul.mubr.f32.gmra.mxu0 %v800
        %v871 = vpop.f32.mrf.mxu0
        %v872 = vadd.f32 %v796, %v871
        %v873 = vpop.f32.mrf.mxu0
        %874 = vmatprep.mubr.f32.mxu0 0.0
        %875 = vmatmul.mubr.f32.gmra.mxu0 %v803
        %v876 = vpop.f32.mrf.mxu0
        %v877 = vadd.f32 %v796, %v876
        %v878 = vpop.f32.mrf.mxu0
        %879 = vdwg.mxu0
        %881 = vrot.lane.b32.xlu0 %v872, 120
        %v882 = vpop.permute.xlu0 %881
        %884 = vrot.lane.b32.xlu0 %v872, 112
        %v885 = vpop.permute.xlu0 %884
        %887 = vrot.lane.b32.xlu0 %v872, 104
        %v888 = vpop.permute.xlu0 %887
        %v890 = vld [vmem:[#allocation3] sm:$0xff]
        %v891 = vld [vmem:[#allocation3 + $0x8] sm:$0xff]
        %v892 = vld [vmem:[#allocation3 + $0x10] sm:$0xff]
        %v893 = vld [vmem:[#allocation3 + $0x18] sm:$0xff]
        %v895 = vsel %vm614, %v890, 0
        %v898 = vsel %vm614, %v891, 0
        %v901 = vsel %vm614, %v892, 0
        %v904 = vsel %vm614, %v893, 0
        %906 = vmatprep.subr.mxu0 0.0
        %907 = vmatpush1.msra.mxu0 0.0
        %908 = vmatprep.subr.mxu0 0.0
        %909 = vmatpush1.msra.mxu0 0.0
        %910 = vmatprep.subr.mxu0 0.0
        %911 = vmatpush1.msra.mxu0 0.0
        %912 = vmatprep.subr.mxu0 0.0
        %913 = vmatpush1.msra.mxu0 0.0
        %914 = vmatprep.subr.mxu0 0.0
        %915 = vmatpush1.msra.mxu0 0.0
        %916 = vmatprep.subr.mxu0 0.0
        %917 = vmatpush1.msra.mxu0 0.0
        %918 = vmatprep.subr.mxu0 0.0
        %919 = vmatpush1.msra.mxu0 0.0
        %920 = vmatprep.subr.mxu0 0.0
        %921 = vmatpush1.msra.mxu0 0.0
        %922 = vmatprep.subr.mxu0 0.0
        %923 = vmatpush1.msra.mxu0 0.0
        %924 = vmatprep.subr.mxu0 0.0
        %925 = vmatpush1.msra.mxu0 0.0
        %926 = vmatprep.subr.mxu0 0.0
        %927 = vmatpush1.msra.mxu0 0.0
        %928 = vmatprep.subr.mxu0 0.0
        %929 = vmatpush1.msra.mxu0 0.0
        %930 = vmatprep.subr.mxu0 0.0
        %931 = vmatpush1.msra.mxu0 %v888
        %932 = vmatprep.subr.mxu0 0.0
        %933 = vmatpush1.msra.mxu0 %v885
        %934 = vmatprep.subr.mxu0 0.0
        %935 = vmatpush1.msra.mxu0 %v882
        %936 = vmatprep.subr.mxu0 0.0
        %937 = vmatpush1.msra.mxu0 %v872
        %938 = vmatprep.subr.mxu0 0.0
        %939 = vmatpush2.msra.mxu0 0.0
        %940 = vmatprep.subr.mxu0 0.0
        %941 = vmatpush2.msra.mxu0 0.0
        %942 = vmatprep.subr.mxu0 0.0
        %943 = vmatpush2.msra.mxu0 0.0
        %944 = vmatprep.subr.mxu0 0.0
        %945 = vmatpush2.msra.mxu0 0.0
        %946 = vmatprep.subr.mxu0 0.0
        %947 = vmatpush2.msra.mxu0 0.0
        %948 = vmatprep.subr.mxu0 0.0
        %949 = vmatpush2.msra.mxu0 0.0
        %950 = vmatprep.subr.mxu0 0.0
        %951 = vmatpush2.msra.mxu0 0.0
        %952 = vmatprep.subr.mxu0 0.0
        %953 = vmatpush2.msra.mxu0 0.0
        %954 = vmatprep.subr.mxu0 0.0
        %955 = vmatpush2.msra.mxu0 0.0
        %956 = vmatprep.subr.mxu0 0.0
        %957 = vmatpush2.msra.mxu0 0.0
        %958 = vmatprep.subr.mxu0 0.0
        %959 = vmatpush2.msra.mxu0 0.0
        %960 = vmatprep.subr.mxu0 0.0
        %961 = vmatpush2.msra.mxu0 0.0
        %962 = vmatprep.subr.mxu0 0.0
        %963 = vmatpush2.msra.mxu0 0.0
        %964 = vmatprep.subr.mxu0 0.0
        %965 = vmatpush2.msra.mxu0 0.0
        %966 = vmatprep.subr.mxu0 0.0
        %967 = vmatpush2.msra.mxu0 0.0
        %968 = vmatprep.subr.mxu0 0.0
        %969 = vmatpush2.msra.mxu0 0.0
        %970 = vmatprep.mubr.f32.mxu0 0.0
        %971 = vmatmul.mubr.f32.gmra.mxu0 %v895
        %v972 = vpop.f32.mrf.mxu0
        %v973 = vadd.f32 0.0, %v972
        %v974 = vpop.f32.mrf.mxu0
        %975 = vmatprep.mubr.f32.mxu0 0.0
        %976 = vmatmul.mubr.f32.gmra.mxu0 %v898
        %v977 = vpop.f32.mrf.mxu0
        %v978 = vadd.f32 0.0, %v977
        %v979 = vpop.f32.mrf.mxu0
        %980 = vmatprep.mubr.f32.mxu0 0.0
        %981 = vmatmul.mubr.f32.gmra.mxu0 %v901
        %v982 = vpop.f32.mrf.mxu0
        %v983 = vadd.f32 0.0, %v982
        %v984 = vpop.f32.mrf.mxu0
        %985 = vmatprep.mubr.f32.mxu0 0.0
        %986 = vmatmul.mubr.f32.gmra.mxu0 %v904
        %v987 = vpop.f32.mrf.mxu0
        %v988 = vadd.f32 0.0, %v987
        %v989 = vpop.f32.mrf.mxu0
        %990 = vdwg.mxu0
        %vm991 = vcmask 64512
        %v993 = vsel %vm991, %v973, 0
        %v996 = vsel %vm991, %v688, 0
        %v999 = vsel %vm991, %v693, 0
        %1001 = vmatprep.subr.mxu0 0.0
        %1002 = vmatpush1.xpose.msra.mxu0 0.0
        %1003 = vmatprep.subr.mxu0 0.0
        %1004 = vmatpush1.xpose.msra.mxu0 0.0
        %1005 = vmatprep.subr.mxu0 0.0
        %1006 = vmatpush1.xpose.msra.mxu0 0.0
        %1007 = vmatprep.subr.mxu0 0.0
        %1008 = vmatpush1.xpose.msra.mxu0 0.0
        %1009 = vmatprep.subr.mxu0 0.0
        %1010 = vmatpush1.xpose.msra.mxu0 0.0
        %1011 = vmatprep.subr.mxu0 0.0
        %1012 = vmatpush1.xpose.msra.mxu0 0.0
        %1013 = vmatprep.subr.mxu0 0.0
        %1014 = vmatpush1.xpose.msra.mxu0 0.0
        %1015 = vmatprep.subr.mxu0 0.0
        %1016 = vmatpush1.xpose.msra.mxu0 0.0
        %1017 = vmatprep.subr.mxu0 0.0
        %1018 = vmatpush1.xpose.msra.mxu0 0.0
        %1019 = vmatprep.subr.mxu0 0.0
        %1020 = vmatpush1.xpose.msra.mxu0 0.0
        %1021 = vmatprep.subr.mxu0 0.0
        %1022 = vmatpush1.xpose.msra.mxu0 0.0
        %1023 = vmatprep.subr.mxu0 0.0
        %1024 = vmatpush1.xpose.msra.mxu0 0.0
        %1025 = vmatprep.subr.mxu0 0.0
        %1026 = vmatpush1.xpose.msra.mxu0 0.0
        %1027 = vmatprep.subr.mxu0 0.0
        %1028 = vmatpush1.xpose.msra.mxu0 0.0
        %1029 = vmatprep.subr.mxu0 0.0
        %1030 = vmatpush1.xpose.msra.mxu0 %v999
        %1031 = vmatprep.subr.mxu0 0.0
        %1032 = vmatpush1.xpose.msra.mxu0 %v996
        %1033 = vmatprep.subr.mxu0 0.0
        %1034 = vmatpush2.xpose.msra.mxu0 0.0
        %1035 = vmatprep.subr.mxu0 0.0
        %1036 = vmatpush2.xpose.msra.mxu0 0.0
        %1037 = vmatprep.subr.mxu0 0.0
        %1038 = vmatpush2.xpose.msra.mxu0 0.0
        %1039 = vmatprep.subr.mxu0 0.0
        %1040 = vmatpush2.xpose.msra.mxu0 0.0
        %1041 = vmatprep.subr.mxu0 0.0
        %1042 = vmatpush2.xpose.msra.mxu0 0.0
        %1043 = vmatprep.subr.mxu0 0.0
        %1044 = vmatpush2.xpose.msra.mxu0 0.0
        %1045 = vmatprep.subr.mxu0 0.0
        %1046 = vmatpush2.xpose.msra.mxu0 0.0
        %1047 = vmatprep.subr.mxu0 0.0
        %1048 = vmatpush2.xpose.msra.mxu0 0.0
        %1049 = vmatprep.subr.mxu0 0.0
        %1050 = vmatpush2.xpose.msra.mxu0 0.0
        %1051 = vmatprep.subr.mxu0 0.0
        %1052 = vmatpush2.xpose.msra.mxu0 0.0
        %1053 = vmatprep.subr.mxu0 0.0
        %1054 = vmatpush2.xpose.msra.mxu0 0.0
        %1055 = vmatprep.subr.mxu0 0.0
        %1056 = vmatpush2.xpose.msra.mxu0 0.0
        %1057 = vmatprep.subr.mxu0 0.0
        %1058 = vmatpush2.xpose.msra.mxu0 0.0
        %1059 = vmatprep.subr.mxu0 0.0
        %1060 = vmatpush2.xpose.msra.mxu0 0.0
        %1061 = vmatprep.subr.mxu0 0.0
        %1062 = vmatpush2.xpose.msra.mxu0 0.0
        %1063 = vmatprep.subr.mxu0 0.0
        %1064 = vmatpush2.xpose.msra.mxu0 0.0
        %1065 = vmatprep.mubr.f32.mxu0 0.0
        %1066 = vmatmul.mubr.f32.gmra.mxu0 %v993
        %v1067 = vpop.f32.mrf.mxu0
        %v1068 = vadd.f32 0.0, %v1067
        %v1069 = vpop.f32.mrf.mxu0
        %1070 = vdwg.mxu0
        %vm1071 = vcmask 130048
        %v1072 = vsel %vm1071, %v1068, -inf
        %1073 = vmax.xlane.f32.xlu0 %v1072
        %v1074 = vpop.xlane.xlu0 %1073
        %v1075 = vsub.f32 %v1068, %v1074
        %v1076 = vmul.f32 %v1075, 1.442695
        %v1077 = vpow.pop %v1076
        %v1078 = vsel %vm1071, %v1077, 0.0
        %1079 = vadd.xlane.f32.xlu0 %v1078
        %v1080 = vpop.xlane.xlu0 %1079
        %v1081 = vrcp.pop %v1080
        %v1082 = vmul.f32 %v1077, %v1081
        %v1084 = vsel %vm1071, %v1082, 0
        %1086 = vmatprep.subr.mxu0 0.0
        %1087 = vmatpush1.msra.mxu0 0.0
        %1088 = vmatprep.subr.mxu0 0.0
        %1089 = vmatpush1.msra.mxu0 0.0
        %1090 = vmatprep.subr.mxu0 0.0
        %1091 = vmatpush1.msra.mxu0 0.0
        %1092 = vmatprep.subr.mxu0 0.0
        %1093 = vmatpush1.msra.mxu0 0.0
        %1094 = vmatprep.subr.mxu0 0.0
        %1095 = vmatpush1.msra.mxu0 0.0
        %1096 = vmatprep.subr.mxu0 0.0
        %1097 = vmatpush1.msra.mxu0 0.0
        %1098 = vmatprep.subr.mxu0 0.0
        %1099 = vmatpush1.msra.mxu0 0.0
        %1100 = vmatprep.subr.mxu0 0.0
        %1101 = vmatpush1.msra.mxu0 0.0
        %1102 = vmatprep.subr.mxu0 0.0
        %1103 = vmatpush1.msra.mxu0 0.0
        %1104 = vmatprep.subr.mxu0 0.0
        %1105 = vmatpush1.msra.mxu0 0.0
        %1106 = vmatprep.subr.mxu0 0.0
        %1107 = vmatpush1.msra.mxu0 0.0
        %1108 = vmatprep.subr.mxu0 0.0
        %1109 = vmatpush1.msra.mxu0 0.0
        %1110 = vmatprep.subr.mxu0 0.0
        %1111 = vmatpush1.msra.mxu0 0.0
        %1112 = vmatprep.subr.mxu0 0.0
        %1113 = vmatpush1.msra.mxu0 0.0
        %1114 = vmatprep.subr.mxu0 0.0
        %1115 = vmatpush1.msra.mxu0 %v779
        %1116 = vmatprep.subr.mxu0 0.0
        %1117 = vmatpush1.msra.mxu0 %v774
        %1118 = vmatprep.subr.mxu0 0.0
        %1119 = vmatpush2.msra.mxu0 0.0
        %1120 = vmatprep.subr.mxu0 0.0
        %1121 = vmatpush2.msra.mxu0 0.0
        %1122 = vmatprep.subr.mxu0 0.0
        %1123 = vmatpush2.msra.mxu0 0.0
        %1124 = vmatprep.subr.mxu0 0.0
        %1125 = vmatpush2.msra.mxu0 0.0
        %1126 = vmatprep.subr.mxu0 0.0
        %1127 = vmatpush2.msra.mxu0 0.0
        %1128 = vmatprep.subr.mxu0 0.0
        %1129 = vmatpush2.msra.mxu0 0.0
        %1130 = vmatprep.subr.mxu0 0.0
        %1131 = vmatpush2.msra.mxu0 0.0
        %1132 = vmatprep.subr.mxu0 0.0
        %1133 = vmatpush2.msra.mxu0 0.0
        %1134 = vmatprep.subr.mxu0 0.0
        %1135 = vmatpush2.msra.mxu0 0.0
        %1136 = vmatprep.subr.mxu0 0.0
        %1137 = vmatpush2.msra.mxu0 0.0
        %1138 = vmatprep.subr.mxu0 0.0
        %1139 = vmatpush2.msra.mxu0 0.0
        %1140 = vmatprep.subr.mxu0 0.0
        %1141 = vmatpush2.msra.mxu0 0.0
        %1142 = vmatprep.subr.mxu0 0.0
        %1143 = vmatpush2.msra.mxu0 0.0
        %1144 = vmatprep.subr.mxu0 0.0
        %1145 = vmatpush2.msra.mxu0 0.0
        %1146 = vmatprep.subr.mxu0 0.0
        %1147 = vmatpush2.msra.mxu0 0.0
        %1148 = vmatprep.subr.mxu0 0.0
        %1149 = vmatpush2.msra.mxu0 0.0
        %1150 = vmatprep.mubr.f32.mxu0 0.0
        %1151 = vmatmul.mubr.f32.gmra.mxu0 %v1084
        %v1152 = vpop.f32.mrf.mxu0
        %v1153 = vadd.f32 0.0, %v1152
        %v1154 = vpop.f32.mrf.mxu0
        %1155 = vdwg.mxu0
        %1156 = vrot.lane.b32.xlu0 %v688, 120
        %v1157 = vpop.permute.xlu0 %1156
        %1158 = vrot.lane.b32.xlu0 %v693, 120
        %v1159 = vpop.permute.xlu0 %1158
        %v1161 = vsel %vm991, %v978, 0
        %v1163 = vsel %vm991, %v1157, 0
        %v1165 = vsel %vm991, %v1159, 0
        %1167 = vmatprep.subr.mxu0 0.0
        %1168 = vmatpush1.xpose.msra.mxu0 0.0
        %1169 = vmatprep.subr.mxu0 0.0
        %1170 = vmatpush1.xpose.msra.mxu0 0.0
        %1171 = vmatprep.subr.mxu0 0.0
        %1172 = vmatpush1.xpose.msra.mxu0 0.0
        %1173 = vmatprep.subr.mxu0 0.0
        %1174 = vmatpush1.xpose.msra.mxu0 0.0
        %1175 = vmatprep.subr.mxu0 0.0
        %1176 = vmatpush1.xpose.msra.mxu0 0.0
        %1177 = vmatprep.subr.mxu0 0.0
        %1178 = vmatpush1.xpose.msra.mxu0 0.0
        %1179 = vmatprep.subr.mxu0 0.0
        %1180 = vmatpush1.xpose.msra.mxu0 0.0
        %1181 = vmatprep.subr.mxu0 0.0
        %1182 = vmatpush1.xpose.msra.mxu0 0.0
        %1183 = vmatprep.subr.mxu0 0.0
        %1184 = vmatpush1.xpose.msra.mxu0 0.0
        %1185 = vmatprep.subr.mxu0 0.0
        %1186 = vmatpush1.xpose.msra.mxu0 0.0
        %1187 = vmatprep.subr.mxu0 0.0
        %1188 = vmatpush1.xpose.msra.mxu0 0.0
        %1189 = vmatprep.subr.mxu0 0.0
        %1190 = vmatpush1.xpose.msra.mxu0 0.0
        %1191 = vmatprep.subr.mxu0 0.0
        %1192 = vmatpush1.xpose.msra.mxu0 0.0
        %1193 = vmatprep.subr.mxu0 0.0
        %1194 = vmatpush1.xpose.msra.mxu0 0.0
        %1195 = vmatprep.subr.mxu0 0.0
        %1196 = vmatpush1.xpose.msra.mxu0 %v1165
        %1197 = vmatprep.subr.mxu0 0.0
        %1198 = vmatpush1.xpose.msra.mxu0 %v1163
        %1199 = vmatprep.subr.mxu0 0.0
        %1200 = vmatpush2.xpose.msra.mxu0 0.0
        %1201 = vmatprep.subr.mxu0 0.0
        %1202 = vmatpush2.xpose.msra.mxu0 0.0
        %1203 = vmatprep.subr.mxu0 0.0
        %1204 = vmatpush2.xpose.msra.mxu0 0.0
        %1205 = vmatprep.subr.mxu0 0.0
        %1206 = vmatpush2.xpose.msra.mxu0 0.0
        %1207 = vmatprep.subr.mxu0 0.0
        %1208 = vmatpush2.xpose.msra.mxu0 0.0
        %1209 = vmatprep.subr.mxu0 0.0
        %1210 = vmatpush2.xpose.msra.mxu0 0.0
        %1211 = vmatprep.subr.mxu0 0.0
        %1212 = vmatpush2.xpose.msra.mxu0 0.0
        %1213 = vmatprep.subr.mxu0 0.0
        %1214 = vmatpush2.xpose.msra.mxu0 0.0
        %1215 = vmatprep.subr.mxu0 0.0
        %1216 = vmatpush2.xpose.msra.mxu0 0.0
        %1217 = vmatprep.subr.mxu0 0.0
        %1218 = vmatpush2.xpose.msra.mxu0 0.0
        %1219 = vmatprep.subr.mxu0 0.0
        %1220 = vmatpush2.xpose.msra.mxu0 0.0
        %1221 = vmatprep.subr.mxu0 0.0
        %1222 = vmatpush2.xpose.msra.mxu0 0.0
        %1223 = vmatprep.subr.mxu0 0.0
        %1224 = vmatpush2.xpose.msra.mxu0 0.0
        %1225 = vmatprep.subr.mxu0 0.0
        %1226 = vmatpush2.xpose.msra.mxu0 0.0
        %1227 = vmatprep.subr.mxu0 0.0
        %1228 = vmatpush2.xpose.msra.mxu0 0.0
        %1229 = vmatprep.subr.mxu0 0.0
        %1230 = vmatpush2.xpose.msra.mxu0 0.0
        %1231 = vmatprep.mubr.f32.mxu0 0.0
        %1232 = vmatmul.mubr.f32.gmra.mxu0 %v1161
        %v1233 = vpop.f32.mrf.mxu0
        %v1234 = vadd.f32 0.0, %v1233
        %v1235 = vpop.f32.mrf.mxu0
        %1236 = vdwg.mxu0
        %v1237 = vsel %vm1071, %v1234, -inf
        %1238 = vmax.xlane.f32.xlu0 %v1237
        %v1239 = vpop.xlane.xlu0 %1238
        %v1240 = vsub.f32 %v1234, %v1239
        %v1241 = vmul.f32 %v1240, 1.442695
        %v1242 = vpow.pop %v1241
        %v1243 = vsel %vm1071, %v1242, 0.0
        %1244 = vadd.xlane.f32.xlu0 %v1243
        %v1245 = vpop.xlane.xlu0 %1244
        %v1246 = vrcp.pop %v1245
        %v1247 = vmul.f32 %v1242, %v1246
        %1250 = vrot.lane.b32.xlu0 %v774, 120
        %v1251 = vpop.permute.xlu0 %1250
        %1252 = vrot.lane.b32.xlu0 %v779, 120
        %v1253 = vpop.permute.xlu0 %1252
        %v1257 = vsel %vm1071, %v1247, 0
        %1259 = vmatprep.subr.mxu0 0.0
        %1260 = vmatpush1.msra.mxu0 0.0
        %1261 = vmatprep.subr.mxu0 0.0
        %1262 = vmatpush1.msra.mxu0 0.0
        %1263 = vmatprep.subr.mxu0 0.0
        %1264 = vmatpush1.msra.mxu0 0.0
        %1265 = vmatprep.subr.mxu0 0.0
        %1266 = vmatpush1.msra.mxu0 0.0
        %1267 = vmatprep.subr.mxu0 0.0
        %1268 = vmatpush1.msra.mxu0 0.0
        %1269 = vmatprep.subr.mxu0 0.0
        %1270 = vmatpush1.msra.mxu0 0.0
        %1271 = vmatprep.subr.mxu0 0.0
        %1272 = vmatpush1.msra.mxu0 0.0
        %1273 = vmatprep.subr.mxu0 0.0
        %1274 = vmatpush1.msra.mxu0 0.0
        %1275 = vmatprep.subr.mxu0 0.0
        %1276 = vmatpush1.msra.mxu0 0.0
        %1277 = vmatprep.subr.mxu0 0.0
        %1278 = vmatpush1.msra.mxu0 0.0
        %1279 = vmatprep.subr.mxu0 0.0
        %1280 = vmatpush1.msra.mxu0 0.0
        %1281 = vmatprep.subr.mxu0 0.0
        %1282 = vmatpush1.msra.mxu0 0.0
        %1283 = vmatprep.subr.mxu0 0.0
        %1284 = vmatpush1.msra.mxu0 0.0
        %1285 = vmatprep.subr.mxu0 0.0
        %1286 = vmatpush1.msra.mxu0 0.0
        %1287 = vmatprep.subr.mxu0 0.0
        %1288 = vmatpush1.msra.mxu0 %v1253
        %1289 = vmatprep.subr.mxu0 0.0
        %1290 = vmatpush1.msra.mxu0 %v1251
        %1291 = vmatprep.subr.mxu0 0.0
        %1292 = vmatpush2.msra.mxu0 0.0
        %1293 = vmatprep.subr.mxu0 0.0
        %1294 = vmatpush2.msra.mxu0 0.0
        %1295 = vmatprep.subr.mxu0 0.0
        %1296 = vmatpush2.msra.mxu0 0.0
        %1297 = vmatprep.subr.mxu0 0.0
        %1298 = vmatpush2.msra.mxu0 0.0
        %1299 = vmatprep.subr.mxu0 0.0
        %1300 = vmatpush2.msra.mxu0 0.0
        %1301 = vmatprep.subr.mxu0 0.0
        %1302 = vmatpush2.msra.mxu0 0.0
        %1303 = vmatprep.subr.mxu0 0.0
        %1304 = vmatpush2.msra.mxu0 0.0
        %1305 = vmatprep.subr.mxu0 0.0
        %1306 = vmatpush2.msra.mxu0 0.0
        %1307 = vmatprep.subr.mxu0 0.0
        %1308 = vmatpush2.msra.mxu0 0.0
        %1309 = vmatprep.subr.mxu0 0.0
        %1310 = vmatpush2.msra.mxu0 0.0
        %1311 = vmatprep.subr.mxu0 0.0
        %1312 = vmatpush2.msra.mxu0 0.0
        %1313 = vmatprep.subr.mxu0 0.0
        %1314 = vmatpush2.msra.mxu0 0.0
        %1315 = vmatprep.subr.mxu0 0.0
        %1316 = vmatpush2.msra.mxu0 0.0
        %1317 = vmatprep.subr.mxu0 0.0
        %1318 = vmatpush2.msra.mxu0 0.0
        %1319 = vmatprep.subr.mxu0 0.0
        %1320 = vmatpush2.msra.mxu0 0.0
        %1321 = vmatprep.subr.mxu0 0.0
        %1322 = vmatpush2.msra.mxu0 0.0
        %1323 = vmatprep.mubr.f32.mxu0 0.0
        %1324 = vmatmul.mubr.f32.gmra.mxu0 %v1257
        %v1325 = vpop.f32.mrf.mxu0
        %v1326 = vadd.f32 0.0, %v1325
        %v1327 = vpop.f32.mrf.mxu0
        %1328 = vdwg.mxu0
        %1329 = vrot.lane.b32.xlu0 %v688, 112
        %v1330 = vpop.permute.xlu0 %1329
        %1331 = vrot.lane.b32.xlu0 %v693, 112
        %v1332 = vpop.permute.xlu0 %1331
        %v1334 = vsel %vm991, %v983, 0
        %v1336 = vsel %vm991, %v1330, 0
        %v1338 = vsel %vm991, %v1332, 0
        %1340 = vmatprep.subr.mxu0 0.0
        %1341 = vmatpush1.xpose.msra.mxu0 0.0
        %1342 = vmatprep.subr.mxu0 0.0
        %1343 = vmatpush1.xpose.msra.mxu0 0.0
        %1344 = vmatprep.subr.mxu0 0.0
        %1345 = vmatpush1.xpose.msra.mxu0 0.0
        %1346 = vmatprep.subr.mxu0 0.0
        %1347 = vmatpush1.xpose.msra.mxu0 0.0
        %1348 = vmatprep.subr.mxu0 0.0
        %1349 = vmatpush1.xpose.msra.mxu0 0.0
        %1350 = vmatprep.subr.mxu0 0.0
        %1351 = vmatpush1.xpose.msra.mxu0 0.0
        %1352 = vmatprep.subr.mxu0 0.0
        %1353 = vmatpush1.xpose.msra.mxu0 0.0
        %1354 = vmatprep.subr.mxu0 0.0
        %1355 = vmatpush1.xpose.msra.mxu0 0.0
        %1356 = vmatprep.subr.mxu0 0.0
        %1357 = vmatpush1.xpose.msra.mxu0 0.0
        %1358 = vmatprep.subr.mxu0 0.0
        %1359 = vmatpush1.xpose.msra.mxu0 0.0
        %1360 = vmatprep.subr.mxu0 0.0
        %1361 = vmatpush1.xpose.msra.mxu0 0.0
        %1362 = vmatprep.subr.mxu0 0.0
        %1363 = vmatpush1.xpose.msra.mxu0 0.0
        %1364 = vmatprep.subr.mxu0 0.0
        %1365 = vmatpush1.xpose.msra.mxu0 0.0
        %1366 = vmatprep.subr.mxu0 0.0
        %1367 = vmatpush1.xpose.msra.mxu0 0.0
        %1368 = vmatprep.subr.mxu0 0.0
        %1369 = vmatpush1.xpose.msra.mxu0 %v1338
        %1370 = vmatprep.subr.mxu0 0.0
        %1371 = vmatpush1.xpose.msra.mxu0 %v1336
        %1372 = vmatprep.subr.mxu0 0.0
        %1373 = vmatpush2.xpose.msra.mxu0 0.0
        %1374 = vmatprep.subr.mxu0 0.0
        %1375 = vmatpush2.xpose.msra.mxu0 0.0
        %1376 = vmatprep.subr.mxu0 0.0
        %1377 = vmatpush2.xpose.msra.mxu0 0.0
        %1378 = vmatprep.subr.mxu0 0.0
        %1379 = vmatpush2.xpose.msra.mxu0 0.0
        %1380 = vmatprep.subr.mxu0 0.0
        %1381 = vmatpush2.xpose.msra.mxu0 0.0
        %1382 = vmatprep.subr.mxu0 0.0
        %1383 = vmatpush2.xpose.msra.mxu0 0.0
        %1384 = vmatprep.subr.mxu0 0.0
        %1385 = vmatpush2.xpose.msra.mxu0 0.0
        %1386 = vmatprep.subr.mxu0 0.0
        %1387 = vmatpush2.xpose.msra.mxu0 0.0
        %1388 = vmatprep.subr.mxu0 0.0
        %1389 = vmatpush2.xpose.msra.mxu0 0.0
        %1390 = vmatprep.subr.mxu0 0.0
        %1391 = vmatpush2.xpose.msra.mxu0 0.0
        %1392 = vmatprep.subr.mxu0 0.0
        %1393 = vmatpush2.xpose.msra.mxu0 0.0
        %1394 = vmatprep.subr.mxu0 0.0
        %1395 = vmatpush2.xpose.msra.mxu0 0.0
        %1396 = vmatprep.subr.mxu0 0.0
        %1397 = vmatpush2.xpose.msra.mxu0 0.0
        %1398 = vmatprep.subr.mxu0 0.0
        %1399 = vmatpush2.xpose.msra.mxu0 0.0
        %1400 = vmatprep.subr.mxu0 0.0
        %1401 = vmatpush2.xpose.msra.mxu0 0.0
        %1402 = vmatprep.subr.mxu0 0.0
        %1403 = vmatpush2.xpose.msra.mxu0 0.0
        %1404 = vmatprep.mubr.f32.mxu0 0.0
        %1405 = vmatmul.mubr.f32.gmra.mxu0 %v1334
        %v1406 = vpop.f32.mrf.mxu0
        %v1407 = vadd.f32 0.0, %v1406
        %v1408 = vpop.f32.mrf.mxu0
        %1409 = vdwg.mxu0
        %v1410 = vsel %vm1071, %v1407, -inf
        %1411 = vmax.xlane.f32.xlu0 %v1410
        %v1412 = vpop.xlane.xlu0 %1411
        %v1413 = vsub.f32 %v1407, %v1412
        %v1414 = vmul.f32 %v1413, 1.442695
        %v1415 = vpow.pop %v1414
        %v1416 = vsel %vm1071, %v1415, 0.0
        %1417 = vadd.xlane.f32.xlu0 %v1416
        %v1418 = vpop.xlane.xlu0 %1417
        %v1419 = vrcp.pop %v1418
        %v1420 = vmul.f32 %v1415, %v1419
        %1421 = vrot.lane.b32.xlu0 %v774, 112
        %v1422 = vpop.permute.xlu0 %1421
        %1423 = vrot.lane.b32.xlu0 %v779, 112
        %v1424 = vpop.permute.xlu0 %1423
        %v1428 = vsel %vm1071, %v1420, 0
        %1430 = vmatprep.subr.mxu0 0.0
        %1431 = vmatpush1.msra.mxu0 0.0
        %1432 = vmatprep.subr.mxu0 0.0
        %1433 = vmatpush1.msra.mxu0 0.0
        %1434 = vmatprep.subr.mxu0 0.0
        %1435 = vmatpush1.msra.mxu0 0.0
        %1436 = vmatprep.subr.mxu0 0.0
        %1437 = vmatpush1.msra.mxu0 0.0
        %1438 = vmatprep.subr.mxu0 0.0
        %1439 = vmatpush1.msra.mxu0 0.0
        %1440 = vmatprep.subr.mxu0 0.0
        %1441 = vmatpush1.msra.mxu0 0.0
        %1442 = vmatprep.subr.mxu0 0.0
        %1443 = vmatpush1.msra.mxu0 0.0
        %1444 = vmatprep.subr.mxu0 0.0
        %1445 = vmatpush1.msra.mxu0 0.0
        %1446 = vmatprep.subr.mxu0 0.0
        %1447 = vmatpush1.msra.mxu0 0.0
        %1448 = vmatprep.subr.mxu0 0.0
        %1449 = vmatpush1.msra.mxu0 0.0
        %1450 = vmatprep.subr.mxu0 0.0
        %1451 = vmatpush1.msra.mxu0 0.0
        %1452 = vmatprep.subr.mxu0 0.0
        %1453 = vmatpush1.msra.mxu0 0.0
        %1454 = vmatprep.subr.mxu0 0.0
        %1455 = vmatpush1.msra.mxu0 0.0
        %1456 = vmatprep.subr.mxu0 0.0
        %1457 = vmatpush1.msra.mxu0 0.0
        %1458 = vmatprep.subr.mxu0 0.0
        %1459 = vmatpush1.msra.mxu0 %v1424
        %1460 = vmatprep.subr.mxu0 0.0
        %1461 = vmatpush1.msra.mxu0 %v1422
        %1462 = vmatprep.subr.mxu0 0.0
        %1463 = vmatpush2.msra.mxu0 0.0
        %1464 = vmatprep.subr.mxu0 0.0
        %1465 = vmatpush2.msra.mxu0 0.0
        %1466 = vmatprep.subr.mxu0 0.0
        %1467 = vmatpush2.msra.mxu0 0.0
        %1468 = vmatprep.subr.mxu0 0.0
        %1469 = vmatpush2.msra.mxu0 0.0
        %1470 = vmatprep.subr.mxu0 0.0
        %1471 = vmatpush2.msra.mxu0 0.0
        %1472 = vmatprep.subr.mxu0 0.0
        %1473 = vmatpush2.msra.mxu0 0.0
        %1474 = vmatprep.subr.mxu0 0.0
        %1475 = vmatpush2.msra.mxu0 0.0
        %1476 = vmatprep.subr.mxu0 0.0
        %1477 = vmatpush2.msra.mxu0 0.0
        %1478 = vmatprep.subr.mxu0 0.0
        %1479 = vmatpush2.msra.mxu0 0.0
        %1480 = vmatprep.subr.mxu0 0.0
        %1481 = vmatpush2.msra.mxu0 0.0
        %1482 = vmatprep.subr.mxu0 0.0
        %1483 = vmatpush2.msra.mxu0 0.0
        %1484 = vmatprep.subr.mxu0 0.0
        %1485 = vmatpush2.msra.mxu0 0.0
        %1486 = vmatprep.subr.mxu0 0.0
        %1487 = vmatpush2.msra.mxu0 0.0
        %1488 = vmatprep.subr.mxu0 0.0
        %1489 = vmatpush2.msra.mxu0 0.0
        %1490 = vmatprep.subr.mxu0 0.0
        %1491 = vmatpush2.msra.mxu0 0.0
        %1492 = vmatprep.subr.mxu0 0.0
        %1493 = vmatpush2.msra.mxu0 0.0
        %1494 = vmatprep.mubr.f32.mxu0 0.0
        %1495 = vmatmul.mubr.f32.gmra.mxu0 %v1428
        %v1496 = vpop.f32.mrf.mxu0
        %v1497 = vadd.f32 0.0, %v1496
        %v1498 = vpop.f32.mrf.mxu0
        %1499 = vdwg.mxu0
        %1500 = vrot.lane.b32.xlu0 %v688, 104
        %v1501 = vpop.permute.xlu0 %1500
        %1502 = vrot.lane.b32.xlu0 %v693, 104
        %v1503 = vpop.permute.xlu0 %1502
        %v1505 = vsel %vm991, %v988, 0
        %v1507 = vsel %vm991, %v1501, 0
        %v1509 = vsel %vm991, %v1503, 0
        %1511 = vmatprep.subr.mxu0 0.0
        %1512 = vmatpush1.xpose.msra.mxu0 0.0
        %1513 = vmatprep.subr.mxu0 0.0
        %1514 = vmatpush1.xpose.msra.mxu0 0.0
        %1515 = vmatprep.subr.mxu0 0.0
        %1516 = vmatpush1.xpose.msra.mxu0 0.0
        %1517 = vmatprep.subr.mxu0 0.0
        %1518 = vmatpush1.xpose.msra.mxu0 0.0
        %1519 = vmatprep.subr.mxu0 0.0
        %1520 = vmatpush1.xpose.msra.mxu0 0.0
        %1521 = vmatprep.subr.mxu0 0.0
        %1522 = vmatpush1.xpose.msra.mxu0 0.0
        %1523 = vmatprep.subr.mxu0 0.0
        %1524 = vmatpush1.xpose.msra.mxu0 0.0
        %1525 = vmatprep.subr.mxu0 0.0
        %1526 = vmatpush1.xpose.msra.mxu0 0.0
        %1527 = vmatprep.subr.mxu0 0.0
        %1528 = vmatpush1.xpose.msra.mxu0 0.0
        %1529 = vmatprep.subr.mxu0 0.0
        %1530 = vmatpush1.xpose.msra.mxu0 0.0
        %1531 = vmatprep.subr.mxu0 0.0
        %1532 = vmatpush1.xpose.msra.mxu0 0.0
        %1533 = vmatprep.subr.mxu0 0.0
        %1534 = vmatpush1.xpose.msra.mxu0 0.0
        %1535 = vmatprep.subr.mxu0 0.0
        %1536 = vmatpush1.xpose.msra.mxu0 0.0
        %1537 = vmatprep.subr.mxu0 0.0
        %1538 = vmatpush1.xpose.msra.mxu0 0.0
        %1539 = vmatprep.subr.mxu0 0.0
        %1540 = vmatpush1.xpose.msra.mxu0 %v1509
        %1541 = vmatprep.subr.mxu0 0.0
        %1542 = vmatpush1.xpose.msra.mxu0 %v1507
        %1543 = vmatprep.subr.mxu0 0.0
        %1544 = vmatpush2.xpose.msra.mxu0 0.0
        %1545 = vmatprep.subr.mxu0 0.0
        %1546 = vmatpush2.xpose.msra.mxu0 0.0
        %1547 = vmatprep.subr.mxu0 0.0
        %1548 = vmatpush2.xpose.msra.mxu0 0.0
        %1549 = vmatprep.subr.mxu0 0.0
        %1550 = vmatpush2.xpose.msra.mxu0 0.0
        %1551 = vmatprep.subr.mxu0 0.0
        %1552 = vmatpush2.xpose.msra.mxu0 0.0
        %1553 = vmatprep.subr.mxu0 0.0
        %1554 = vmatpush2.xpose.msra.mxu0 0.0
        %1555 = vmatprep.subr.mxu0 0.0
        %1556 = vmatpush2.xpose.msra.mxu0 0.0
        %1557 = vmatprep.subr.mxu0 0.0
        %1558 = vmatpush2.xpose.msra.mxu0 0.0
        %1559 = vmatprep.subr.mxu0 0.0
        %1560 = vmatpush2.xpose.msra.mxu0 0.0
        %1561 = vmatprep.subr.mxu0 0.0
        %1562 = vmatpush2.xpose.msra.mxu0 0.0
        %1563 = vmatprep.subr.mxu0 0.0
        %1564 = vmatpush2.xpose.msra.mxu0 0.0
        %1565 = vmatprep.subr.mxu0 0.0
        %1566 = vmatpush2.xpose.msra.mxu0 0.0
        %1567 = vmatprep.subr.mxu0 0.0
        %1568 = vmatpush2.xpose.msra.mxu0 0.0
        %1569 = vmatprep.subr.mxu0 0.0
        %1570 = vmatpush2.xpose.msra.mxu0 0.0
        %1571 = vmatprep.subr.mxu0 0.0
        %1572 = vmatpush2.xpose.msra.mxu0 0.0
        %1573 = vmatprep.subr.mxu0 0.0
        %1574 = vmatpush2.xpose.msra.mxu0 0.0
        %1575 = vmatprep.mubr.f32.mxu0 0.0
        %1576 = vmatmul.mubr.f32.gmra.mxu0 %v1505
        %v1577 = vpop.f32.mrf.mxu0
        %v1578 = vadd.f32 0.0, %v1577
        %v1579 = vpop.f32.mrf.mxu0
        %1580 = vdwg.mxu0
        %v1581 = vsel %vm1071, %v1578, -inf
        %1582 = vmax.xlane.f32.xlu0 %v1581
        %v1583 = vpop.xlane.xlu0 %1582
        %v1584 = vsub.f32 %v1578, %v1583
        %v1585 = vmul.f32 %v1584, 1.442695
        %v1586 = vpow.pop %v1585
        %v1587 = vsel %vm1071, %v1586, 0.0
        %1588 = vadd.xlane.f32.xlu0 %v1587
        %v1589 = vpop.xlane.xlu0 %1588
        %v1590 = vrcp.pop %v1589
        %v1591 = vmul.f32 %v1586, %v1590
        %1592 = vrot.lane.b32.xlu0 %v774, 104
        %v1593 = vpop.permute.xlu0 %1592
        %1594 = vrot.lane.b32.xlu0 %v779, 104
        %v1595 = vpop.permute.xlu0 %1594
        %v1599 = vsel %vm1071, %v1591, 0
        %1601 = vmatprep.subr.mxu0 0.0
        %1602 = vmatpush1.msra.mxu0 0.0
        %1603 = vmatprep.subr.mxu0 0.0
        %1604 = vmatpush1.msra.mxu0 0.0
        %1605 = vmatprep.subr.mxu0 0.0
        %1606 = vmatpush1.msra.mxu0 0.0
        %1607 = vmatprep.subr.mxu0 0.0
        %1608 = vmatpush1.msra.mxu0 0.0
        %1609 = vmatprep.subr.mxu0 0.0
        %1610 = vmatpush1.msra.mxu0 0.0
        %1611 = vmatprep.subr.mxu0 0.0
        %1612 = vmatpush1.msra.mxu0 0.0
        %1613 = vmatprep.subr.mxu0 0.0
        %1614 = vmatpush1.msra.mxu0 0.0
        %1615 = vmatprep.subr.mxu0 0.0
        %1616 = vmatpush1.msra.mxu0 0.0
        %1617 = vmatprep.subr.mxu0 0.0
        %1618 = vmatpush1.msra.mxu0 0.0
        %1619 = vmatprep.subr.mxu0 0.0
        %1620 = vmatpush1.msra.mxu0 0.0
        %1621 = vmatprep.subr.mxu0 0.0
        %1622 = vmatpush1.msra.mxu0 0.0
        %1623 = vmatprep.subr.mxu0 0.0
        %1624 = vmatpush1.msra.mxu0 0.0
        %1625 = vmatprep.subr.mxu0 0.0
        %1626 = vmatpush1.msra.mxu0 0.0
        %1627 = vmatprep.subr.mxu0 0.0
        %1628 = vmatpush1.msra.mxu0 0.0
        %1629 = vmatprep.subr.mxu0 0.0
        %1630 = vmatpush1.msra.mxu0 %v1595
        %1631 = vmatprep.subr.mxu0 0.0
        %1632 = vmatpush1.msra.mxu0 %v1593
        %1633 = vmatprep.subr.mxu0 0.0
        %1634 = vmatpush2.msra.mxu0 0.0
        %1635 = vmatprep.subr.mxu0 0.0
        %1636 = vmatpush2.msra.mxu0 0.0
        %1637 = vmatprep.subr.mxu0 0.0
        %1638 = vmatpush2.msra.mxu0 0.0
        %1639 = vmatprep.subr.mxu0 0.0
        %1640 = vmatpush2.msra.mxu0 0.0
        %1641 = vmatprep.subr.mxu0 0.0
        %1642 = vmatpush2.msra.mxu0 0.0
        %1643 = vmatprep.subr.mxu0 0.0
        %1644 = vmatpush2.msra.mxu0 0.0
        %1645 = vmatprep.subr.mxu0 0.0
        %1646 = vmatpush2.msra.mxu0 0.0
        %1647 = vmatprep.subr.mxu0 0.0
        %1648 = vmatpush2.msra.mxu0 0.0
        %1649 = vmatprep.subr.mxu0 0.0
        %1650 = vmatpush2.msra.mxu0 0.0
        %1651 = vmatprep.subr.mxu0 0.0
        %1652 = vmatpush2.msra.mxu0 0.0
        %1653 = vmatprep.subr.mxu0 0.0
        %1654 = vmatpush2.msra.mxu0 0.0
        %1655 = vmatprep.subr.mxu0 0.0
        %1656 = vmatpush2.msra.mxu0 0.0
        %1657 = vmatprep.subr.mxu0 0.0
        %1658 = vmatpush2.msra.mxu0 0.0
        %1659 = vmatprep.subr.mxu0 0.0
        %1660 = vmatpush2.msra.mxu0 0.0
        %1661 = vmatprep.subr.mxu0 0.0
        %1662 = vmatpush2.msra.mxu0 0.0
        %1663 = vmatprep.subr.mxu0 0.0
        %1664 = vmatpush2.msra.mxu0 0.0
        %1665 = vmatprep.mubr.f32.mxu0 0.0
        %1666 = vmatmul.mubr.f32.gmra.mxu0 %v1599
        %v1667 = vpop.f32.mrf.mxu0
        %v1668 = vadd.f32 0.0, %v1667
        %v1669 = vpop.f32.mrf.mxu0
        %1670 = vdwg.mxu0
        %1672 = vrot.lane.b32.xlu0 %v1326, 8
        %v1673 = vpop.permute.xlu0 %1672
        %1676 = vrot.lane.b32.xlu0 %v1497, 16
        %v1677 = vpop.permute.xlu0 %1676
        %1680 = vrot.lane.b32.xlu0 %v1668, 24
        %v1681 = vpop.permute.xlu0 %1680
        %v1683 = vsel %vm991, %v1153, %v1673
        %v1684 = vsel %vm1071, %v1683, %v1677
        %vm1685 = vcmask 195584
        %v1686 = vsel %vm1685, %v1684, %v1681
        %v1687 = vld [vmem:[#allocation6] sm:$0xff]
        %v1688 = vld [vmem:[#allocation6 + $0x8] sm:$0xff]
        %v1689 = vld [vmem:[#allocation6 + $0x10] sm:$0xff]
        %v1690 = vld [vmem:[#allocation6 + $0x18] sm:$0xff]
        %v1692 = vsel %vm614, %v1687, 0
        %v1695 = vsel %vm614, %v1688, 0
        %v1698 = vsel %vm614, %v1689, 0
        %v1701 = vsel %vm614, %v1690, 0
        %v1704 = vsel %vm614, %v1686, 0
        %1706 = vmatprep.subr.mxu0 0.0
        %1707 = vmatpush1.xpose.msra.mxu0 0.0
        %1708 = vmatprep.subr.mxu0 0.0
        %1709 = vmatpush1.xpose.msra.mxu0 0.0
        %1710 = vmatprep.subr.mxu0 0.0
        %1711 = vmatpush1.xpose.msra.mxu0 0.0
        %1712 = vmatprep.subr.mxu0 0.0
        %1713 = vmatpush1.xpose.msra.mxu0 0.0
        %1714 = vmatprep.subr.mxu0 0.0
        %1715 = vmatpush1.xpose.msra.mxu0 0.0
        %1716 = vmatprep.subr.mxu0 0.0
        %1717 = vmatpush1.xpose.msra.mxu0 0.0
        %1718 = vmatprep.subr.mxu0 0.0
        %1719 = vmatpush1.xpose.msra.mxu0 0.0
        %1720 = vmatprep.subr.mxu0 0.0
        %1721 = vmatpush1.xpose.msra.mxu0 0.0
        %1722 = vmatprep.subr.mxu0 0.0
        %1723 = vmatpush1.xpose.msra.mxu0 0.0
        %1724 = vmatprep.subr.mxu0 0.0
        %1725 = vmatpush1.xpose.msra.mxu0 0.0
        %1726 = vmatprep.subr.mxu0 0.0
        %1727 = vmatpush1.xpose.msra.mxu0 0.0
        %1728 = vmatprep.subr.mxu0 0.0
        %1729 = vmatpush1.xpose.msra.mxu0 0.0
        %1730 = vmatprep.subr.mxu0 0.0
        %1731 = vmatpush1.xpose.msra.mxu0 0.0
        %1732 = vmatprep.subr.mxu0 0.0
        %1733 = vmatpush1.xpose.msra.mxu0 0.0
        %1734 = vmatprep.subr.mxu0 0.0
        %1735 = vmatpush1.xpose.msra.mxu0 0.0
        %1736 = vmatprep.subr.mxu0 0.0
        %1737 = vmatpush1.xpose.msra.mxu0 %v1704
        %1738 = vmatprep.subr.mxu0 0.0
        %1739 = vmatpush2.xpose.msra.mxu0 0.0
        %1740 = vmatprep.subr.mxu0 0.0
        %1741 = vmatpush2.xpose.msra.mxu0 0.0
        %1742 = vmatprep.subr.mxu0 0.0
        %1743 = vmatpush2.xpose.msra.mxu0 0.0
        %1744 = vmatprep.subr.mxu0 0.0
        %1745 = vmatpush2.xpose.msra.mxu0 0.0
        %1746 = vmatprep.subr.mxu0 0.0
        %1747 = vmatpush2.xpose.msra.mxu0 0.0
        %1748 = vmatprep.subr.mxu0 0.0
        %1749 = vmatpush2.xpose.msra.mxu0 0.0
        %1750 = vmatprep.subr.mxu0 0.0
        %1751 = vmatpush2.xpose.msra.mxu0 0.0
        %1752 = vmatprep.subr.mxu0 0.0
        %1753 = vmatpush2.xpose.msra.mxu0 0.0
        %1754 = vmatprep.subr.mxu0 0.0
        %1755 = vmatpush2.xpose.msra.mxu0 0.0
        %1756 = vmatprep.subr.mxu0 0.0
        %1757 = vmatpush2.xpose.msra.mxu0 0.0
        %1758 = vmatprep.subr.mxu0 0.0
        %1759 = vmatpush2.xpose.msra.mxu0 0.0
        %1760 = vmatprep.subr.mxu0 0.0
        %1761 = vmatpush2.xpose.msra.mxu0 0.0
        %1762 = vmatprep.subr.mxu0 0.0
        %1763 = vmatpush2.xpose.msra.mxu0 0.0
        %1764 = vmatprep.subr.mxu0 0.0
        %1765 = vmatpush2.xpose.msra.mxu0 0.0
        %1766 = vmatprep.subr.mxu0 0.0
        %1767 = vmatpush2.xpose.msra.mxu0 0.0
        %1768 = vmatprep.subr.mxu0 0.0
        %1769 = vmatpush2.xpose.msra.mxu0 0.0
        %1770 = vmatprep.mubr.f32.mxu0 0.0
        %1771 = vmatmul.mubr.f32.gmra.mxu0 %v1692
        %v1772 = vpop.f32.mrf.mxu0
        %v1773 = vadd.f32 0.0, %v1772
        %v1774 = vpop.f32.mrf.mxu0
        %1775 = vmatprep.mubr.f32.mxu0 0.0
        %1776 = vmatmul.mubr.f32.gmra.mxu0 %v1695
        %v1777 = vpop.f32.mrf.mxu0
        %v1778 = vadd.f32 0.0, %v1777
        %v1779 = vpop.f32.mrf.mxu0
        %1780 = vmatprep.mubr.f32.mxu0 0.0
        %1781 = vmatmul.mubr.f32.gmra.mxu0 %v1698
        %v1782 = vpop.f32.mrf.mxu0
        %v1783 = vadd.f32 0.0, %v1782
        %v1784 = vpop.f32.mrf.mxu0
        %1785 = vmatprep.mubr.f32.mxu0 0.0
        %1786 = vmatmul.mubr.f32.gmra.mxu0 %v1701
        %v1787 = vpop.f32.mrf.mxu0
        %v1788 = vadd.f32 0.0, %v1787
        %v1789 = vpop.f32.mrf.mxu0
        %1790 = vdwg.mxu0
        %1792 = vrot.lane.b32.xlu0 %v1778, 8
        %v1793 = vpop.permute.xlu0 %1792
        %1796 = vrot.lane.b32.xlu0 %v1783, 16
        %v1797 = vpop.permute.xlu0 %1796
        %1800 = vrot.lane.b32.xlu0 %v1788, 24
        %v1801 = vpop.permute.xlu0 %1800
        %v1803 = vsel %vm991, %v1773, %v1793
        %v1804 = vsel %vm1071, %v1803, %v1797
        %v1805 = vsel %vm1685, %v1804, %v1801
        %1807 = vrot.lane.b32.xlu0 %v877, 120
        %v1808 = vpop.permute.xlu0 %1807
        %1810 = vrot.lane.b32.xlu0 %v877, 112
        %v1811 = vpop.permute.xlu0 %1810
        %1813 = vrot.lane.b32.xlu0 %v877, 104
        %v1814 = vpop.permute.xlu0 %1813
        %1816 = vmatprep.subr.mxu0 0.0
        %1817 = vmatpush1.msra.mxu0 0.0
        %1818 = vmatprep.subr.mxu0 0.0
        %1819 = vmatpush1.msra.mxu0 0.0
        %1820 = vmatprep.subr.mxu0 0.0
        %1821 = vmatpush1.msra.mxu0 0.0
        %1822 = vmatprep.subr.mxu0 0.0
        %1823 = vmatpush1.msra.mxu0 0.0
        %1824 = vmatprep.subr.mxu0 0.0
        %1825 = vmatpush1.msra.mxu0 0.0
        %1826 = vmatprep.subr.mxu0 0.0
        %1827 = vmatpush1.msra.mxu0 0.0
        %1828 = vmatprep.subr.mxu0 0.0
        %1829 = vmatpush1.msra.mxu0 0.0
        %1830 = vmatprep.subr.mxu0 0.0
        %1831 = vmatpush1.msra.mxu0 0.0
        %1832 = vmatprep.subr.mxu0 0.0
        %1833 = vmatpush1.msra.mxu0 0.0
        %1834 = vmatprep.subr.mxu0 0.0
        %1835 = vmatpush1.msra.mxu0 0.0
        %1836 = vmatprep.subr.mxu0 0.0
        %1837 = vmatpush1.msra.mxu0 0.0
        %1838 = vmatprep.subr.mxu0 0.0
        %1839 = vmatpush1.msra.mxu0 0.0
        %1840 = vmatprep.subr.mxu0 0.0
        %1841 = vmatpush1.msra.mxu0 %v1814
        %1842 = vmatprep.subr.mxu0 0.0
        %1843 = vmatpush1.msra.mxu0 %v1811
        %1844 = vmatprep.subr.mxu0 0.0
        %1845 = vmatpush1.msra.mxu0 %v1808
        %1846 = vmatprep.subr.mxu0 0.0
        %1847 = vmatpush1.msra.mxu0 %v877
        %1848 = vmatprep.subr.mxu0 0.0
        %1849 = vmatpush2.msra.mxu0 0.0
        %1850 = vmatprep.subr.mxu0 0.0
        %1851 = vmatpush2.msra.mxu0 0.0
        %1852 = vmatprep.subr.mxu0 0.0
        %1853 = vmatpush2.msra.mxu0 0.0
        %1854 = vmatprep.subr.mxu0 0.0
        %1855 = vmatpush2.msra.mxu0 0.0
        %1856 = vmatprep.subr.mxu0 0.0
        %1857 = vmatpush2.msra.mxu0 0.0
        %1858 = vmatprep.subr.mxu0 0.0
        %1859 = vmatpush2.msra.mxu0 0.0
        %1860 = vmatprep.subr.mxu0 0.0
        %1861 = vmatpush2.msra.mxu0 0.0
        %1862 = vmatprep.subr.mxu0 0.0
        %1863 = vmatpush2.msra.mxu0 0.0
        %1864 = vmatprep.subr.mxu0 0.0
        %1865 = vmatpush2.msra.mxu0 0.0
        %1866 = vmatprep.subr.mxu0 0.0
        %1867 = vmatpush2.msra.mxu0 0.0
        %1868 = vmatprep.subr.mxu0 0.0
        %1869 = vmatpush2.msra.mxu0 0.0
        %1870 = vmatprep.subr.mxu0 0.0
        %1871 = vmatpush2.msra.mxu0 0.0
        %1872 = vmatprep.subr.mxu0 0.0
        %1873 = vmatpush2.msra.mxu0 0.0
        %1874 = vmatprep.subr.mxu0 0.0
        %1875 = vmatpush2.msra.mxu0 0.0
        %1876 = vmatprep.subr.mxu0 0.0
        %1877 = vmatpush2.msra.mxu0 0.0
        %1878 = vmatprep.subr.mxu0 0.0
        %1879 = vmatpush2.msra.mxu0 0.0
        %1880 = vmatprep.mubr.f32.mxu0 0.0
        %1881 = vmatmul.mubr.f32.gmra.mxu0 %v895
        %v1882 = vpop.f32.mrf.mxu0
        %v1883 = vadd.f32 0.0, %v1882
        %v1884 = vpop.f32.mrf.mxu0
        %1885 = vmatprep.mubr.f32.mxu0 0.0
        %1886 = vmatmul.mubr.f32.gmra.mxu0 %v898
        %v1887 = vpop.f32.mrf.mxu0
        %v1888 = vadd.f32 0.0, %v1887
        %v1889 = vpop.f32.mrf.mxu0
        %1890 = vmatprep.mubr.f32.mxu0 0.0
        %1891 = vmatmul.mubr.f32.gmra.mxu0 %v901
        %v1892 = vpop.f32.mrf.mxu0
        %v1893 = vadd.f32 0.0, %v1892
        %v1894 = vpop.f32.mrf.mxu0
        %1895 = vmatprep.mubr.f32.mxu0 0.0
        %1896 = vmatmul.mubr.f32.gmra.mxu0 %v904
        %v1897 = vpop.f32.mrf.mxu0
        %v1898 = vadd.f32 0.0, %v1897
        %v1899 = vpop.f32.mrf.mxu0
        %1900 = vdwg.mxu0
        %v1902 = vsel %vm991, %v1883, 0
        %1904 = vmatprep.subr.mxu0 0.0
        %1905 = vmatpush1.xpose.msra.mxu0 0.0
        %1906 = vmatprep.subr.mxu0 0.0
        %1907 = vmatpush1.xpose.msra.mxu0 0.0
        %1908 = vmatprep.subr.mxu0 0.0
        %1909 = vmatpush1.xpose.msra.mxu0 0.0
        %1910 = vmatprep.subr.mxu0 0.0
        %1911 = vmatpush1.xpose.msra.mxu0 0.0
        %1912 = vmatprep.subr.mxu0 0.0
        %1913 = vmatpush1.xpose.msra.mxu0 0.0
        %1914 = vmatprep.subr.mxu0 0.0
        %1915 = vmatpush1.xpose.msra.mxu0 0.0
        %1916 = vmatprep.subr.mxu0 0.0
        %1917 = vmatpush1.xpose.msra.mxu0 0.0
        %1918 = vmatprep.subr.mxu0 0.0
        %1919 = vmatpush1.xpose.msra.mxu0 0.0
        %1920 = vmatprep.subr.mxu0 0.0
        %1921 = vmatpush1.xpose.msra.mxu0 0.0
        %1922 = vmatprep.subr.mxu0 0.0
        %1923 = vmatpush1.xpose.msra.mxu0 0.0
        %1924 = vmatprep.subr.mxu0 0.0
        %1925 = vmatpush1.xpose.msra.mxu0 0.0
        %1926 = vmatprep.subr.mxu0 0.0
        %1927 = vmatpush1.xpose.msra.mxu0 0.0
        %1928 = vmatprep.subr.mxu0 0.0
        %1929 = vmatpush1.xpose.msra.mxu0 0.0
        %1930 = vmatprep.subr.mxu0 0.0
        %1931 = vmatpush1.xpose.msra.mxu0 0.0
        %1932 = vmatprep.subr.mxu0 0.0
        %1933 = vmatpush1.xpose.msra.mxu0 %v999
        %1934 = vmatprep.subr.mxu0 0.0
        %1935 = vmatpush1.xpose.msra.mxu0 %v996
        %1936 = vmatprep.subr.mxu0 0.0
        %1937 = vmatpush2.xpose.msra.mxu0 0.0
        %1938 = vmatprep.subr.mxu0 0.0
        %1939 = vmatpush2.xpose.msra.mxu0 0.0
        %1940 = vmatprep.subr.mxu0 0.0
        %1941 = vmatpush2.xpose.msra.mxu0 0.0
        %1942 = vmatprep.subr.mxu0 0.0
        %1943 = vmatpush2.xpose.msra.mxu0 0.0
        %1944 = vmatprep.subr.mxu0 0.0
        %1945 = vmatpush2.xpose.msra.mxu0 0.0
        %1946 = vmatprep.subr.mxu0 0.0
        %1947 = vmatpush2.xpose.msra.mxu0 0.0
        %1948 = vmatprep.subr.mxu0 0.0
        %1949 = vmatpush2.xpose.msra.mxu0 0.0
        %1950 = vmatprep.subr.mxu0 0.0
        %1951 = vmatpush2.xpose.msra.mxu0 0.0
        %1952 = vmatprep.subr.mxu0 0.0
        %1953 = vmatpush2.xpose.msra.mxu0 0.0
        %1954 = vmatprep.subr.mxu0 0.0
        %1955 = vmatpush2.xpose.msra.mxu0 0.0
        %1956 = vmatprep.subr.mxu0 0.0
        %1957 = vmatpush2.xpose.msra.mxu0 0.0
        %1958 = vmatprep.subr.mxu0 0.0
        %1959 = vmatpush2.xpose.msra.mxu0 0.0
        %1960 = vmatprep.subr.mxu0 0.0
        %1961 = vmatpush2.xpose.msra.mxu0 0.0
        %1962 = vmatprep.subr.mxu0 0.0
        %1963 = vmatpush2.xpose.msra.mxu0 0.0
        %1964 = vmatprep.subr.mxu0 0.0
        %1965 = vmatpush2.xpose.msra.mxu0 0.0
        %1966 = vmatprep.subr.mxu0 0.0
        %1967 = vmatpush2.xpose.msra.mxu0 0.0
        %1968 = vmatprep.mubr.f32.mxu0 0.0
        %1969 = vmatmul.mubr.f32.gmra.mxu0 %v1902
        %v1970 = vpop.f32.mrf.mxu0
        %v1971 = vadd.f32 0.0, %v1970
        %v1972 = vpop.f32.mrf.mxu0
        %1973 = vdwg.mxu0
        %v1974 = vsel %vm1071, %v1971, -inf
        %1975 = vmax.xlane.f32.xlu0 %v1974
        %v1976 = vpop.xlane.xlu0 %1975
        %v1977 = vsub.f32 %v1971, %v1976
        %v1978 = vmul.f32 %v1977, 1.442695
        %v1979 = vpow.pop %v1978
        %v1980 = vsel %vm1071, %v1979, 0.0
        %1981 = vadd.xlane.f32.xlu0 %v1980
        %v1982 = vpop.xlane.xlu0 %1981
        %v1983 = vrcp.pop %v1982
        %v1984 = vmul.f32 %v1979, %v1983
        %v1986 = vsel %vm1071, %v1984, 0
        %1988 = vmatprep.subr.mxu0 0.0
        %1989 = vmatpush1.msra.mxu0 0.0
        %1990 = vmatprep.subr.mxu0 0.0
        %1991 = vmatpush1.msra.mxu0 0.0
        %1992 = vmatprep.subr.mxu0 0.0
        %1993 = vmatpush1.msra.mxu0 0.0
        %1994 = vmatprep.subr.mxu0 0.0
        %1995 = vmatpush1.msra.mxu0 0.0
        %1996 = vmatprep.subr.mxu0 0.0
        %1997 = vmatpush1.msra.mxu0 0.0
        %1998 = vmatprep.subr.mxu0 0.0
        %1999 = vmatpush1.msra.mxu0 0.0
        %2000 = vmatprep.subr.mxu0 0.0
        %2001 = vmatpush1.msra.mxu0 0.0
        %2002 = vmatprep.subr.mxu0 0.0
        %2003 = vmatpush1.msra.mxu0 0.0
        %2004 = vmatprep.subr.mxu0 0.0
        %2005 = vmatpush1.msra.mxu0 0.0
        %2006 = vmatprep.subr.mxu0 0.0
        %2007 = vmatpush1.msra.mxu0 0.0
        %2008 = vmatprep.subr.mxu0 0.0
        %2009 = vmatpush1.msra.mxu0 0.0
        %2010 = vmatprep.subr.mxu0 0.0
        %2011 = vmatpush1.msra.mxu0 0.0
        %2012 = vmatprep.subr.mxu0 0.0
        %2013 = vmatpush1.msra.mxu0 0.0
        %2014 = vmatprep.subr.mxu0 0.0
        %2015 = vmatpush1.msra.mxu0 0.0
        %2016 = vmatprep.subr.mxu0 0.0
        %2017 = vmatpush1.msra.mxu0 %v779
        %2018 = vmatprep.subr.mxu0 0.0
        %2019 = vmatpush1.msra.mxu0 %v774
        %2020 = vmatprep.subr.mxu0 0.0
        %2021 = vmatpush2.msra.mxu0 0.0
        %2022 = vmatprep.subr.mxu0 0.0
        %2023 = vmatpush2.msra.mxu0 0.0
        %2024 = vmatprep.subr.mxu0 0.0
        %2025 = vmatpush2.msra.mxu0 0.0
        %2026 = vmatprep.subr.mxu0 0.0
        %2027 = vmatpush2.msra.mxu0 0.0
        %2028 = vmatprep.subr.mxu0 0.0
        %2029 = vmatpush2.msra.mxu0 0.0
        %2030 = vmatprep.subr.mxu0 0.0
        %2031 = vmatpush2.msra.mxu0 0.0
        %2032 = vmatprep.subr.mxu0 0.0
        %2033 = vmatpush2.msra.mxu0 0.0
        %2034 = vmatprep.subr.mxu0 0.0
        %2035 = vmatpush2.msra.mxu0 0.0
        %2036 = vmatprep.subr.mxu0 0.0
        %2037 = vmatpush2.msra.mxu0 0.0
        %2038 = vmatprep.subr.mxu0 0.0
        %2039 = vmatpush2.msra.mxu0 0.0
        %2040 = vmatprep.subr.mxu0 0.0
        %2041 = vmatpush2.msra.mxu0 0.0
        %2042 = vmatprep.subr.mxu0 0.0
        %2043 = vmatpush2.msra.mxu0 0.0
        %2044 = vmatprep.subr.mxu0 0.0
        %2045 = vmatpush2.msra.mxu0 0.0
        %2046 = vmatprep.subr.mxu0 0.0
        %2047 = vmatpush2.msra.mxu0 0.0
        %2048 = vmatprep.subr.mxu0 0.0
        %2049 = vmatpush2.msra.mxu0 0.0
        %2050 = vmatprep.subr.mxu0 0.0
        %2051 = vmatpush2.msra.mxu0 0.0
        %2052 = vmatprep.mubr.f32.mxu0 0.0
        %2053 = vmatmul.mubr.f32.gmra.mxu0 %v1986
        %v2054 = vpop.f32.mrf.mxu0
        %v2055 = vadd.f32 0.0, %v2054
        %v2056 = vpop.f32.mrf.mxu0
        %2057 = vdwg.mxu0
        %v2059 = vsel %vm991, %v1888, 0
        %2061 = vmatprep.subr.mxu0 0.0
        %2062 = vmatpush1.xpose.msra.mxu0 0.0
        %2063 = vmatprep.subr.mxu0 0.0
        %2064 = vmatpush1.xpose.msra.mxu0 0.0
        %2065 = vmatprep.subr.mxu0 0.0
        %2066 = vmatpush1.xpose.msra.mxu0 0.0
        %2067 = vmatprep.subr.mxu0 0.0
        %2068 = vmatpush1.xpose.msra.mxu0 0.0
        %2069 = vmatprep.subr.mxu0 0.0
        %2070 = vmatpush1.xpose.msra.mxu0 0.0
        %2071 = vmatprep.subr.mxu0 0.0
        %2072 = vmatpush1.xpose.msra.mxu0 0.0
        %2073 = vmatprep.subr.mxu0 0.0
        %2074 = vmatpush1.xpose.msra.mxu0 0.0
        %2075 = vmatprep.subr.mxu0 0.0
        %2076 = vmatpush1.xpose.msra.mxu0 0.0
        %2077 = vmatprep.subr.mxu0 0.0
        %2078 = vmatpush1.xpose.msra.mxu0 0.0
        %2079 = vmatprep.subr.mxu0 0.0
        %2080 = vmatpush1.xpose.msra.mxu0 0.0
        %2081 = vmatprep.subr.mxu0 0.0
        %2082 = vmatpush1.xpose.msra.mxu0 0.0
        %2083 = vmatprep.subr.mxu0 0.0
        %2084 = vmatpush1.xpose.msra.mxu0 0.0
        %2085 = vmatprep.subr.mxu0 0.0
        %2086 = vmatpush1.xpose.msra.mxu0 0.0
        %2087 = vmatprep.subr.mxu0 0.0
        %2088 = vmatpush1.xpose.msra.mxu0 0.0
        %2089 = vmatprep.subr.mxu0 0.0
        %2090 = vmatpush1.xpose.msra.mxu0 %v1165
        %2091 = vmatprep.subr.mxu0 0.0
        %2092 = vmatpush1.xpose.msra.mxu0 %v1163
        %2093 = vmatprep.subr.mxu0 0.0
        %2094 = vmatpush2.xpose.msra.mxu0 0.0
        %2095 = vmatprep.subr.mxu0 0.0
        %2096 = vmatpush2.xpose.msra.mxu0 0.0
        %2097 = vmatprep.subr.mxu0 0.0
        %2098 = vmatpush2.xpose.msra.mxu0 0.0
        %2099 = vmatprep.subr.mxu0 0.0
        %2100 = vmatpush2.xpose.msra.mxu0 0.0
        %2101 = vmatprep.subr.mxu0 0.0
        %2102 = vmatpush2.xpose.msra.mxu0 0.0
        %2103 = vmatprep.subr.mxu0 0.0
        %2104 = vmatpush2.xpose.msra.mxu0 0.0
        %2105 = vmatprep.subr.mxu0 0.0
        %2106 = vmatpush2.xpose.msra.mxu0 0.0
        %2107 = vmatprep.subr.mxu0 0.0
        %2108 = vmatpush2.xpose.msra.mxu0 0.0
        %2109 = vmatprep.subr.mxu0 0.0
        %2110 = vmatpush2.xpose.msra.mxu0 0.0
        %2111 = vmatprep.subr.mxu0 0.0
        %2112 = vmatpush2.xpose.msra.mxu0 0.0
        %2113 = vmatprep.subr.mxu0 0.0
        %2114 = vmatpush2.xpose.msra.mxu0 0.0
        %2115 = vmatprep.subr.mxu0 0.0
        %2116 = vmatpush2.xpose.msra.mxu0 0.0
        %2117 = vmatprep.subr.mxu0 0.0
        %2118 = vmatpush2.xpose.msra.mxu0 0.0
        %2119 = vmatprep.subr.mxu0 0.0
        %2120 = vmatpush2.xpose.msra.mxu0 0.0
        %2121 = vmatprep.subr.mxu0 0.0
        %2122 = vmatpush2.xpose.msra.mxu0 0.0
        %2123 = vmatprep.subr.mxu0 0.0
        %2124 = vmatpush2.xpose.msra.mxu0 0.0
        %2125 = vmatprep.mubr.f32.mxu0 0.0
        %2126 = vmatmul.mubr.f32.gmra.mxu0 %v2059
        %v2127 = vpop.f32.mrf.mxu0
        %v2128 = vadd.f32 0.0, %v2127
        %v2129 = vpop.f32.mrf.mxu0
        %2130 = vdwg.mxu0
        %v2131 = vsel %vm1071, %v2128, -inf
        %2132 = vmax.xlane.f32.xlu0 %v2131
        %v2133 = vpop.xlane.xlu0 %2132
        %v2134 = vsub.f32 %v2128, %v2133
        %v2135 = vmul.f32 %v2134, 1.442695
        %v2136 = vpow.pop %v2135
        %v2137 = vsel %vm1071, %v2136, 0.0
        %2138 = vadd.xlane.f32.xlu0 %v2137
        %v2139 = vpop.xlane.xlu0 %2138
        %v2140 = vrcp.pop %v2139
        %v2141 = vmul.f32 %v2136, %v2140
        %v2143 = vsel %vm1071, %v2141, 0
        %2145 = vmatprep.subr.mxu0 0.0
        %2146 = vmatpush1.msra.mxu0 0.0
        %2147 = vmatprep.subr.mxu0 0.0
        %2148 = vmatpush1.msra.mxu0 0.0
        %2149 = vmatprep.subr.mxu0 0.0
        %2150 = vmatpush1.msra.mxu0 0.0
        %2151 = vmatprep.subr.mxu0 0.0
        %2152 = vmatpush1.msra.mxu0 0.0
        %2153 = vmatprep.subr.mxu0 0.0
        %2154 = vmatpush1.msra.mxu0 0.0
        %2155 = vmatprep.subr.mxu0 0.0
        %2156 = vmatpush1.msra.mxu0 0.0
        %2157 = vmatprep.subr.mxu0 0.0
        %2158 = vmatpush1.msra.mxu0 0.0
        %2159 = vmatprep.subr.mxu0 0.0
        %2160 = vmatpush1.msra.mxu0 0.0
        %2161 = vmatprep.subr.mxu0 0.0
        %2162 = vmatpush1.msra.mxu0 0.0
        %2163 = vmatprep.subr.mxu0 0.0
        %2164 = vmatpush1.msra.mxu0 0.0
        %2165 = vmatprep.subr.mxu0 0.0
        %2166 = vmatpush1.msra.mxu0 0.0
        %2167 = vmatprep.subr.mxu0 0.0
        %2168 = vmatpush1.msra.mxu0 0.0
        %2169 = vmatprep.subr.mxu0 0.0
        %2170 = vmatpush1.msra.mxu0 0.0
        %2171 = vmatprep.subr.mxu0 0.0
        %2172 = vmatpush1.msra.mxu0 0.0
        %2173 = vmatprep.subr.mxu0 0.0
        %2174 = vmatpush1.msra.mxu0 %v1253
        %2175 = vmatprep.subr.mxu0 0.0
        %2176 = vmatpush1.msra.mxu0 %v1251
        %2177 = vmatprep.subr.mxu0 0.0
        %2178 = vmatpush2.msra.mxu0 0.0
        %2179 = vmatprep.subr.mxu0 0.0
        %2180 = vmatpush2.msra.mxu0 0.0
        %2181 = vmatprep.subr.mxu0 0.0
        %2182 = vmatpush2.msra.mxu0 0.0
        %2183 = vmatprep.subr.mxu0 0.0
        %2184 = vmatpush2.msra.mxu0 0.0
        %2185 = vmatprep.subr.mxu0 0.0
        %2186 = vmatpush2.msra.mxu0 0.0
        %2187 = vmatprep.subr.mxu0 0.0
        %2188 = vmatpush2.msra.mxu0 0.0
        %2189 = vmatprep.subr.mxu0 0.0
        %2190 = vmatpush2.msra.mxu0 0.0
        %2191 = vmatprep.subr.mxu0 0.0
        %2192 = vmatpush2.msra.mxu0 0.0
        %2193 = vmatprep.subr.mxu0 0.0
        %2194 = vmatpush2.msra.mxu0 0.0
        %2195 = vmatprep.subr.mxu0 0.0
        %2196 = vmatpush2.msra.mxu0 0.0
        %2197 = vmatprep.subr.mxu0 0.0
        %2198 = vmatpush2.msra.mxu0 0.0
        %2199 = vmatprep.subr.mxu0 0.0
        %2200 = vmatpush2.msra.mxu0 0.0
        %2201 = vmatprep.subr.mxu0 0.0
        %2202 = vmatpush2.msra.mxu0 0.0
        %2203 = vmatprep.subr.mxu0 0.0
        %2204 = vmatpush2.msra.mxu0 0.0
        %2205 = vmatprep.subr.mxu0 0.0
        %2206 = vmatpush2.msra.mxu0 0.0
        %2207 = vmatprep.subr.mxu0 0.0
        %2208 = vmatpush2.msra.mxu0 0.0
        %2209 = vmatprep.mubr.f32.mxu0 0.0
        %2210 = vmatmul.mubr.f32.gmra.mxu0 %v2143
        %v2211 = vpop.f32.mrf.mxu0
        %v2212 = vadd.f32 0.0, %v2211
        %v2213 = vpop.f32.mrf.mxu0
        %2214 = vdwg.mxu0
        %v2216 = vsel %vm991, %v1893, 0
        %2218 = vmatprep.subr.mxu0 0.0
        %2219 = vmatpush1.xpose.msra.mxu0 0.0
        %2220 = vmatprep.subr.mxu0 0.0
        %2221 = vmatpush1.xpose.msra.mxu0 0.0
        %2222 = vmatprep.subr.mxu0 0.0
        %2223 = vmatpush1.xpose.msra.mxu0 0.0
        %2224 = vmatprep.subr.mxu0 0.0
        %2225 = vmatpush1.xpose.msra.mxu0 0.0
        %2226 = vmatprep.subr.mxu0 0.0
        %2227 = vmatpush1.xpose.msra.mxu0 0.0
        %2228 = vmatprep.subr.mxu0 0.0
        %2229 = vmatpush1.xpose.msra.mxu0 0.0
        %2230 = vmatprep.subr.mxu0 0.0
        %2231 = vmatpush1.xpose.msra.mxu0 0.0
        %2232 = vmatprep.subr.mxu0 0.0
        %2233 = vmatpush1.xpose.msra.mxu0 0.0
        %2234 = vmatprep.subr.mxu0 0.0
        %2235 = vmatpush1.xpose.msra.mxu0 0.0
        %2236 = vmatprep.subr.mxu0 0.0
        %2237 = vmatpush1.xpose.msra.mxu0 0.0
        %2238 = vmatprep.subr.mxu0 0.0
        %2239 = vmatpush1.xpose.msra.mxu0 0.0
        %2240 = vmatprep.subr.mxu0 0.0
        %2241 = vmatpush1.xpose.msra.mxu0 0.0
        %2242 = vmatprep.subr.mxu0 0.0
        %2243 = vmatpush1.xpose.msra.mxu0 0.0
        %2244 = vmatprep.subr.mxu0 0.0
        %2245 = vmatpush1.xpose.msra.mxu0 0.0
        %2246 = vmatprep.subr.mxu0 0.0
        %2247 = vmatpush1.xpose.msra.mxu0 %v1338
        %2248 = vmatprep.subr.mxu0 0.0
        %2249 = vmatpush1.xpose.msra.mxu0 %v1336
        %2250 = vmatprep.subr.mxu0 0.0
        %2251 = vmatpush2.xpose.msra.mxu0 0.0
        %2252 = vmatprep.subr.mxu0 0.0
        %2253 = vmatpush2.xpose.msra.mxu0 0.0
        %2254 = vmatprep.subr.mxu0 0.0
        %2255 = vmatpush2.xpose.msra.mxu0 0.0
        %2256 = vmatprep.subr.mxu0 0.0
        %2257 = vmatpush2.xpose.msra.mxu0 0.0
        %2258 = vmatprep.subr.mxu0 0.0
        %2259 = vmatpush2.xpose.msra.mxu0 0.0
        %2260 = vmatprep.subr.mxu0 0.0
        %2261 = vmatpush2.xpose.msra.mxu0 0.0
        %2262 = vmatprep.subr.mxu0 0.0
        %2263 = vmatpush2.xpose.msra.mxu0 0.0
        %2264 = vmatprep.subr.mxu0 0.0
        %2265 = vmatpush2.xpose.msra.mxu0 0.0
        %2266 = vmatprep.subr.mxu0 0.0
        %2267 = vmatpush2.xpose.msra.mxu0 0.0
        %2268 = vmatprep.subr.mxu0 0.0
        %2269 = vmatpush2.xpose.msra.mxu0 0.0
        %2270 = vmatprep.subr.mxu0 0.0
        %2271 = vmatpush2.xpose.msra.mxu0 0.0
        %2272 = vmatprep.subr.mxu0 0.0
        %2273 = vmatpush2.xpose.msra.mxu0 0.0
        %2274 = vmatprep.subr.mxu0 0.0
        %2275 = vmatpush2.xpose.msra.mxu0 0.0
        %2276 = vmatprep.subr.mxu0 0.0
        %2277 = vmatpush2.xpose.msra.mxu0 0.0
        %2278 = vmatprep.subr.mxu0 0.0
        %2279 = vmatpush2.xpose.msra.mxu0 0.0
        %2280 = vmatprep.subr.mxu0 0.0
        %2281 = vmatpush2.xpose.msra.mxu0 0.0
        %2282 = vmatprep.mubr.f32.mxu0 0.0
        %2283 = vmatmul.mubr.f32.gmra.mxu0 %v2216
        %v2284 = vpop.f32.mrf.mxu0
        %v2285 = vadd.f32 0.0, %v2284
        %v2286 = vpop.f32.mrf.mxu0
        %2287 = vdwg.mxu0
        %v2288 = vsel %vm1071, %v2285, -inf
        %2289 = vmax.xlane.f32.xlu0 %v2288
        %v2290 = vpop.xlane.xlu0 %2289
        %v2291 = vsub.f32 %v2285, %v2290
        %v2292 = vmul.f32 %v2291, 1.442695
        %v2293 = vpow.pop %v2292
        %v2294 = vsel %vm1071, %v2293, 0.0
        %2295 = vadd.xlane.f32.xlu0 %v2294
        %v2296 = vpop.xlane.xlu0 %2295
        %v2297 = vrcp.pop %v2296
        %v2298 = vmul.f32 %v2293, %v2297
        %v2300 = vsel %vm1071, %v2298, 0
        %2302 = vmatprep.subr.mxu0 0.0
        %2303 = vmatpush1.msra.mxu0 0.0
        %2304 = vmatprep.subr.mxu0 0.0
        %2305 = vmatpush1.msra.mxu0 0.0
        %2306 = vmatprep.subr.mxu0 0.0
        %2307 = vmatpush1.msra.mxu0 0.0
        %2308 = vmatprep.subr.mxu0 0.0
        %2309 = vmatpush1.msra.mxu0 0.0
        %2310 = vmatprep.subr.mxu0 0.0
        %2311 = vmatpush1.msra.mxu0 0.0
        %2312 = vmatprep.subr.mxu0 0.0
        %2313 = vmatpush1.msra.mxu0 0.0
        %2314 = vmatprep.subr.mxu0 0.0
        %2315 = vmatpush1.msra.mxu0 0.0
        %2316 = vmatprep.subr.mxu0 0.0
        %2317 = vmatpush1.msra.mxu0 0.0
        %2318 = vmatprep.subr.mxu0 0.0
        %2319 = vmatpush1.msra.mxu0 0.0
        %2320 = vmatprep.subr.mxu0 0.0
        %2321 = vmatpush1.msra.mxu0 0.0
        %2322 = vmatprep.subr.mxu0 0.0
        %2323 = vmatpush1.msra.mxu0 0.0
        %2324 = vmatprep.subr.mxu0 0.0
        %2325 = vmatpush1.msra.mxu0 0.0
        %2326 = vmatprep.subr.mxu0 0.0
        %2327 = vmatpush1.msra.mxu0 0.0
        %2328 = vmatprep.subr.mxu0 0.0
        %2329 = vmatpush1.msra.mxu0 0.0
        %2330 = vmatprep.subr.mxu0 0.0
        %2331 = vmatpush1.msra.mxu0 %v1424
        %2332 = vmatprep.subr.mxu0 0.0
        %2333 = vmatpush1.msra.mxu0 %v1422
        %2334 = vmatprep.subr.mxu0 0.0
        %2335 = vmatpush2.msra.mxu0 0.0
        %2336 = vmatprep.subr.mxu0 0.0
        %2337 = vmatpush2.msra.mxu0 0.0
        %2338 = vmatprep.subr.mxu0 0.0
        %2339 = vmatpush2.msra.mxu0 0.0
        %2340 = vmatprep.subr.mxu0 0.0
        %2341 = vmatpush2.msra.mxu0 0.0
        %2342 = vmatprep.subr.mxu0 0.0
        %2343 = vmatpush2.msra.mxu0 0.0
        %2344 = vmatprep.subr.mxu0 0.0
        %2345 = vmatpush2.msra.mxu0 0.0
        %2346 = vmatprep.subr.mxu0 0.0
        %2347 = vmatpush2.msra.mxu0 0.0
        %2348 = vmatprep.subr.mxu0 0.0
        %2349 = vmatpush2.msra.mxu0 0.0
        %2350 = vmatprep.subr.mxu0 0.0
        %2351 = vmatpush2.msra.mxu0 0.0
        %2352 = vmatprep.subr.mxu0 0.0
        %2353 = vmatpush2.msra.mxu0 0.0
        %2354 = vmatprep.subr.mxu0 0.0
        %2355 = vmatpush2.msra.mxu0 0.0
        %2356 = vmatprep.subr.mxu0 0.0
        %2357 = vmatpush2.msra.mxu0 0.0
        %2358 = vmatprep.subr.mxu0 0.0
        %2359 = vmatpush2.msra.mxu0 0.0
        %2360 = vmatprep.subr.mxu0 0.0
        %2361 = vmatpush2.msra.mxu0 0.0
        %2362 = vmatprep.subr.mxu0 0.0
        %2363 = vmatpush2.msra.mxu0 0.0
        %2364 = vmatprep.subr.mxu0 0.0
        %2365 = vmatpush2.msra.mxu0 0.0
        %2366 = vmatprep.mubr.f32.mxu0 0.0
        %2367 = vmatmul.mubr.f32.gmra.mxu0 %v2300
        %v2368 = vpop.f32.mrf.mxu0
        %v2369 = vadd.f32 0.0, %v2368
        %v2370 = vpop.f32.mrf.mxu0
        %2371 = vdwg.mxu0
        %v2373 = vsel %vm991, %v1898, 0
        %2375 = vmatprep.subr.mxu0 0.0
        %2376 = vmatpush1.xpose.msra.mxu0 0.0
        %2377 = vmatprep.subr.mxu0 0.0
        %2378 = vmatpush1.xpose.msra.mxu0 0.0
        %2379 = vmatprep.subr.mxu0 0.0
        %2380 = vmatpush1.xpose.msra.mxu0 0.0
        %2381 = vmatprep.subr.mxu0 0.0
        %2382 = vmatpush1.xpose.msra.mxu0 0.0
        %2383 = vmatprep.subr.mxu0 0.0
        %2384 = vmatpush1.xpose.msra.mxu0 0.0
        %2385 = vmatprep.subr.mxu0 0.0
        %2386 = vmatpush1.xpose.msra.mxu0 0.0
        %2387 = vmatprep.subr.mxu0 0.0
        %2388 = vmatpush1.xpose.msra.mxu0 0.0
        %2389 = vmatprep.subr.mxu0 0.0
        %2390 = vmatpush1.xpose.msra.mxu0 0.0
        %2391 = vmatprep.subr.mxu0 0.0
        %2392 = vmatpush1.xpose.msra.mxu0 0.0
        %2393 = vmatprep.subr.mxu0 0.0
        %2394 = vmatpush1.xpose.msra.mxu0 0.0
        %2395 = vmatprep.subr.mxu0 0.0
        %2396 = vmatpush1.xpose.msra.mxu0 0.0
        %2397 = vmatprep.subr.mxu0 0.0
        %2398 = vmatpush1.xpose.msra.mxu0 0.0
        %2399 = vmatprep.subr.mxu0 0.0
        %2400 = vmatpush1.xpose.msra.mxu0 0.0
        %2401 = vmatprep.subr.mxu0 0.0
        %2402 = vmatpush1.xpose.msra.mxu0 0.0
        %2403 = vmatprep.subr.mxu0 0.0
        %2404 = vmatpush1.xpose.msra.mxu0 %v1509
        %2405 = vmatprep.subr.mxu0 0.0
        %2406 = vmatpush1.xpose.msra.mxu0 %v1507
        %2407 = vmatprep.subr.mxu0 0.0
        %2408 = vmatpush2.xpose.msra.mxu0 0.0
        %2409 = vmatprep.subr.mxu0 0.0
        %2410 = vmatpush2.xpose.msra.mxu0 0.0
        %2411 = vmatprep.subr.mxu0 0.0
        %2412 = vmatpush2.xpose.msra.mxu0 0.0
        %2413 = vmatprep.subr.mxu0 0.0
        %2414 = vmatpush2.xpose.msra.mxu0 0.0
        %2415 = vmatprep.subr.mxu0 0.0
        %2416 = vmatpush2.xpose.msra.mxu0 0.0
        %2417 = vmatprep.subr.mxu0 0.0
        %2418 = vmatpush2.xpose.msra.mxu0 0.0
        %2419 = vmatprep.subr.mxu0 0.0
        %2420 = vmatpush2.xpose.msra.mxu0 0.0
        %2421 = vmatprep.subr.mxu0 0.0
        %2422 = vmatpush2.xpose.msra.mxu0 0.0
        %2423 = vmatprep.subr.mxu0 0.0
        %2424 = vmatpush2.xpose.msra.mxu0 0.0
        %2425 = vmatprep.subr.mxu0 0.0
        %2426 = vmatpush2.xpose.msra.mxu0 0.0
        %2427 = vmatprep.subr.mxu0 0.0
        %2428 = vmatpush2.xpose.msra.mxu0 0.0
        %2429 = vmatprep.subr.mxu0 0.0
        %2430 = vmatpush2.xpose.msra.mxu0 0.0
        %2431 = vmatprep.subr.mxu0 0.0
        %2432 = vmatpush2.xpose.msra.mxu0 0.0
        %2433 = vmatprep.subr.mxu0 0.0
        %2434 = vmatpush2.xpose.msra.mxu0 0.0
        %2435 = vmatprep.subr.mxu0 0.0
        %2436 = vmatpush2.xpose.msra.mxu0 0.0
        %2437 = vmatprep.subr.mxu0 0.0
        %2438 = vmatpush2.xpose.msra.mxu0 0.0
        %2439 = vmatprep.mubr.f32.mxu0 0.0
        %2440 = vmatmul.mubr.f32.gmra.mxu0 %v2373
        %v2441 = vpop.f32.mrf.mxu0
        %v2442 = vadd.f32 0.0, %v2441
        %v2443 = vpop.f32.mrf.mxu0
        %2444 = vdwg.mxu0
        %v2445 = vsel %vm1071, %v2442, -inf
        %2446 = vmax.xlane.f32.xlu0 %v2445
        %v2447 = vpop.xlane.xlu0 %2446
        %v2448 = vsub.f32 %v2442, %v2447
        %v2449 = vmul.f32 %v2448, 1.442695
        %v2450 = vpow.pop %v2449
        %v2451 = vsel %vm1071, %v2450, 0.0
        %2452 = vadd.xlane.f32.xlu0 %v2451
        %v2453 = vpop.xlane.xlu0 %2452
        %v2454 = vrcp.pop %v2453
        %v2455 = vmul.f32 %v2450, %v2454
        %v2457 = vsel %vm1071, %v2455, 0
        %2459 = vmatprep.subr.mxu0 0.0
        %2460 = vmatpush1.msra.mxu0 0.0
        %2461 = vmatprep.subr.mxu0 0.0
        %2462 = vmatpush1.msra.mxu0 0.0
        %2463 = vmatprep.subr.mxu0 0.0
        %2464 = vmatpush1.msra.mxu0 0.0
        %2465 = vmatprep.subr.mxu0 0.0
        %2466 = vmatpush1.msra.mxu0 0.0
        %2467 = vmatprep.subr.mxu0 0.0
        %2468 = vmatpush1.msra.mxu0 0.0
        %2469 = vmatprep.subr.mxu0 0.0
        %2470 = vmatpush1.msra.mxu0 0.0
        %2471 = vmatprep.subr.mxu0 0.0
        %2472 = vmatpush1.msra.mxu0 0.0
        %2473 = vmatprep.subr.mxu0 0.0
        %2474 = vmatpush1.msra.mxu0 0.0
        %2475 = vmatprep.subr.mxu0 0.0
        %2476 = vmatpush1.msra.mxu0 0.0
        %2477 = vmatprep.subr.mxu0 0.0
        %2478 = vmatpush1.msra.mxu0 0.0
        %2479 = vmatprep.subr.mxu0 0.0
        %2480 = vmatpush1.msra.mxu0 0.0
        %2481 = vmatprep.subr.mxu0 0.0
        %2482 = vmatpush1.msra.mxu0 0.0
        %2483 = vmatprep.subr.mxu0 0.0
        %2484 = vmatpush1.msra.mxu0 0.0
        %2485 = vmatprep.subr.mxu0 0.0
        %2486 = vmatpush1.msra.mxu0 0.0
        %2487 = vmatprep.subr.mxu0 0.0
        %2488 = vmatpush1.msra.mxu0 %v1595
        %2489 = vmatprep.subr.mxu0 0.0
        %2490 = vmatpush1.msra.mxu0 %v1593
        %2491 = vmatprep.subr.mxu0 0.0
        %2492 = vmatpush2.msra.mxu0 0.0
        %2493 = vmatprep.subr.mxu0 0.0
        %2494 = vmatpush2.msra.mxu0 0.0
        %2495 = vmatprep.subr.mxu0 0.0
        %2496 = vmatpush2.msra.mxu0 0.0
        %2497 = vmatprep.subr.mxu0 0.0
        %2498 = vmatpush2.msra.mxu0 0.0
        %2499 = vmatprep.subr.mxu0 0.0
        %2500 = vmatpush2.msra.mxu0 0.0
        %2501 = vmatprep.subr.mxu0 0.0
        %2502 = vmatpush2.msra.mxu0 0.0
        %2503 = vmatprep.subr.mxu0 0.0
        %2504 = vmatpush2.msra.mxu0 0.0
        %2505 = vmatprep.subr.mxu0 0.0
        %2506 = vmatpush2.msra.mxu0 0.0
        %2507 = vmatprep.subr.mxu0 0.0
        %2508 = vmatpush2.msra.mxu0 0.0
        %2509 = vmatprep.subr.mxu0 0.0
        %2510 = vmatpush2.msra.mxu0 0.0
        %2511 = vmatprep.subr.mxu0 0.0
        %2512 = vmatpush2.msra.mxu0 0.0
        %2513 = vmatprep.subr.mxu0 0.0
        %2514 = vmatpush2.msra.mxu0 0.0
        %2515 = vmatprep.subr.mxu0 0.0
        %2516 = vmatpush2.msra.mxu0 0.0
        %2517 = vmatprep.subr.mxu0 0.0
        %2518 = vmatpush2.msra.mxu0 0.0
        %2519 = vmatprep.subr.mxu0 0.0
        %2520 = vmatpush2.msra.mxu0 0.0
        %2521 = vmatprep.subr.mxu0 0.0
        %2522 = vmatpush2.msra.mxu0 0.0
        %2523 = vmatprep.mubr.f32.mxu0 0.0
        %2524 = vmatmul.mubr.f32.gmra.mxu0 %v2457
        %v2525 = vpop.f32.mrf.mxu0
        %v2526 = vadd.f32 0.0, %v2525
        %v2527 = vpop.f32.mrf.mxu0
        %2528 = vdwg.mxu0
        %2530 = vrot.lane.b32.xlu0 %v2212, 8
        %v2531 = vpop.permute.xlu0 %2530
        %2534 = vrot.lane.b32.xlu0 %v2369, 16
        %v2535 = vpop.permute.xlu0 %2534
        %2538 = vrot.lane.b32.xlu0 %v2526, 24
        %v2539 = vpop.permute.xlu0 %2538
        %v2541 = vsel %vm991, %v2055, %v2531
        %v2542 = vsel %vm1071, %v2541, %v2535
        %v2543 = vsel %vm1685, %v2542, %v2539
        %v2545 = vsel %vm614, %v2543, 0
        %2547 = vmatprep.subr.mxu0 0.0
        %2548 = vmatpush1.xpose.msra.mxu0 0.0
        %2549 = vmatprep.subr.mxu0 0.0
        %2550 = vmatpush1.xpose.msra.mxu0 0.0
        %2551 = vmatprep.subr.mxu0 0.0
        %2552 = vmatpush1.xpose.msra.mxu0 0.0
        %2553 = vmatprep.subr.mxu0 0.0
        %2554 = vmatpush1.xpose.msra.mxu0 0.0
        %2555 = vmatprep.subr.mxu0 0.0
        %2556 = vmatpush1.xpose.msra.mxu0 0.0
        %2557 = vmatprep.subr.mxu0 0.0
        %2558 = vmatpush1.xpose.msra.mxu0 0.0
        %2559 = vmatprep.subr.mxu0 0.0
        %2560 = vmatpush1.xpose.msra.mxu0 0.0
        %2561 = vmatprep.subr.mxu0 0.0
        %2562 = vmatpush1.xpose.msra.mxu0 0.0
        %2563 = vmatprep.subr.mxu0 0.0
        %2564 = vmatpush1.xpose.msra.mxu0 0.0
        %2565 = vmatprep.subr.mxu0 0.0
        %2566 = vmatpush1.xpose.msra.mxu0 0.0
        %2567 = vmatprep.subr.mxu0 0.0
        %2568 = vmatpush1.xpose.msra.mxu0 0.0
        %2569 = vmatprep.subr.mxu0 0.0
        %2570 = vmatpush1.xpose.msra.mxu0 0.0
        %2571 = vmatprep.subr.mxu0 0.0
        %2572 = vmatpush1.xpose.msra.mxu0 0.0
        %2573 = vmatprep.subr.mxu0 0.0
        %2574 = vmatpush1.xpose.msra.mxu0 0.0
        %2575 = vmatprep.subr.mxu0 0.0
        %2576 = vmatpush1.xpose.msra.mxu0 0.0
        %2577 = vmatprep.subr.mxu0 0.0
        %2578 = vmatpush1.xpose.msra.mxu0 %v2545
        %2579 = vmatprep.subr.mxu0 0.0
        %2580 = vmatpush2.xpose.msra.mxu0 0.0
        %2581 = vmatprep.subr.mxu0 0.0
        %2582 = vmatpush2.xpose.msra.mxu0 0.0
        %2583 = vmatprep.subr.mxu0 0.0
        %2584 = vmatpush2.xpose.msra.mxu0 0.0
        %2585 = vmatprep.subr.mxu0 0.0
        %2586 = vmatpush2.xpose.msra.mxu0 0.0
        %2587 = vmatprep.subr.mxu0 0.0
        %2588 = vmatpush2.xpose.msra.mxu0 0.0
        %2589 = vmatprep.subr.mxu0 0.0
        %2590 = vmatpush2.xpose.msra.mxu0 0.0
        %2591 = vmatprep.subr.mxu0 0.0
        %2592 = vmatpush2.xpose.msra.mxu0 0.0
        %2593 = vmatprep.subr.mxu0 0.0
        %2594 = vmatpush2.xpose.msra.mxu0 0.0
        %2595 = vmatprep.subr.mxu0 0.0
        %2596 = vmatpush2.xpose.msra.mxu0 0.0
        %2597 = vmatprep.subr.mxu0 0.0
        %2598 = vmatpush2.xpose.msra.mxu0 0.0
        %2599 = vmatprep.subr.mxu0 0.0
        %2600 = vmatpush2.xpose.msra.mxu0 0.0
        %2601 = vmatprep.subr.mxu0 0.0
        %2602 = vmatpush2.xpose.msra.mxu0 0.0
        %2603 = vmatprep.subr.mxu0 0.0
        %2604 = vmatpush2.xpose.msra.mxu0 0.0
        %2605 = vmatprep.subr.mxu0 0.0
        %2606 = vmatpush2.xpose.msra.mxu0 0.0
        %2607 = vmatprep.subr.mxu0 0.0
        %2608 = vmatpush2.xpose.msra.mxu0 0.0
        %2609 = vmatprep.subr.mxu0 0.0
        %2610 = vmatpush2.xpose.msra.mxu0 0.0
        %2611 = vmatprep.mubr.f32.mxu0 0.0
        %2612 = vmatmul.mubr.f32.gmra.mxu0 %v1692
        %v2613 = vpop.f32.mrf.mxu0
        %v2614 = vadd.f32 0.0, %v2613
        %v2615 = vpop.f32.mrf.mxu0
        %2616 = vmatprep.mubr.f32.mxu0 0.0
        %2617 = vmatmul.mubr.f32.gmra.mxu0 %v1695
        %v2618 = vpop.f32.mrf.mxu0
        %v2619 = vadd.f32 0.0, %v2618
        %v2620 = vpop.f32.mrf.mxu0
        %2621 = vmatprep.mubr.f32.mxu0 0.0
        %2622 = vmatmul.mubr.f32.gmra.mxu0 %v1698
        %v2623 = vpop.f32.mrf.mxu0
        %v2624 = vadd.f32 0.0, %v2623
        %v2625 = vpop.f32.mrf.mxu0
        %2626 = vmatprep.mubr.f32.mxu0 0.0
        %2627 = vmatmul.mubr.f32.gmra.mxu0 %v1701
        %v2628 = vpop.f32.mrf.mxu0
        %v2629 = vadd.f32 0.0, %v2628
        %v2630 = vpop.f32.mrf.mxu0
        %2631 = vdwg.mxu0
        %2633 = vrot.lane.b32.xlu0 %v2619, 8
        %v2634 = vpop.permute.xlu0 %2633
        %2637 = vrot.lane.b32.xlu0 %v2624, 16
        %v2638 = vpop.permute.xlu0 %2637
        %2641 = vrot.lane.b32.xlu0 %v2629, 24
        %v2642 = vpop.permute.xlu0 %2641
        %v2644 = vsel %vm991, %v2614, %v2634
        %v2645 = vsel %vm1071, %v2644, %v2638
        %v2646 = vsel %vm1685, %v2645, %v2642
        %v2647 = vsel %vm614, %v1805, 0.0
        %2648 = vadd.xlane.f32.xlu0 %v2647
        %v2649 = vpop.xlane.xlu0 %2648
        %v2650 = vsel %vm614, %v2646, 0.0
        %2651 = vadd.xlane.f32.xlu0 %v2650
        %v2652 = vpop.xlane.xlu0 %2651
        %v2653 = vrcp.pop 32.0
        %v2654 = vmul.f32 %v2649, %v2653
        %v2655 = vmul.f32 %v2652, %v2653
        %v2656 = vsub.f32 %v1805, %v2654
        %v2657 = vsub.f32 %v2646, %v2655
        %v2658 = vmul.f32 %v2656, %v2656
        %v2659 = vmul.f32 %v2657, %v2657
        %v2660 = vsel %vm614, %v2658, 0.0
        %2661 = vadd.xlane.f32.xlu0 %v2660
        %v2662 = vpop.xlane.xlu0 %2661
        %v2663 = vsel %vm614, %v2659, 0.0
        %2664 = vadd.xlane.f32.xlu0 %v2663
        %v2665 = vpop.xlane.xlu0 %2664
        %v2666 = vmul.f32 %v2662, %v2653
        %v2667 = vmul.f32 %v2665, %v2653
        %v2668 = vadd.f32 %v2666, 1e-05
        %v2669 = vadd.f32 %v2667, 1e-05
        %v2670 = vrsqrt.pop %v2668
        %v2671 = vrsqrt.pop %v2669
        %v2672 = vmul.f32 %v2656, %v2670
        %v2673 = vmul.f32 %v2657, %v2671
        %v2674 = vld [vmem:[%s11] sm:$0x1]
        %v2676 = vlaneseq
        %v2677 = vshrl.u32 %v2676, 7
        %v2678 = vsub.s32 0, %v2677
        %v2679 = vrot.slane %v2674, %v2678
        %v2681 = vmul.f32 %v2672, %v2679
        %v2682 = vmul.f32 %v2673, %v2679
        %v2683 = vld [vmem:[%s12] sm:$0x1]
        %v2685 = vlaneseq
        %v2686 = vshrl.u32 %v2685, 7
        %v2687 = vsub.s32 0, %v2686
        %v2688 = vrot.slane %v2683, %v2687
        %v2690 = vadd.f32 %v2681, %v2688
        %v2691 = vadd.f32 %v2682, %v2688
        %v2692 = vld [vmem:[#allocation12] sm:$0xff]
        %v2693 = vld [vmem:[#allocation12 + $0x8] sm:$0xff]
        %v2694 = vld [vmem:[#allocation12 + $0x10] sm:$0xff]
        %v2695 = vld [vmem:[#allocation12 + $0x18] sm:$0xff]
        %v2696 = vld [vmem:[%s14] sm:$0x1]
        %v2698 = vlaneseq
        %v2699 = vshrl.u32 %v2698, 7
        %v2700 = vsub.s32 0, %v2699
        %v2701 = vrot.slane %v2696, %v2700
        %v2704 = vsel %vm614, %v2690, 0
        %v2707 = vsel %vm614, %v2691, 0
        %2709 = vmatprep.subr.mxu0 0.0
        %2710 = vmatpush1.msra.mxu0 0.0
        %2711 = vmatprep.subr.mxu0 0.0
        %2712 = vmatpush1.msra.mxu0 0.0
        %2713 = vmatprep.subr.mxu0 0.0
        %2714 = vmatpush1.msra.mxu0 0.0
        %2715 = vmatprep.subr.mxu0 0.0
        %2716 = vmatpush1.msra.mxu0 0.0
        %2717 = vmatprep.subr.mxu0 0.0
        %2718 = vmatpush1.msra.mxu0 0.0
        %2719 = vmatprep.subr.mxu0 0.0
        %2720 = vmatpush1.msra.mxu0 0.0
        %2721 = vmatprep.subr.mxu0 0.0
        %2722 = vmatpush1.msra.mxu0 0.0
        %2723 = vmatprep.subr.mxu0 0.0
        %2724 = vmatpush1.msra.mxu0 0.0
        %2725 = vmatprep.subr.mxu0 0.0
        %2726 = vmatpush1.msra.mxu0 0.0
        %2727 = vmatprep.subr.mxu0 0.0
        %2728 = vmatpush1.msra.mxu0 0.0
        %2729 = vmatprep.subr.mxu0 0.0
        %2730 = vmatpush1.msra.mxu0 0.0
        %2731 = vmatprep.subr.mxu0 0.0
        %2732 = vmatpush1.msra.mxu0 0.0
        %2733 = vmatprep.subr.mxu0 0.0
        %2734 = vmatpush1.msra.mxu0 %v2695
        %2735 = vmatprep.subr.mxu0 0.0
        %2736 = vmatpush1.msra.mxu0 %v2694
        %2737 = vmatprep.subr.mxu0 0.0
        %2738 = vmatpush1.msra.mxu0 %v2693
        %2739 = vmatprep.subr.mxu0 0.0
        %2740 = vmatpush1.msra.mxu0 %v2692
        %2741 = vmatprep.subr.mxu0 0.0
        %2742 = vmatpush2.msra.mxu0 0.0
        %2743 = vmatprep.subr.mxu0 0.0
        %2744 = vmatpush2.msra.mxu0 0.0
        %2745 = vmatprep.subr.mxu0 0.0
        %2746 = vmatpush2.msra.mxu0 0.0
        %2747 = vmatprep.subr.mxu0 0.0
        %2748 = vmatpush2.msra.mxu0 0.0
        %2749 = vmatprep.subr.mxu0 0.0
        %2750 = vmatpush2.msra.mxu0 0.0
        %2751 = vmatprep.subr.mxu0 0.0
        %2752 = vmatpush2.msra.mxu0 0.0
        %2753 = vmatprep.subr.mxu0 0.0
        %2754 = vmatpush2.msra.mxu0 0.0
        %2755 = vmatprep.subr.mxu0 0.0
        %2756 = vmatpush2.msra.mxu0 0.0
        %2757 = vmatprep.subr.mxu0 0.0
        %2758 = vmatpush2.msra.mxu0 0.0
        %2759 = vmatprep.subr.mxu0 0.0
        %2760 = vmatpush2.msra.mxu0 0.0
        %2761 = vmatprep.subr.mxu0 0.0
        %2762 = vmatpush2.msra.mxu0 0.0
        %2763 = vmatprep.subr.mxu0 0.0
        %2764 = vmatpush2.msra.mxu0 0.0
        %2765 = vmatprep.subr.mxu0 0.0
        %2766 = vmatpush2.msra.mxu0 0.0
        %2767 = vmatprep.subr.mxu0 0.0
        %2768 = vmatpush2.msra.mxu0 0.0
        %2769 = vmatprep.subr.mxu0 0.0
        %2770 = vmatpush2.msra.mxu0 0.0
        %2771 = vmatprep.subr.mxu0 0.0
        %2772 = vmatpush2.msra.mxu0 0.0
        %2773 = vmatprep.mubr.f32.mxu0 0.0
        %2774 = vmatmul.mubr.f32.gmra.mxu0 %v2704
        %v2775 = vpop.f32.mrf.mxu0
        %v2776 = vadd.f32 %v2701, %v2775
        %v2777 = vpop.f32.mrf.mxu0
        %2778 = vmatprep.mubr.f32.mxu0 0.0
        %2779 = vmatmul.mubr.f32.gmra.mxu0 %v2707
        %v2780 = vpop.f32.mrf.mxu0
        %v2781 = vadd.f32 %v2701, %v2780
        %v2782 = vpop.f32.mrf.mxu0
        %2783 = vdwg.mxu0
        %s2784 = sld [smem:[#allocation2]]
        %v2785 = vstv %s2784
        %v2786 = vtanh.pop %v2785
        %v2787 = vmul.f32 %v2786, %v2776
        %v2788 = vmul.f32 %v2786, %v2781
        %v2789 = vadd.f32 %v782, %v2787
        %v2790 = vadd.f32 %v784, %v2788
        %2791 = vst.msk [vmem:[%s588] sm:$0xff] %vm798, %v2789
        %s2792 = scalar_lea.vmem %s588, 8 [#allocation14]
        %2793 = vst.msk [vmem:[%s2792] sm:$0xff] %vm798, %v2790
        %s2794 = sand.u32 %s367, 1
        %s2795 = scalar_lea.sflag [#allocation5], %s2794
        %s2796 = sand.u32 %s367, 1
        %s2797 = smul.addr %s2796, 16
        %s2798 = scalar_lea.vmem [#allocation14], %s2797
        // Predicated region
        $region105: #{tpu_custom_call.1} parent=79 // pred_check
          %p2799 = pneg %p377
        $region106: #{tpu_custom_call.1} parent=79 // pred_check_branch
          %2801 = sbr.rel (%p2799) target = $region108
        $region107: #{tpu_custom_call.1} parent=79 // pred_region
          %s2802 = smul.u32 2, %s34
          %s2804 = ssub.s32 256, 256
          %2805 = vsyncadd %s2795, %s2804
          %s2806 = smul.addr %s2802, 128
          %s2807 = scalar_lea.hbm %s15, %s2806
          %s2808 = sshll.u32 %s2798, 4
          %s2809 = int_to_ptr.vmem [resolvable:$true] %s2808
          %2814 = dma.vmem_to_hbm [thread:$0]  %s2809, 256, %s2807, %s2795, 128, 128, 8
        $region108: #{tpu_custom_call.1} parent=79 // pred_fallthru
          _
      $region80: #{tpu_custom_call.1} parent=5 // pred_fallthru
        _
      %p2815 = scmp.le.s32.totalorder 2, %s29
      // Predicated region
      $region109: #{tpu_custom_call.1} parent=5 // pred_check
        %p2816 = pneg %p2815
      $region110: #{tpu_custom_call.1} parent=5 // pred_check_branch
        %2818 = sbr.rel (%p2816) target = $region112
      $region111: #{tpu_custom_call.1} parent=5 // pred_region
        %s2819 = ssub.s32 %s29, 2
        // Predicated region
        $region113: #{tpu_custom_call.1} parent=111 // pred_check
          %p2820 = pneg %p383
        $region114: #{tpu_custom_call.1} parent=111 // pred_check_branch
          %2822 = sbr.rel (%p2820) target = $region116
        $region115: #{tpu_custom_call.1} parent=111 // pred_region
          %s2823 = sand.u32 %s368, 1
          %s2824 = scalar_lea.sflag [#allocation5], %s2823
          %s2825 = sand.u32 %s368, 1
          %s2826 = smul.addr %s2825, 16
          %s2827 = scalar_lea.vmem [#allocation14], %s2826
          %2828 = dma.done %s2824, 256
        $region116: #{tpu_custom_call.1} parent=111 // pred_fallthru
          _
      $region112: #{tpu_custom_call.1} parent=5 // pred_fallthru
        _
    $region6: #{tpu_custom_call.1} parent=1 // loop_footer
      %s33 = sadd.s32 1, %s29
    $region7: #{tpu_custom_call.1} parent=1 // loop_footer_branch
      %28 = sbr.rel target = $region3
    $region8: #{tpu_custom_call.1} parent=1 // loop_exit
      _
    %2829 = vsyncpa [#allocation4], 1
    %s2830 = scalar_lea.sflag [#allocation4], 1
    %2831 = vsyncpa %s2830, 1
    %2832 = vsyncpa [#allocation7], 1
    %2833 = vsyncpa [#allocation10], 1
    %2834 = vsyncpa [#allocation13], 1
    %2835 = vsyncpa [#allocation5], 1
    %s2836 = scalar_lea.sflag [#allocation5], 1
    %2837 = vsyncpa %s2836, 1

</llo_original>
